<compile_context>
chip_gen: v6e
topology: v6e:2x2x1
jax: 0.10.0
libtpu: 0.0.40
codegen_flags: <defaults>
</compile_context>

<pallas_src>
import functools

import jax
import jax.numpy as jnp
from jax import lax
from jax.experimental import pallas as pl
from jax.experimental.pallas import tpu as pltpu

# ---- module hyper-parameters (mirrors model.py) ----
BLOCK_SIZE = 32
N_EMBD = 64
NUM_HEADS = 4
HEAD_SIZE = N_EMBD // NUM_HEADS   # 16
NEG_INF = -1e30                   # large finite negative (avoids -inf -> NaN risk)


def mha_kernel(x_ref, wqkv_ref, wo_ref, bo_ref, o_ref, *, bt, seq_len):
    """One grid step == `bt` batch elements.

    x_ref    : (bt*T, C)   f32 input slab (cast to bf16 in-kernel)
    wqkv_ref : (C, 3C)     bf16 fused Q/K/V weights; Q cols pre-scaled by 1/sqrt(C)
    wo_ref   : (C, C)      bf16 output-projection weight (pre-transposed)
    bo_ref   : (1, C)      f32 output-projection bias
    o_ref    : (bt*T, C)   output slab (f32)
    """
    T = seq_len
    C = N_EMBD
    H = NUM_HEADS
    hs = HEAD_SIZE

    # In-kernel bf16 cast of the activation slab (rides spare VPU slots).
    x = x_ref[...].astype(jnp.bfloat16)                       # (bt*T, C)
    wqkv = wqkv_ref[...]                                      # (C, 3C) bf16

    # Fused QKV projection: one wide MXU matmul, f32 accumulation, single bf16 cast.
    qkv = jnp.dot(x, wqkv, preferred_element_type=jnp.float32)
    qkv = qkv.astype(jnp.bfloat16)                            # (bt*T, 3C)

    # Stack heads into the einsum batch dimension: (H*bt, T, hs).
    # Head h of Q/K/V lives in lane slice [off + h*hs, off + (h+1)*hs).
    def split_heads(off):
        parts = [qkv[:, off + h * hs: off + (h + 1) * hs].reshape(bt, T, hs)
                 for h in range(H)]
        return jnp.concatenate(parts, axis=0)                 # (H*bt, T, hs)

    qh = split_heads(0 * C)
    kh = split_heads(1 * C)
    vh = split_heads(2 * C)

    # Additive causal bias (0 / -1e30), built once per grid step.
    row = lax.broadcasted_iota(jnp.int32, (T, T), 0)
    col = lax.broadcasted_iota(jnp.int32, (T, T), 1)
    bias = jnp.where(row >= col, 0.0, NEG_INF).astype(jnp.float32)   # (T, T)

    # One head-batched score matmul (scale already folded into wq columns).
    s = jnp.einsum('bqd,bkd->bqk', qh, kh,
                   preferred_element_type=jnp.float32) + bias        # (H*bt, T, T)

    # Numerically-stable softmax in f32, normalization deferred to after P@V.
    m = jnp.max(s, axis=-1, keepdims=True)
    p = jnp.exp(s - m)
    l = jnp.sum(p, axis=-1, keepdims=True)                           # (H*bt, T, 1)

    # One head-batched P@V matmul on unnormalized probabilities.
    ah = jnp.einsum('bqk,bkd->bqd', p.astype(jnp.bfloat16), vh,
                    preferred_element_type=jnp.float32)              # (H*bt, T, hs)
    ah = ah * pl.reciprocal(l, approx=True)                          # EUP slot

    # Re-assemble the head concat along lanes and do ONE K=64 output projection.
    parts = [ah[h * bt:(h + 1) * bt].reshape(bt * T, hs) for h in range(H)]
    cat = jnp.concatenate(parts, axis=-1).astype(jnp.bfloat16)       # (bt*T, C)
    out = jnp.dot(cat, wo_ref[...], preferred_element_type=jnp.float32)
    out = out + bo_ref[...]                                          # (1, C) broadcast

    # attn-dropout / proj-dropout = identity (eval mode)
    o_ref[...] = out.astype(o_ref.dtype)


def _num_tensorcores():
    """2 on dual-TensorCore (v7x-class) chips, else 1.  Safe fallback = 1."""
    try:
        kind = jax.devices()[0].device_kind.lower()
    except Exception:
        return 1
    return 2 if "v7" in kind else 1


def _choose_bt(B, T):
    """Largest per-step batch tile under an explicit VMEM budget, with the
    fewest grid steps (one per TensorCore)."""
    C, H, hs = N_EMBD, NUM_HEADS, HEAD_SIZE
    per_elem = (
        T * C * 4 * 2 * 2          # f32 x + out slabs, double-buffered
        + T * 3 * C * (4 + 2)      # qkv: f32 accumulation + bf16 copy
        + H * T * T * 4 * 2        # scores + exp(probabilities), f32
        + H * T * hs * 4           # per-head attention outputs, f32
    )
    budget = 12 * 1024 * 1024      # conservative: under default scoped VMEM on v5e..v7x
    cap = max(1, min(B, budget // per_elem))
    n_tc = _num_tensorcores()
    target_steps = n_tc if (B >= n_tc and B % n_tc == 0) else 1
    bt = min(max(1, B // target_steps), cap)
    while B % bt:                  # round down to a divisor of B
        bt -= 1
    return bt


def multi_head_attention(x, wq, wk, wv, wo, bo, *, bt=None):
    """x: (B, T, C); weights pre-transposed to (in, out); bo: (1, C)."""
    B, T, C = x.shape
    assert C == N_EMBD and T <= BLOCK_SIZE

    if bt is None:
        bt = _choose_bt(B, T)
    assert B % bt == 0, "batch must be divisible by the per-step batch tile"
    grid = (B // bt,)

    # Fused QKV weight with the attention scale folded into the Q columns
    # (one-time 64x64 weight op, not an activation-sized wrapper pass).
    scale = 1.0 / (C ** 0.5)       # PyTorch module divides by C**0.5 (C = n_embd)
    wqkv = jnp.concatenate([wq * scale, wk, wv], axis=1).astype(jnp.bfloat16)  # (C, 3C)
    wo_bf = wo.astype(jnp.bfloat16)
    bo_f = bo.astype(jnp.float32).reshape(1, C)
    x2 = x.reshape(B * T, C)       # f32: the bf16 cast happens inside the kernel

    kernel = functools.partial(mha_kernel, bt=bt, seq_len=T)

    out2 = pl.pallas_call(
        kernel,
        out_shape=jax.ShapeDtypeStruct((B * T, C), x.dtype),
        grid_spec=pltpu.PrefetchScalarGridSpec(
            num_scalar_prefetch=0,
            grid=grid,
            in_specs=[
                pl.BlockSpec((bt * T, C), lambda i: (i, 0)),     # x slab
                pl.BlockSpec((C, 3 * C), lambda i: (0, 0)),      # fused wqkv
                pl.BlockSpec((C, C), lambda i: (0, 0)),          # wo
                pl.BlockSpec((1, C), lambda i: (0, 0)),          # bo
            ],
            out_specs=pl.BlockSpec((bt * T, C), lambda i: (i, 0)),
        ),
        compiler_params=pltpu.CompilerParams(
            dimension_semantics=("parallel",)),
    )(x2, wqkv, wo_bf, bo_f)

    return out2.reshape(B, T, C)


def reference_mha(x, wq, wk, wv, wo, bo):
    """Pure-JAX f32 reference (eval mode, dropout = identity)."""
    B, T, C = x.shape
    scale = 1.0 / (C ** 0.5)
    q = x @ wq
    k = x @ wk
    v = x @ wv
    causal = jnp.tril(jnp.ones((T, T), dtype=bool))
    outs = []
    for h in range(NUM_HEADS):
        sl = slice(h * HEAD_SIZE, (h + 1) * HEAD_SIZE)
        s = (q[..., sl] @ jnp.swapaxes(k[..., sl], -2, -1)) * scale
        s = jnp.where(causal, s, -jnp.inf)
        p = jax.nn.softmax(s, axis=-1)
        outs.append(p @ v[..., sl])
    cat = jnp.concatenate(outs, axis=-1)
    return cat @ wo + bo


if __name__ == "__main__":
    B, T, C = 8, BLOCK_SIZE, N_EMBD   # 8 batch elements, full 32-token context

    key = jax.random.PRNGKey(0)
    kx, kq, kk, kv, kw, kb = jax.random.split(key, 6)

    x = jax.random.normal(kx, (B, T, C), dtype=jnp.float32)

    # Deterministic parameter init (PyTorch Linear-like uniform scale).
    bound = 1.0 / (C ** 0.5)
    wq = jax.random.uniform(kq, (C, NUM_HEADS * HEAD_SIZE), jnp.float32, -bound, bound)
    wk = jax.random.uniform(kk, (C, NUM_HEADS * HEAD_SIZE), jnp.float32, -bound, bound)
    wv = jax.random.uniform(kv, (C, NUM_HEADS * HEAD_SIZE), jnp.float32, -bound, bound)
    wo = jax.random.uniform(kw, (C, C), jnp.float32, -bound, bound)
    bo = jax.random.uniform(kb, (1, C), jnp.float32, -bound, bound)

    out = multi_head_attention(x, wq, wk, wv, wo, bo)
    out = jax.block_until_ready(out)

    ref = reference_mha(x, wq, wk, wv, wo, bo)
    assert out.shape == (B, T, C)
    # bf16 MXU operands + approx reciprocal -> bf16-level tolerance.
    err = float(jnp.max(jnp.abs(out - ref)))
    assert jnp.allclose(out, ref, atol=2e-2, rtol=2e-2), \
        f"mismatch vs reference (max abs err={err:.3e})"

    print("KERNEL_OK")
</pallas_src>

<mosaic_0001>
module attributes {stable_mosaic.version = 11 : i64} {
  func.func @mha_kernel(%arg0: i32, %arg1: memref<256x64xf32, #tpu.memory_space<vmem>>, %arg2: memref<64x192xbf16, #tpu.memory_space<vmem>>, %arg3: memref<64x64xbf16, #tpu.memory_space<vmem>>, %arg4: memref<1x64xf32, #tpu.memory_space<vmem>>, %arg5: memref<256x64xf32, #tpu.memory_space<vmem>>) attributes {dimension_semantics = [#tpu.dimension_semantics<parallel>], iteration_bounds = array<i64: 1>, scalar_prefetch = 0 : i64, scratch_operands = 0 : i64, tpu.core_type = #tpu.core_type<tc>, window_params = [{transform_indices = @transform_0, window_bounds = array<i64: 256, 64>}, {pipeline_mode = #tpu.pipeline_mode<synchronous>, transform_indices = @transform_1, window_bounds = array<i64: 64, 192>}, {pipeline_mode = #tpu.pipeline_mode<synchronous>, transform_indices = @transform_2, window_bounds = array<i64: 64, 64>}, {pipeline_mode = #tpu.pipeline_mode<synchronous>, transform_indices = @transform_3, window_bounds = array<i64: 1, 64>}, {transform_indices = @transform_4, window_bounds = array<i64: 256, 64>}]} {
    %c0 = arith.constant 0 : index
    %c0_0 = arith.constant 0 : index
    %0 = vector.load %arg1[%c0, %c0_0] : memref<256x64xf32, #tpu.memory_space<vmem>>, vector<256x64xf32>
    %1 = arith.truncf %0 : vector<256x64xf32> to vector<256x64xbf16>
    %c0_1 = arith.constant 0 : index
    %c0_2 = arith.constant 0 : index
    %2 = vector.load %arg2[%c0_1, %c0_2] : memref<64x192xbf16, #tpu.memory_space<vmem>>, vector<64x192xbf16>
    %cst = arith.constant dense<0.000000e+00> : vector<256x192xf32>
    %3 = tpu.matmul %1, %2, %cst {dimension_numbers = #tpu.dot_dimension_numbers<[1], [0], [0], [1], [0, 0, 1, 1], [], []>} : vector<256x64xbf16>, vector<64x192xbf16>, vector<256x192xf32> -> vector<256x192xf32>
    %4 = arith.truncf %3 : vector<256x192xf32> to vector<256x192xbf16>
    %5 = vector.extract_strided_slice %4 {offsets = [0, 0], sizes = [256, 16], strides = [1, 1]} : vector<256x192xbf16> to vector<256x16xbf16>
    %6 = vector.shape_cast %5 : vector<256x16xbf16> to vector<8x32x16xbf16>
    %7 = vector.extract_strided_slice %4 {offsets = [0, 16], sizes = [256, 16], strides = [1, 1]} : vector<256x192xbf16> to vector<256x16xbf16>
    %8 = vector.shape_cast %7 : vector<256x16xbf16> to vector<8x32x16xbf16>
    %9 = vector.extract_strided_slice %4 {offsets = [0, 32], sizes = [256, 16], strides = [1, 1]} : vector<256x192xbf16> to vector<256x16xbf16>
    %10 = vector.shape_cast %9 : vector<256x16xbf16> to vector<8x32x16xbf16>
    %11 = vector.extract_strided_slice %4 {offsets = [0, 48], sizes = [256, 16], strides = [1, 1]} : vector<256x192xbf16> to vector<256x16xbf16>
    %12 = vector.shape_cast %11 : vector<256x16xbf16> to vector<8x32x16xbf16>
    %13 = tpu.concatenate %6, %8, %10, %12 in 0 : vector<8x32x16xbf16>, vector<8x32x16xbf16>, vector<8x32x16xbf16>, vector<8x32x16xbf16> -> vector<32x32x16xbf16>
    %14 = vector.extract_strided_slice %4 {offsets = [0, 64], sizes = [256, 16], strides = [1, 1]} : vector<256x192xbf16> to vector<256x16xbf16>
    %15 = vector.shape_cast %14 : vector<256x16xbf16> to vector<8x32x16xbf16>
    %16 = vector.extract_strided_slice %4 {offsets = [0, 80], sizes = [256, 16], strides = [1, 1]} : vector<256x192xbf16> to vector<256x16xbf16>
    %17 = vector.shape_cast %16 : vector<256x16xbf16> to vector<8x32x16xbf16>
    %18 = vector.extract_strided_slice %4 {offsets = [0, 96], sizes = [256, 16], strides = [1, 1]} : vector<256x192xbf16> to vector<256x16xbf16>
    %19 = vector.shape_cast %18 : vector<256x16xbf16> to vector<8x32x16xbf16>
    %20 = vector.extract_strided_slice %4 {offsets = [0, 112], sizes = [256, 16], strides = [1, 1]} : vector<256x192xbf16> to vector<256x16xbf16>
    %21 = vector.shape_cast %20 : vector<256x16xbf16> to vector<8x32x16xbf16>
    %22 = tpu.concatenate %15, %17, %19, %21 in 0 : vector<8x32x16xbf16>, vector<8x32x16xbf16>, vector<8x32x16xbf16>, vector<8x32x16xbf16> -> vector<32x32x16xbf16>
    %23 = vector.extract_strided_slice %4 {offsets = [0, 128], sizes = [256, 16], strides = [1, 1]} : vector<256x192xbf16> to vector<256x16xbf16>
    %24 = vector.shape_cast %23 : vector<256x16xbf16> to vector<8x32x16xbf16>
    %25 = vector.extract_strided_slice %4 {offsets = [0, 144], sizes = [256, 16], strides = [1, 1]} : vector<256x192xbf16> to vector<256x16xbf16>
    %26 = vector.shape_cast %25 : vector<256x16xbf16> to vector<8x32x16xbf16>
    %27 = vector.extract_strided_slice %4 {offsets = [0, 160], sizes = [256, 16], strides = [1, 1]} : vector<256x192xbf16> to vector<256x16xbf16>
    %28 = vector.shape_cast %27 : vector<256x16xbf16> to vector<8x32x16xbf16>
    %29 = vector.extract_strided_slice %4 {offsets = [0, 176], sizes = [256, 16], strides = [1, 1]} : vector<256x192xbf16> to vector<256x16xbf16>
    %30 = vector.shape_cast %29 : vector<256x16xbf16> to vector<8x32x16xbf16>
    %31 = tpu.concatenate %24, %26, %28, %30 in 0 : vector<8x32x16xbf16>, vector<8x32x16xbf16>, vector<8x32x16xbf16>, vector<8x32x16xbf16> -> vector<32x32x16xbf16>
    %32 = tpu.iota {dimensions = array<i32: 0>} : vector<32x32xi32>
    %33 = tpu.iota {dimensions = array<i32: 1>} : vector<32x32xi32>
    %34 = arith.cmpi sge, %32, %33 : vector<32x32xi32>
    %cst_3 = arith.constant 0.000000e+00 : f32
    %cst_4 = arith.constant -1.000000e+30 : f32
    %35 = vector.broadcast %cst_3 : f32 to vector<32x32xf32>
    %36 = vector.broadcast %cst_4 : f32 to vector<32x32xf32>
    %37 = arith.select %34, %35, %36 : vector<32x32xi1>, vector<32x32xf32>
    "tpu.trace_start"() <{level = 10 : i32, message = "bqd,bkd->bqk"}> : () -> ()
    %cst_5 = arith.constant dense<0.000000e+00> : vector<32x32x32xf32>
    %38 = tpu.matmul %13, %22, %cst_5 {dimension_numbers = #tpu.dot_dimension_numbers<[2], [2], [1], [1], [0, 0, 0, 1, 1, 1], [0], [0]>} : vector<32x32x16xbf16>, vector<32x32x16xbf16>, vector<32x32x32xf32> -> vector<32x32x32xf32>
    "tpu.trace_stop"() : () -> ()
    %39 = vector.shape_cast %37 : vector<32x32xf32> to vector<1x32x32xf32>
    %40 = vector.broadcast %39 : vector<1x32x32xf32> to vector<32x32x32xf32>
    %41 = arith.addf %38, %40 : vector<32x32x32xf32>
    %cst_6 = arith.constant dense<0xFF800000> : vector<32x32xf32>
    %42 = vector.multi_reduction <maximumf>, %41, %cst_6 [2] : vector<32x32x32xf32> to vector<32x32xf32>
    %43 = vector.shape_cast %42 : vector<32x32xf32> to vector<32x32x1xf32>
    %44 = vector.broadcast %43 : vector<32x32x1xf32> to vector<32x32x32xf32>
    %45 = arith.subf %41, %44 : vector<32x32x32xf32>
    %46 = math.exp %45 : vector<32x32x32xf32>
    %cst_7 = arith.constant dense<0.000000e+00> : vector<32x32xf32>
    %47 = vector.multi_reduction <add>, %46, %cst_7 [2] : vector<32x32x32xf32> to vector<32x32xf32>
    %48 = vector.shape_cast %47 : vector<32x32xf32> to vector<32x32x1xf32>
    %49 = arith.truncf %46 : vector<32x32x32xf32> to vector<32x32x32xbf16>
    "tpu.trace_start"() <{level = 10 : i32, message = "bqk,bkd->bqd"}> : () -> ()
    %cst_8 = arith.constant dense<0.000000e+00> : vector<32x32x16xf32>
    %50 = tpu.matmul %49, %31, %cst_8 {dimension_numbers = #tpu.dot_dimension_numbers<[2], [1], [1], [2], [0, 0, 0, 1, 1, 2], [0], [0]>} : vector<32x32x32xbf16>, vector<32x32x16xbf16>, vector<32x32x16xf32> -> vector<32x32x16xf32>
    "tpu.trace_stop"() : () -> ()
    %51 = tpu.reciprocal %48 {approx = true} : vector<32x32x1xf32> -> vector<32x32x1xf32>
    %52 = vector.broadcast %51 : vector<32x32x1xf32> to vector<32x32x16xf32>
    %53 = arith.mulf %50, %52 : vector<32x32x16xf32>
    %54 = vector.extract_strided_slice %53 {offsets = [0, 0, 0], sizes = [8, 32, 16], strides = [1, 1, 1]} : vector<32x32x16xf32> to vector<8x32x16xf32>
    %55 = vector.shape_cast %54 : vector<8x32x16xf32> to vector<256x16xf32>
    %56 = vector.extract_strided_slice %53 {offsets = [8, 0, 0], sizes = [8, 32, 16], strides = [1, 1, 1]} : vector<32x32x16xf32> to vector<8x32x16xf32>
    %57 = vector.shape_cast %56 : vector<8x32x16xf32> to vector<256x16xf32>
    %58 = vector.extract_strided_slice %53 {offsets = [16, 0, 0], sizes = [8, 32, 16], strides = [1, 1, 1]} : vector<32x32x16xf32> to vector<8x32x16xf32>
    %59 = vector.shape_cast %58 : vector<8x32x16xf32> to vector<256x16xf32>
    %60 = vector.extract_strided_slice %53 {offsets = [24, 0, 0], sizes = [8, 32, 16], strides = [1, 1, 1]} : vector<32x32x16xf32> to vector<8x32x16xf32>
    %61 = vector.shape_cast %60 : vector<8x32x16xf32> to vector<256x16xf32>
    %62 = tpu.concatenate %55, %57, %59, %61 in 1 : vector<256x16xf32>, vector<256x16xf32>, vector<256x16xf32>, vector<256x16xf32> -> vector<256x64xf32>
    %63 = arith.truncf %62 : vector<256x64xf32> to vector<256x64xbf16>
    %c0_9 = arith.constant 0 : index
    %c0_10 = arith.constant 0 : index
    %64 = vector.load %arg3[%c0_9, %c0_10] : memref<64x64xbf16, #tpu.memory_space<vmem>>, vector<64x64xbf16>
    %cst_11 = arith.constant dense<0.000000e+00> : vector<256x64xf32>
    %65 = tpu.matmul %63, %64, %cst_11 {dimension_numbers = #tpu.dot_dimension_numbers<[1], [0], [0], [1], [0, 0, 1, 1], [], []>} : vector<256x64xbf16>, vector<64x64xbf16>, vector<256x64xf32> -> vector<256x64xf32>
    %c0_12 = arith.constant 0 : index
    %c0_13 = arith.constant 0 : index
    %66 = vector.load %arg4[%c0_12, %c0_13] : memref<1x64xf32, #tpu.memory_space<vmem>>, vector<1x64xf32>
    %67 = vector.broadcast %66 : vector<1x64xf32> to vector<256x64xf32>
    %68 = arith.addf %65, %67 : vector<256x64xf32>
    %c0_14 = arith.constant 0 : index
    %c0_15 = arith.constant 0 : index
    %69 = vector.load %arg5[%c0_14, %c0_15] : memref<256x64xf32, #tpu.memory_space<vmem>>, vector<256x64xf32>
    tpu.vector_store %arg5[%c0_14, %c0_15], %68 {strides = array<i32>} : memref<256x64xf32, #tpu.memory_space<vmem>>, vector<256x64xf32>,
    return
  }
  func.func @transform_0(%arg0: i32) -> (i32, i32) {
    %c0_i32 = arith.constant 0 : i32
    %c0_i32_0 = arith.constant 0 : i32
    return %arg0, %c0_i32 : i32, i32
  }
  func.func @transform_1(%arg0: i32) -> (i32, i32) {
    %c0_i32 = arith.constant 0 : i32
    %c0_i32_0 = arith.constant 0 : i32
    %c0_i32_1 = arith.constant 0 : i32
    return %c0_i32, %c0_i32_0 : i32, i32
  }
  func.func @transform_2(%arg0: i32) -> (i32, i32) {
    %c0_i32 = arith.constant 0 : i32
    %c0_i32_0 = arith.constant 0 : i32
    %c0_i32_1 = arith.constant 0 : i32
    return %c0_i32, %c0_i32_0 : i32, i32
  }
  func.func @transform_3(%arg0: i32) -> (i32, i32) {
    %c0_i32 = arith.constant 0 : i32
    %c0_i32_0 = arith.constant 0 : i32
    %c0_i32_1 = arith.constant 0 : i32
    return %c0_i32, %c0_i32_0 : i32, i32
  }
  func.func @transform_4(%arg0: i32) -> (i32, i32) {
    %c0_i32 = arith.constant 0 : i32
    %c0_i32_0 = arith.constant 0 : i32
    return %arg0, %c0_i32 : i32, i32
  }
}

</mosaic_0001>

<llo_original>
// kernel: tpu_custom_call.1
$region0: #{tpu_custom_call.1}
  #allocation0 [shape = 'u32[]', space=smem, size = 0x4, offset = 0x4, fixed_abs, tag = 'smem constant byte address 0x4 - core index']
  #allocation1 [shape = 'u32[144,128]{1,0:T(1,128)}', space=vmem, size = 0x12000, scoped, tag = 'internal scratch']
  %s0 = inlined_call_operand.vmem [shape: f32[256,64], index: 0, kind: input, shape index: {}]
  %s1 = inlined_call_operand.vmem [shape: bf16[64,192], index: 1, kind: input, shape index: {}]
  %s2 = inlined_call_operand.vmem [shape: bf16[64,64], index: 2, kind: input, shape index: {}]
  %s3 = inlined_call_operand.vmem [shape: f32[1,64], index: 3, kind: input, shape index: {}]
  %s4 = inlined_call_operand.vmem [shape: f32[256,64], index: 4, kind: output, shape index: {}]
  %s5 = sld [smem:[#allocation0]]
  $region26: #{tpu_custom_call.1} parent=0
    _
  %s7 = ssub.s32 1, %s5
  %s8 = scalar_select 0, %s7, %s5
  // Predicated region
  $region2: #{tpu_custom_call.1} parent=0 // pred_check
    _
  $region3: #{tpu_custom_call.1} parent=0 // pred_check_branch
    %10 = sbr.rel (0) target = $region5
  $region4: #{tpu_custom_call.1} parent=0 // pred_region
    _
  $region5: #{tpu_custom_call.1} parent=0 // pred_fallthru
    _
  // Predicated region
  $region6: #{tpu_custom_call.1} parent=0 // pred_check
    _
  $region7: #{tpu_custom_call.1} parent=0 // pred_check_branch
    %12 = sbr.rel (0) target = $region9
  $region8: #{tpu_custom_call.1} parent=0 // pred_region
    _
  $region9: #{tpu_custom_call.1} parent=0 // pred_fallthru
    _
  // Predicated region
  $region10: #{tpu_custom_call.1} parent=0 // pred_check
    _
  $region11: #{tpu_custom_call.1} parent=0 // pred_check_branch
    %14 = sbr.rel (0) target = $region13
  $region12: #{tpu_custom_call.1} parent=0 // pred_region
    _
  $region13: #{tpu_custom_call.1} parent=0 // pred_fallthru
    _
  // Predicated region
  $region14: #{tpu_custom_call.1} parent=0 // pred_check
    _
  $region15: #{tpu_custom_call.1} parent=0 // pred_check_branch
    %16 = sbr.rel (0) target = $region17
  $region16: #{tpu_custom_call.1} parent=0 // pred_region
    _
  $region17: #{tpu_custom_call.1} parent=0 // pred_fallthru
    _
  %v18 = vld [vmem:[%s0] sm:$0xff]
  %v19 = vld [vmem:[%s0 + $0x8] sm:$0xff]
  %v20 = vld [vmem:[%s0 + $0x10] sm:$0xff]
  %v21 = vld [vmem:[%s0 + $0x18] sm:$0xff]
  %v22 = vld [vmem:[%s0 + $0x20] sm:$0xff]
  %v23 = vld [vmem:[%s0 + $0x28] sm:$0xff]
  %v24 = vld [vmem:[%s0 + $0x30] sm:$0xff]
  %v25 = vld [vmem:[%s0 + $0x38] sm:$0xff]
  %v26 = vld [vmem:[%s0 + $0x40] sm:$0xff]
  %v27 = vld [vmem:[%s0 + $0x48] sm:$0xff]
  %v28 = vld [vmem:[%s0 + $0x50] sm:$0xff]
  %v29 = vld [vmem:[%s0 + $0x58] sm:$0xff]
  %v30 = vld [vmem:[%s0 + $0x60] sm:$0xff]
  %v31 = vld [vmem:[%s0 + $0x68] sm:$0xff]
  %v32 = vld [vmem:[%s0 + $0x70] sm:$0xff]
  %v33 = vld [vmem:[%s0 + $0x78] sm:$0xff]
  %v34 = vld [vmem:[%s0 + $0x80] sm:$0xff]
  %v35 = vld [vmem:[%s0 + $0x88] sm:$0xff]
  %v36 = vld [vmem:[%s0 + $0x90] sm:$0xff]
  %v37 = vld [vmem:[%s0 + $0x98] sm:$0xff]
  %v38 = vld [vmem:[%s0 + $0xa0] sm:$0xff]
  %v39 = vld [vmem:[%s0 + $0xa8] sm:$0xff]
  %v40 = vld [vmem:[%s0 + $0xb0] sm:$0xff]
  %v41 = vld [vmem:[%s0 + $0xb8] sm:$0xff]
  %v42 = vld [vmem:[%s0 + $0xc0] sm:$0xff]
  %v43 = vld [vmem:[%s0 + $0xc8] sm:$0xff]
  %v44 = vld [vmem:[%s0 + $0xd0] sm:$0xff]
  %v45 = vld [vmem:[%s0 + $0xd8] sm:$0xff]
  %v46 = vld [vmem:[%s0 + $0xe0] sm:$0xff]
  %v47 = vld [vmem:[%s0 + $0xe8] sm:$0xff]
  %v48 = vld [vmem:[%s0 + $0xf0] sm:$0xff]
  %v49 = vld [vmem:[%s0 + $0xf8] sm:$0xff]
  %v50 = vpack.c.bf16 %v19, %v18
  %v51 = vpack.c.bf16 %v21, %v20
  %v52 = vpack.c.bf16 %v23, %v22
  %v53 = vpack.c.bf16 %v25, %v24
  %v54 = vpack.c.bf16 %v27, %v26
  %v55 = vpack.c.bf16 %v29, %v28
  %v56 = vpack.c.bf16 %v31, %v30
  %v57 = vpack.c.bf16 %v33, %v32
  %v58 = vpack.c.bf16 %v35, %v34
  %v59 = vpack.c.bf16 %v37, %v36
  %v60 = vpack.c.bf16 %v39, %v38
  %v61 = vpack.c.bf16 %v41, %v40
  %v62 = vpack.c.bf16 %v43, %v42
  %v63 = vpack.c.bf16 %v45, %v44
  %v64 = vpack.c.bf16 %v47, %v46
  %v65 = vpack.c.bf16 %v49, %v48
  %v66 = vld [vmem:[%s1] sm:$0xff]
  %v67 = vld [vmem:[%s1 + $0x8] sm:$0xff]
  %v68 = vld [vmem:[%s1 + $0x10] sm:$0xff]
  %v69 = vld [vmem:[%s1 + $0x18] sm:$0xff]
  %v70 = vld [vmem:[%s1 + $0x20] sm:$0xff]
  %v71 = vld [vmem:[%s1 + $0x28] sm:$0xff]
  %v72 = vld [vmem:[%s1 + $0x30] sm:$0xff]
  %v73 = vld [vmem:[%s1 + $0x38] sm:$0xff]
  %v82 = vunpack.c.l.b16 %v66
  %v83 = vunpack.c.h.b16 %v66
  %v84 = vunpack.c.l.b16 %v67
  %v85 = vunpack.c.h.b16 %v67
  %v86 = vunpack.c.l.b16 %v68
  %v87 = vunpack.c.h.b16 %v68
  %v88 = vunpack.c.l.b16 %v69
  %v89 = vunpack.c.h.b16 %v69
  %v90 = vunpack.c.l.b16 %v70
  %v91 = vunpack.c.h.b16 %v70
  %v92 = vunpack.c.l.b16 %v71
  %v93 = vunpack.c.h.b16 %v71
  %v94 = vunpack.c.l.b16 %v72
  %v95 = vunpack.c.h.b16 %v72
  %v96 = vunpack.c.l.b16 %v73
  %v97 = vunpack.c.h.b16 %v73
  %v98 = vpack.c.b16 %v84, %v82
  %v99 = vpack.c.b16 %v85, %v83
  %v100 = vpack.c.b16 %v88, %v86
  %v101 = vpack.c.b16 %v89, %v87
  %v102 = vpack.c.b16 %v92, %v90
  %v103 = vpack.c.b16 %v93, %v91
  %v104 = vpack.c.b16 %v96, %v94
  %v105 = vpack.c.b16 %v97, %v95
  %vm114 = vcmask 523264
  %v116 = vsel %vm114, %v50, 0
  %v119 = vsel %vm114, %v51, 0
  %v122 = vsel %vm114, %v52, 0
  %v125 = vsel %vm114, %v53, 0
  %v128 = vsel %vm114, %v54, 0
  %v131 = vsel %vm114, %v55, 0
  %v134 = vsel %vm114, %v56, 0
  %v137 = vsel %vm114, %v57, 0
  %v140 = vsel %vm114, %v58, 0
  %v143 = vsel %vm114, %v59, 0
  %v146 = vsel %vm114, %v60, 0
  %v149 = vsel %vm114, %v61, 0
  %v152 = vsel %vm114, %v62, 0
  %v155 = vsel %vm114, %v63, 0
  %v158 = vsel %vm114, %v64, 0
  %v161 = vsel %vm114, %v65, 0
  %163 = vmatprep.subr.bf16.mxu0 0
  %164 = vmatpush1.bf16.msra.mxu0 0
  %165 = vmatprep.subr.bf16.mxu0 0
  %166 = vmatpush1.bf16.msra.mxu0 0
  %167 = vmatprep.subr.bf16.mxu0 0
  %168 = vmatpush1.bf16.msra.mxu0 0
  %169 = vmatprep.subr.bf16.mxu0 0
  %170 = vmatpush1.bf16.msra.mxu0 0
  %171 = vmatprep.subr.bf16.mxu0 %v105
  %172 = vmatpush1.bf16.msra.mxu0 %v104
  %173 = vmatprep.subr.bf16.mxu0 %v103
  %174 = vmatpush1.bf16.msra.mxu0 %v102
  %175 = vmatprep.subr.bf16.mxu0 %v101
  %176 = vmatpush1.bf16.msra.mxu0 %v100
  %177 = vmatprep.subr.bf16.mxu0 %v99
  %178 = vmatpush1.bf16.msra.mxu0 %v98
  %179 = vmatprep.subr.bf16.mxu0 0
  %180 = vmatpush2.bf16.msra.mxu0 0
  %181 = vmatprep.subr.bf16.mxu0 0
  %182 = vmatpush2.bf16.msra.mxu0 0
  %183 = vmatprep.subr.bf16.mxu0 0
  %184 = vmatpush2.bf16.msra.mxu0 0
  %185 = vmatprep.subr.bf16.mxu0 0
  %186 = vmatpush2.bf16.msra.mxu0 0
  %187 = vmatprep.subr.bf16.mxu0 0
  %188 = vmatpush2.bf16.msra.mxu0 0
  %189 = vmatprep.subr.bf16.mxu0 0
  %190 = vmatpush2.bf16.msra.mxu0 0
  %191 = vmatprep.subr.bf16.mxu0 0
  %192 = vmatpush2.bf16.msra.mxu0 0
  %193 = vmatprep.subr.bf16.mxu0 0
  %194 = vmatpush2.bf16.msra.mxu0 0
  %195 = vmatprep.mubr.bf16.mxu0 0
  %196 = vmatmul.mubr.bf16.gmra.mxu0 %v116
  %v197 = vpop.f32.mrf.mxu0
  %v198 = vadd.f32 0.0, %v197
  %v199 = vpop.f32.mrf.mxu0
  %v200 = vadd.f32 0.0, %v199
  %v201 = vpop.f32.mrf.mxu0
  %v202 = vadd.f32 0.0, %v201
  %v203 = vpop.f32.mrf.mxu0
  %v204 = vadd.f32 0.0, %v203
  %205 = vmatprep.mubr.bf16.mxu0 0
  %206 = vmatmul.mubr.bf16.gmra.mxu0 %v119
  %v207 = vpop.f32.mrf.mxu0
  %v208 = vadd.f32 0.0, %v207
  %v209 = vpop.f32.mrf.mxu0
  %v210 = vadd.f32 0.0, %v209
  %v211 = vpop.f32.mrf.mxu0
  %v212 = vadd.f32 0.0, %v211
  %v213 = vpop.f32.mrf.mxu0
  %v214 = vadd.f32 0.0, %v213
  %215 = vmatprep.mubr.bf16.mxu0 0
  %216 = vmatmul.mubr.bf16.gmra.mxu0 %v122
  %v217 = vpop.f32.mrf.mxu0
  %v218 = vadd.f32 0.0, %v217
  %v219 = vpop.f32.mrf.mxu0
  %v220 = vadd.f32 0.0, %v219
  %v221 = vpop.f32.mrf.mxu0
  %v222 = vadd.f32 0.0, %v221
  %v223 = vpop.f32.mrf.mxu0
  %v224 = vadd.f32 0.0, %v223
  %225 = vmatprep.mubr.bf16.mxu0 0
  %226 = vmatmul.mubr.bf16.gmra.mxu0 %v125
  %v227 = vpop.f32.mrf.mxu0
  %v228 = vadd.f32 0.0, %v227
  %v229 = vpop.f32.mrf.mxu0
  %v230 = vadd.f32 0.0, %v229
  %v231 = vpop.f32.mrf.mxu0
  %v232 = vadd.f32 0.0, %v231
  %v233 = vpop.f32.mrf.mxu0
  %v234 = vadd.f32 0.0, %v233
  %235 = vmatprep.mubr.bf16.mxu0 0
  %236 = vmatmul.mubr.bf16.gmra.mxu0 %v128
  %v237 = vpop.f32.mrf.mxu0
  %v238 = vadd.f32 0.0, %v237
  %v239 = vpop.f32.mrf.mxu0
  %v240 = vadd.f32 0.0, %v239
  %v241 = vpop.f32.mrf.mxu0
  %v242 = vadd.f32 0.0, %v241
  %v243 = vpop.f32.mrf.mxu0
  %v244 = vadd.f32 0.0, %v243
  %245 = vmatprep.mubr.bf16.mxu0 0
  %246 = vmatmul.mubr.bf16.gmra.mxu0 %v131
  %v247 = vpop.f32.mrf.mxu0
  %v248 = vadd.f32 0.0, %v247
  %v249 = vpop.f32.mrf.mxu0
  %v250 = vadd.f32 0.0, %v249
  %v251 = vpop.f32.mrf.mxu0
  %v252 = vadd.f32 0.0, %v251
  %v253 = vpop.f32.mrf.mxu0
  %v254 = vadd.f32 0.0, %v253
  %255 = vmatprep.mubr.bf16.mxu0 0
  %256 = vmatmul.mubr.bf16.gmra.mxu0 %v134
  %v257 = vpop.f32.mrf.mxu0
  %v258 = vadd.f32 0.0, %v257
  %v259 = vpop.f32.mrf.mxu0
  %v260 = vadd.f32 0.0, %v259
  %v261 = vpop.f32.mrf.mxu0
  %v262 = vadd.f32 0.0, %v261
  %v263 = vpop.f32.mrf.mxu0
  %v264 = vadd.f32 0.0, %v263
  %265 = vmatprep.mubr.bf16.mxu0 0
  %266 = vmatmul.mubr.bf16.gmra.mxu0 %v137
  %v267 = vpop.f32.mrf.mxu0
  %v268 = vadd.f32 0.0, %v267
  %v269 = vpop.f32.mrf.mxu0
  %v270 = vadd.f32 0.0, %v269
  %v271 = vpop.f32.mrf.mxu0
  %v272 = vadd.f32 0.0, %v271
  %v273 = vpop.f32.mrf.mxu0
  %v274 = vadd.f32 0.0, %v273
  %275 = vmatprep.mubr.bf16.mxu0 0
  %276 = vmatmul.mubr.bf16.gmra.mxu0 %v140
  %v277 = vpop.f32.mrf.mxu0
  %v278 = vadd.f32 0.0, %v277
  %v279 = vpop.f32.mrf.mxu0
  %v280 = vadd.f32 0.0, %v279
  %v281 = vpop.f32.mrf.mxu0
  %v282 = vadd.f32 0.0, %v281
  %v283 = vpop.f32.mrf.mxu0
  %v284 = vadd.f32 0.0, %v283
  %285 = vmatprep.mubr.bf16.mxu0 0
  %286 = vmatmul.mubr.bf16.gmra.mxu0 %v143
  %v287 = vpop.f32.mrf.mxu0
  %v288 = vadd.f32 0.0, %v287
  %v289 = vpop.f32.mrf.mxu0
  %v290 = vadd.f32 0.0, %v289
  %v291 = vpop.f32.mrf.mxu0
  %v292 = vadd.f32 0.0, %v291
  %v293 = vpop.f32.mrf.mxu0
  %v294 = vadd.f32 0.0, %v293
  %295 = vmatprep.mubr.bf16.mxu0 0
  %296 = vmatmul.mubr.bf16.gmra.mxu0 %v146
  %v297 = vpop.f32.mrf.mxu0
  %v298 = vadd.f32 0.0, %v297
  %v299 = vpop.f32.mrf.mxu0
  %v300 = vadd.f32 0.0, %v299
  %v301 = vpop.f32.mrf.mxu0
  %v302 = vadd.f32 0.0, %v301
  %v303 = vpop.f32.mrf.mxu0
  %v304 = vadd.f32 0.0, %v303
  %305 = vmatprep.mubr.bf16.mxu0 0
  %306 = vmatmul.mubr.bf16.gmra.mxu0 %v149
  %v307 = vpop.f32.mrf.mxu0
  %v308 = vadd.f32 0.0, %v307
  %v309 = vpop.f32.mrf.mxu0
  %v310 = vadd.f32 0.0, %v309
  %v311 = vpop.f32.mrf.mxu0
  %v312 = vadd.f32 0.0, %v311
  %v313 = vpop.f32.mrf.mxu0
  %v314 = vadd.f32 0.0, %v313
  %315 = vmatprep.mubr.bf16.mxu0 0
  %316 = vmatmul.mubr.bf16.gmra.mxu0 %v152
  %v317 = vpop.f32.mrf.mxu0
  %v318 = vadd.f32 0.0, %v317
  %v319 = vpop.f32.mrf.mxu0
  %v320 = vadd.f32 0.0, %v319
  %v321 = vpop.f32.mrf.mxu0
  %v322 = vadd.f32 0.0, %v321
  %v323 = vpop.f32.mrf.mxu0
  %v324 = vadd.f32 0.0, %v323
  %325 = vmatprep.mubr.bf16.mxu0 0
  %326 = vmatmul.mubr.bf16.gmra.mxu0 %v155
  %v327 = vpop.f32.mrf.mxu0
  %v328 = vadd.f32 0.0, %v327
  %v329 = vpop.f32.mrf.mxu0
  %v330 = vadd.f32 0.0, %v329
  %v331 = vpop.f32.mrf.mxu0
  %v332 = vadd.f32 0.0, %v331
  %v333 = vpop.f32.mrf.mxu0
  %v334 = vadd.f32 0.0, %v333
  %335 = vmatprep.mubr.bf16.mxu0 0
  %336 = vmatmul.mubr.bf16.gmra.mxu0 %v158
  %v337 = vpop.f32.mrf.mxu0
  %v338 = vadd.f32 0.0, %v337
  %v339 = vpop.f32.mrf.mxu0
  %v340 = vadd.f32 0.0, %v339
  %v341 = vpop.f32.mrf.mxu0
  %v342 = vadd.f32 0.0, %v341
  %v343 = vpop.f32.mrf.mxu0
  %v344 = vadd.f32 0.0, %v343
  %345 = vmatprep.mubr.bf16.mxu0 0
  %346 = vmatmul.mubr.bf16.gmra.mxu0 %v161
  %v347 = vpop.f32.mrf.mxu0
  %v348 = vadd.f32 0.0, %v347
  %v349 = vpop.f32.mrf.mxu0
  %v350 = vadd.f32 0.0, %v349
  %v351 = vpop.f32.mrf.mxu0
  %v352 = vadd.f32 0.0, %v351
  %v353 = vpop.f32.mrf.mxu0
  %v354 = vadd.f32 0.0, %v353
  %355 = vdwg.mxu0
  %v356 = vpack.c.bf16 %v202, %v198
  %v357 = vpack.c.bf16 %v204, %v200
  %v358 = vpack.c.bf16 %v212, %v208
  %v359 = vpack.c.bf16 %v214, %v210
  %v360 = vpack.c.bf16 %v222, %v218
  %v361 = vpack.c.bf16 %v224, %v220
  %v362 = vpack.c.bf16 %v232, %v228
  %v363 = vpack.c.bf16 %v234, %v230
  %v364 = vpack.c.bf16 %v242, %v238
  %v365 = vpack.c.bf16 %v244, %v240
  %v366 = vpack.c.bf16 %v252, %v248
  %v367 = vpack.c.bf16 %v254, %v250
  %v368 = vpack.c.bf16 %v262, %v258
  %v369 = vpack.c.bf16 %v264, %v260
  %v370 = vpack.c.bf16 %v272, %v268
  %v371 = vpack.c.bf16 %v274, %v270
  %v372 = vpack.c.bf16 %v282, %v278
  %v373 = vpack.c.bf16 %v284, %v280
  %v374 = vpack.c.bf16 %v292, %v288
  %v375 = vpack.c.bf16 %v294, %v290
  %v376 = vpack.c.bf16 %v302, %v298
  %v377 = vpack.c.bf16 %v304, %v300
  %v378 = vpack.c.bf16 %v312, %v308
  %v379 = vpack.c.bf16 %v314, %v310
  %v380 = vpack.c.bf16 %v322, %v318
  %v381 = vpack.c.bf16 %v324, %v320
  %v382 = vpack.c.bf16 %v332, %v328
  %v383 = vpack.c.bf16 %v334, %v330
  %v384 = vpack.c.bf16 %v342, %v338
  %v385 = vpack.c.bf16 %v344, %v340
  %v386 = vpack.c.bf16 %v352, %v348
  %v387 = vpack.c.bf16 %v354, %v350
  %404 = vrot.lane.b32.xlu0 %v356, 112
  %v405 = vpop.permute.xlu0 %404
  %406 = vrot.lane.b32.xlu0 %v358, 112
  %v407 = vpop.permute.xlu0 %406
  %408 = vrot.lane.b32.xlu0 %v360, 112
  %v409 = vpop.permute.xlu0 %408
  %410 = vrot.lane.b32.xlu0 %v362, 112
  %v411 = vpop.permute.xlu0 %410
  %412 = vrot.lane.b32.xlu0 %v364, 112
  %v413 = vpop.permute.xlu0 %412
  %414 = vrot.lane.b32.xlu0 %v366, 112
  %v415 = vpop.permute.xlu0 %414
  %416 = vrot.lane.b32.xlu0 %v368, 112
  %v417 = vpop.permute.xlu0 %416
  %418 = vrot.lane.b32.xlu0 %v370, 112
  %v419 = vpop.permute.xlu0 %418
  %420 = vrot.lane.b32.xlu0 %v372, 112
  %v421 = vpop.permute.xlu0 %420
  %422 = vrot.lane.b32.xlu0 %v374, 112
  %v423 = vpop.permute.xlu0 %422
  %424 = vrot.lane.b32.xlu0 %v376, 112
  %v425 = vpop.permute.xlu0 %424
  %426 = vrot.lane.b32.xlu0 %v378, 112
  %v427 = vpop.permute.xlu0 %426
  %428 = vrot.lane.b32.xlu0 %v380, 112
  %v429 = vpop.permute.xlu0 %428
  %430 = vrot.lane.b32.xlu0 %v382, 112
  %v431 = vpop.permute.xlu0 %430
  %432 = vrot.lane.b32.xlu0 %v384, 112
  %v433 = vpop.permute.xlu0 %432
  %434 = vrot.lane.b32.xlu0 %v386, 112
  %v435 = vpop.permute.xlu0 %434
  %436 = vrot.lane.b32.xlu0 %v356, 96
  %v437 = vpop.permute.xlu0 %436
  %438 = vrot.lane.b32.xlu0 %v358, 96
  %v439 = vpop.permute.xlu0 %438
  %440 = vrot.lane.b32.xlu0 %v360, 96
  %v441 = vpop.permute.xlu0 %440
  %442 = vrot.lane.b32.xlu0 %v362, 96
  %v443 = vpop.permute.xlu0 %442
  %444 = vrot.lane.b32.xlu0 %v364, 96
  %v445 = vpop.permute.xlu0 %444
  %446 = vrot.lane.b32.xlu0 %v366, 96
  %v447 = vpop.permute.xlu0 %446
  %448 = vrot.lane.b32.xlu0 %v368, 96
  %v449 = vpop.permute.xlu0 %448
  %450 = vrot.lane.b32.xlu0 %v370, 96
  %v451 = vpop.permute.xlu0 %450
  %452 = vrot.lane.b32.xlu0 %v372, 96
  %v453 = vpop.permute.xlu0 %452
  %454 = vrot.lane.b32.xlu0 %v374, 96
  %v455 = vpop.permute.xlu0 %454
  %456 = vrot.lane.b32.xlu0 %v376, 96
  %v457 = vpop.permute.xlu0 %456
  %458 = vrot.lane.b32.xlu0 %v378, 96
  %v459 = vpop.permute.xlu0 %458
  %460 = vrot.lane.b32.xlu0 %v380, 96
  %v461 = vpop.permute.xlu0 %460
  %462 = vrot.lane.b32.xlu0 %v382, 96
  %v463 = vpop.permute.xlu0 %462
  %464 = vrot.lane.b32.xlu0 %v384, 96
  %v465 = vpop.permute.xlu0 %464
  %466 = vrot.lane.b32.xlu0 %v386, 96
  %v467 = vpop.permute.xlu0 %466
  %468 = vrot.lane.b32.xlu0 %v356, 80
  %v469 = vpop.permute.xlu0 %468
  %470 = vrot.lane.b32.xlu0 %v358, 80
  %v471 = vpop.permute.xlu0 %470
  %472 = vrot.lane.b32.xlu0 %v360, 80
  %v473 = vpop.permute.xlu0 %472
  %474 = vrot.lane.b32.xlu0 %v362, 80
  %v475 = vpop.permute.xlu0 %474
  %476 = vrot.lane.b32.xlu0 %v364, 80
  %v477 = vpop.permute.xlu0 %476
  %478 = vrot.lane.b32.xlu0 %v366, 80
  %v479 = vpop.permute.xlu0 %478
  %480 = vrot.lane.b32.xlu0 %v368, 80
  %v481 = vpop.permute.xlu0 %480
  %482 = vrot.lane.b32.xlu0 %v370, 80
  %v483 = vpop.permute.xlu0 %482
  %484 = vrot.lane.b32.xlu0 %v372, 80
  %v485 = vpop.permute.xlu0 %484
  %486 = vrot.lane.b32.xlu0 %v374, 80
  %v487 = vpop.permute.xlu0 %486
  %488 = vrot.lane.b32.xlu0 %v376, 80
  %v489 = vpop.permute.xlu0 %488
  %490 = vrot.lane.b32.xlu0 %v378, 80
  %v491 = vpop.permute.xlu0 %490
  %492 = vrot.lane.b32.xlu0 %v380, 80
  %v493 = vpop.permute.xlu0 %492
  %494 = vrot.lane.b32.xlu0 %v382, 80
  %v495 = vpop.permute.xlu0 %494
  %496 = vrot.lane.b32.xlu0 %v384, 80
  %v497 = vpop.permute.xlu0 %496
  %498 = vrot.lane.b32.xlu0 %v386, 80
  %v499 = vpop.permute.xlu0 %498
  %516 = vrot.lane.b32.xlu0 %v357, 112
  %v517 = vpop.permute.xlu0 %516
  %518 = vrot.lane.b32.xlu0 %v359, 112
  %v519 = vpop.permute.xlu0 %518
  %520 = vrot.lane.b32.xlu0 %v361, 112
  %v521 = vpop.permute.xlu0 %520
  %522 = vrot.lane.b32.xlu0 %v363, 112
  %v523 = vpop.permute.xlu0 %522
  %524 = vrot.lane.b32.xlu0 %v365, 112
  %v525 = vpop.permute.xlu0 %524
  %526 = vrot.lane.b32.xlu0 %v367, 112
  %v527 = vpop.permute.xlu0 %526
  %528 = vrot.lane.b32.xlu0 %v369, 112
  %v529 = vpop.permute.xlu0 %528
  %530 = vrot.lane.b32.xlu0 %v371, 112
  %v531 = vpop.permute.xlu0 %530
  %532 = vrot.lane.b32.xlu0 %v373, 112
  %v533 = vpop.permute.xlu0 %532
  %534 = vrot.lane.b32.xlu0 %v375, 112
  %v535 = vpop.permute.xlu0 %534
  %536 = vrot.lane.b32.xlu0 %v377, 112
  %v537 = vpop.permute.xlu0 %536
  %538 = vrot.lane.b32.xlu0 %v379, 112
  %v539 = vpop.permute.xlu0 %538
  %540 = vrot.lane.b32.xlu0 %v381, 112
  %v541 = vpop.permute.xlu0 %540
  %542 = vrot.lane.b32.xlu0 %v383, 112
  %v543 = vpop.permute.xlu0 %542
  %544 = vrot.lane.b32.xlu0 %v385, 112
  %v545 = vpop.permute.xlu0 %544
  %546 = vrot.lane.b32.xlu0 %v387, 112
  %v547 = vpop.permute.xlu0 %546
  %564 = vrot.lane.b32.xlu0 %v357, 96
  %v565 = vpop.permute.xlu0 %564
  %566 = vrot.lane.b32.xlu0 %v359, 96
  %v567 = vpop.permute.xlu0 %566
  %568 = vrot.lane.b32.xlu0 %v361, 96
  %v569 = vpop.permute.xlu0 %568
  %570 = vrot.lane.b32.xlu0 %v363, 96
  %v571 = vpop.permute.xlu0 %570
  %572 = vrot.lane.b32.xlu0 %v365, 96
  %v573 = vpop.permute.xlu0 %572
  %574 = vrot.lane.b32.xlu0 %v367, 96
  %v575 = vpop.permute.xlu0 %574
  %576 = vrot.lane.b32.xlu0 %v369, 96
  %v577 = vpop.permute.xlu0 %576
  %578 = vrot.lane.b32.xlu0 %v371, 96
  %v579 = vpop.permute.xlu0 %578
  %580 = vrot.lane.b32.xlu0 %v373, 96
  %v581 = vpop.permute.xlu0 %580
  %582 = vrot.lane.b32.xlu0 %v375, 96
  %v583 = vpop.permute.xlu0 %582
  %584 = vrot.lane.b32.xlu0 %v377, 96
  %v585 = vpop.permute.xlu0 %584
  %586 = vrot.lane.b32.xlu0 %v379, 96
  %v587 = vpop.permute.xlu0 %586
  %588 = vrot.lane.b32.xlu0 %v381, 96
  %v589 = vpop.permute.xlu0 %588
  %590 = vrot.lane.b32.xlu0 %v383, 96
  %v591 = vpop.permute.xlu0 %590
  %592 = vrot.lane.b32.xlu0 %v385, 96
  %v593 = vpop.permute.xlu0 %592
  %594 = vrot.lane.b32.xlu0 %v387, 96
  %v595 = vpop.permute.xlu0 %594
  %612 = vrot.lane.b32.xlu0 %v357, 80
  %v613 = vpop.permute.xlu0 %612
  %614 = vrot.lane.b32.xlu0 %v359, 80
  %v615 = vpop.permute.xlu0 %614
  %616 = vrot.lane.b32.xlu0 %v361, 80
  %v617 = vpop.permute.xlu0 %616
  %618 = vrot.lane.b32.xlu0 %v363, 80
  %v619 = vpop.permute.xlu0 %618
  %620 = vrot.lane.b32.xlu0 %v365, 80
  %v621 = vpop.permute.xlu0 %620
  %622 = vrot.lane.b32.xlu0 %v367, 80
  %v623 = vpop.permute.xlu0 %622
  %624 = vrot.lane.b32.xlu0 %v369, 80
  %v625 = vpop.permute.xlu0 %624
  %626 = vrot.lane.b32.xlu0 %v371, 80
  %v627 = vpop.permute.xlu0 %626
  %628 = vrot.lane.b32.xlu0 %v373, 80
  %v629 = vpop.permute.xlu0 %628
  %630 = vrot.lane.b32.xlu0 %v375, 80
  %v631 = vpop.permute.xlu0 %630
  %632 = vrot.lane.b32.xlu0 %v377, 80
  %v633 = vpop.permute.xlu0 %632
  %634 = vrot.lane.b32.xlu0 %v379, 80
  %v635 = vpop.permute.xlu0 %634
  %636 = vrot.lane.b32.xlu0 %v381, 80
  %v637 = vpop.permute.xlu0 %636
  %638 = vrot.lane.b32.xlu0 %v383, 80
  %v639 = vpop.permute.xlu0 %638
  %640 = vrot.lane.b32.xlu0 %v385, 80
  %v641 = vpop.permute.xlu0 %640
  %642 = vrot.lane.b32.xlu0 %v387, 80
  %v643 = vpop.permute.xlu0 %642
  %v660 = vlaneseq
  %v661 = vshrl.u32 %v660, 7
  %v662 = vadd.s32 %v661, 8
  %v663 = vadd.s32 %v661, 16
  %v664 = vadd.s32 %v661, 24
  %v665 = vlaneseq
  %v666 = vand.u32 %v665, 127
  %vm667 = vcmp.ge.s32.totalorder %v661, %v666
  %vm668 = vcmp.ge.s32.totalorder %v662, %v666
  %vm669 = vcmp.ge.s32.totalorder %v663, %v666
  %vm670 = vcmp.ge.s32.totalorder %v664, %v666
  %v671 = vsel %vm667, 0.0, -1e+30
  %v672 = vsel %vm668, 0.0, -1e+30
  %v673 = vsel %vm669, 0.0, -1e+30
  %v674 = vsel %vm670, 0.0, -1e+30
  %675 = vrot.lane.b32.xlu0 %v356, 64
  %v676 = vpop.permute.xlu0 %675
  %677 = vrot.lane.b32.xlu0 %v358, 64
  %v678 = vpop.permute.xlu0 %677
  %vm679 = vcmask 130048
  %v681 = vsel %vm679, %v356, 0
  %v684 = vsel %vm679, %v358, 0
  %v687 = vsel %vm679, %v676, 0
  %v690 = vsel %vm679, %v678, 0
  %692 = vmatprep.subr.bf16.mxu0 0
  %693 = vmatpush1.bf16.xpose.msra.mxu0 0
  %694 = vmatprep.subr.bf16.mxu0 0
  %695 = vmatpush1.bf16.xpose.msra.mxu0 0
  %696 = vmatprep.subr.bf16.mxu0 0
  %697 = vmatpush1.bf16.xpose.msra.mxu0 0
  %698 = vmatprep.subr.bf16.mxu0 0
  %699 = vmatpush1.bf16.xpose.msra.mxu0 0
  %700 = vmatprep.subr.bf16.mxu0 0
  %701 = vmatpush1.bf16.xpose.msra.mxu0 0
  %702 = vmatprep.subr.bf16.mxu0 0
  %703 = vmatpush1.bf16.xpose.msra.mxu0 0
  %704 = vmatprep.subr.bf16.mxu0 0
  %705 = vmatpush1.bf16.xpose.msra.mxu0 %v690
  %706 = vmatprep.subr.bf16.mxu0 0
  %707 = vmatpush1.bf16.xpose.msra.mxu0 %v687
  %708 = vmatprep.subr.bf16.mxu0 0
  %709 = vmatpush2.bf16.xpose.msra.mxu0 0
  %710 = vmatprep.subr.bf16.mxu0 0
  %711 = vmatpush2.bf16.xpose.msra.mxu0 0
  %712 = vmatprep.subr.bf16.mxu0 0
  %713 = vmatpush2.bf16.xpose.msra.mxu0 0
  %714 = vmatprep.subr.bf16.mxu0 0
  %715 = vmatpush2.bf16.xpose.msra.mxu0 0
  %716 = vmatprep.subr.bf16.mxu0 0
  %717 = vmatpush2.bf16.xpose.msra.mxu0 0
  %718 = vmatprep.subr.bf16.mxu0 0
  %719 = vmatpush2.bf16.xpose.msra.mxu0 0
  %720 = vmatprep.subr.bf16.mxu0 0
  %721 = vmatpush2.bf16.xpose.msra.mxu0 0
  %722 = vmatprep.subr.bf16.mxu0 0
  %723 = vmatpush2.bf16.xpose.msra.mxu0 0
  %724 = vmatprep.mubr.bf16.mxu0 0
  %725 = vmatmul.mubr.bf16.gmra.mxu0 %v681
  %v726 = vpop.f32.mrf.mxu0
  %v727 = vadd.f32 %v671, %v726
  %v728 = vpop.f32.mrf.mxu0
  %v729 = vpop.f32.mrf.mxu0
  %v730 = vadd.f32 %v672, %v729
  %v731 = vpop.f32.mrf.mxu0
  %732 = vmatprep.mubr.bf16.mxu0 0
  %733 = vmatmul.mubr.bf16.gmra.mxu0 %v684
  %v734 = vpop.f32.mrf.mxu0
  %v735 = vadd.f32 %v673, %v734
  %v736 = vpop.f32.mrf.mxu0
  %v737 = vpop.f32.mrf.mxu0
  %v738 = vadd.f32 %v674, %v737
  %v739 = vpop.f32.mrf.mxu0
  %740 = vdwg.mxu0
  %741 = vrot.lane.b32.xlu0 %v360, 64
  %v742 = vpop.permute.xlu0 %741
  %743 = vrot.lane.b32.xlu0 %v362, 64
  %v744 = vpop.permute.xlu0 %743
  %v746 = vsel %vm679, %v360, 0
  %v749 = vsel %vm679, %v362, 0
  %v752 = vsel %vm679, %v742, 0
  %v755 = vsel %vm679, %v744, 0
  %757 = vmatprep.subr.bf16.mxu0 0
  %758 = vmatpush1.bf16.xpose.msra.mxu0 0
  %759 = vmatprep.subr.bf16.mxu0 0
  %760 = vmatpush1.bf16.xpose.msra.mxu0 0
  %761 = vmatprep.subr.bf16.mxu0 0
  %762 = vmatpush1.bf16.xpose.msra.mxu0 0
  %763 = vmatprep.subr.bf16.mxu0 0
  %764 = vmatpush1.bf16.xpose.msra.mxu0 0
  %765 = vmatprep.subr.bf16.mxu0 0
  %766 = vmatpush1.bf16.xpose.msra.mxu0 0
  %767 = vmatprep.subr.bf16.mxu0 0
  %768 = vmatpush1.bf16.xpose.msra.mxu0 0
  %769 = vmatprep.subr.bf16.mxu0 0
  %770 = vmatpush1.bf16.xpose.msra.mxu0 %v755
  %771 = vmatprep.subr.bf16.mxu0 0
  %772 = vmatpush1.bf16.xpose.msra.mxu0 %v752
  %773 = vmatprep.subr.bf16.mxu0 0
  %774 = vmatpush2.bf16.xpose.msra.mxu0 0
  %775 = vmatprep.subr.bf16.mxu0 0
  %776 = vmatpush2.bf16.xpose.msra.mxu0 0
  %777 = vmatprep.subr.bf16.mxu0 0
  %778 = vmatpush2.bf16.xpose.msra.mxu0 0
  %779 = vmatprep.subr.bf16.mxu0 0
  %780 = vmatpush2.bf16.xpose.msra.mxu0 0
  %781 = vmatprep.subr.bf16.mxu0 0
  %782 = vmatpush2.bf16.xpose.msra.mxu0 0
  %783 = vmatprep.subr.bf16.mxu0 0
  %784 = vmatpush2.bf16.xpose.msra.mxu0 0
  %785 = vmatprep.subr.bf16.mxu0 0
  %786 = vmatpush2.bf16.xpose.msra.mxu0 0
  %787 = vmatprep.subr.bf16.mxu0 0
  %788 = vmatpush2.bf16.xpose.msra.mxu0 0
  %789 = vmatprep.mubr.bf16.mxu0 0
  %790 = vmatmul.mubr.bf16.gmra.mxu0 %v746
  %v791 = vpop.f32.mrf.mxu0
  %v792 = vadd.f32 %v671, %v791
  %v793 = vpop.f32.mrf.mxu0
  %v794 = vpop.f32.mrf.mxu0
  %v795 = vadd.f32 %v672, %v794
  %v796 = vpop.f32.mrf.mxu0
  %797 = vmatprep.mubr.bf16.mxu0 0
  %798 = vmatmul.mubr.bf16.gmra.mxu0 %v749
  %v799 = vpop.f32.mrf.mxu0
  %v800 = vadd.f32 %v673, %v799
  %v801 = vpop.f32.mrf.mxu0
  %v802 = vpop.f32.mrf.mxu0
  %v803 = vadd.f32 %v674, %v802
  %v804 = vpop.f32.mrf.mxu0
  %805 = vdwg.mxu0
  %806 = vrot.lane.b32.xlu0 %v364, 64
  %v807 = vpop.permute.xlu0 %806
  %808 = vrot.lane.b32.xlu0 %v366, 64
  %v809 = vpop.permute.xlu0 %808
  %v811 = vsel %vm679, %v364, 0
  %v814 = vsel %vm679, %v366, 0
  %v817 = vsel %vm679, %v807, 0
  %v820 = vsel %vm679, %v809, 0
  %822 = vmatprep.subr.bf16.mxu0 0
  %823 = vmatpush1.bf16.xpose.msra.mxu0 0
  %824 = vmatprep.subr.bf16.mxu0 0
  %825 = vmatpush1.bf16.xpose.msra.mxu0 0
  %826 = vmatprep.subr.bf16.mxu0 0
  %827 = vmatpush1.bf16.xpose.msra.mxu0 0
  %828 = vmatprep.subr.bf16.mxu0 0
  %829 = vmatpush1.bf16.xpose.msra.mxu0 0
  %830 = vmatprep.subr.bf16.mxu0 0
  %831 = vmatpush1.bf16.xpose.msra.mxu0 0
  %832 = vmatprep.subr.bf16.mxu0 0
  %833 = vmatpush1.bf16.xpose.msra.mxu0 0
  %834 = vmatprep.subr.bf16.mxu0 0
  %835 = vmatpush1.bf16.xpose.msra.mxu0 %v820
  %836 = vmatprep.subr.bf16.mxu0 0
  %837 = vmatpush1.bf16.xpose.msra.mxu0 %v817
  %838 = vmatprep.subr.bf16.mxu0 0
  %839 = vmatpush2.bf16.xpose.msra.mxu0 0
  %840 = vmatprep.subr.bf16.mxu0 0
  %841 = vmatpush2.bf16.xpose.msra.mxu0 0
  %842 = vmatprep.subr.bf16.mxu0 0
  %843 = vmatpush2.bf16.xpose.msra.mxu0 0
  %844 = vmatprep.subr.bf16.mxu0 0
  %845 = vmatpush2.bf16.xpose.msra.mxu0 0
  %846 = vmatprep.subr.bf16.mxu0 0
  %847 = vmatpush2.bf16.xpose.msra.mxu0 0
  %848 = vmatprep.subr.bf16.mxu0 0
  %849 = vmatpush2.bf16.xpose.msra.mxu0 0
  %850 = vmatprep.subr.bf16.mxu0 0
  %851 = vmatpush2.bf16.xpose.msra.mxu0 0
  %852 = vmatprep.subr.bf16.mxu0 0
  %853 = vmatpush2.bf16.xpose.msra.mxu0 0
  %854 = vmatprep.mubr.bf16.mxu0 0
  %855 = vmatmul.mubr.bf16.gmra.mxu0 %v811
  %v856 = vpop.f32.mrf.mxu0
  %v857 = vadd.f32 %v671, %v856
  %v858 = vpop.f32.mrf.mxu0
  %v859 = vpop.f32.mrf.mxu0
  %v860 = vadd.f32 %v672, %v859
  %v861 = vpop.f32.mrf.mxu0
  %862 = vmatprep.mubr.bf16.mxu0 0
  %863 = vmatmul.mubr.bf16.gmra.mxu0 %v814
  %v864 = vpop.f32.mrf.mxu0
  %v865 = vadd.f32 %v673, %v864
  %v866 = vpop.f32.mrf.mxu0
  %v867 = vpop.f32.mrf.mxu0
  %v868 = vadd.f32 %v674, %v867
  %v869 = vpop.f32.mrf.mxu0
  %870 = vdwg.mxu0
  %871 = vrot.lane.b32.xlu0 %v368, 64
  %v872 = vpop.permute.xlu0 %871
  %873 = vrot.lane.b32.xlu0 %v370, 64
  %v874 = vpop.permute.xlu0 %873
  %v876 = vsel %vm679, %v368, 0
  %v879 = vsel %vm679, %v370, 0
  %v882 = vsel %vm679, %v872, 0
  %v885 = vsel %vm679, %v874, 0
  %887 = vmatprep.subr.bf16.mxu0 0
  %888 = vmatpush1.bf16.xpose.msra.mxu0 0
  %889 = vmatprep.subr.bf16.mxu0 0
  %890 = vmatpush1.bf16.xpose.msra.mxu0 0
  %891 = vmatprep.subr.bf16.mxu0 0
  %892 = vmatpush1.bf16.xpose.msra.mxu0 0
  %893 = vmatprep.subr.bf16.mxu0 0
  %894 = vmatpush1.bf16.xpose.msra.mxu0 0
  %895 = vmatprep.subr.bf16.mxu0 0
  %896 = vmatpush1.bf16.xpose.msra.mxu0 0
  %897 = vmatprep.subr.bf16.mxu0 0
  %898 = vmatpush1.bf16.xpose.msra.mxu0 0
  %899 = vmatprep.subr.bf16.mxu0 0
  %900 = vmatpush1.bf16.xpose.msra.mxu0 %v885
  %901 = vmatprep.subr.bf16.mxu0 0
  %902 = vmatpush1.bf16.xpose.msra.mxu0 %v882
  %903 = vmatprep.subr.bf16.mxu0 0
  %904 = vmatpush2.bf16.xpose.msra.mxu0 0
  %905 = vmatprep.subr.bf16.mxu0 0
  %906 = vmatpush2.bf16.xpose.msra.mxu0 0
  %907 = vmatprep.subr.bf16.mxu0 0
  %908 = vmatpush2.bf16.xpose.msra.mxu0 0
  %909 = vmatprep.subr.bf16.mxu0 0
  %910 = vmatpush2.bf16.xpose.msra.mxu0 0
  %911 = vmatprep.subr.bf16.mxu0 0
  %912 = vmatpush2.bf16.xpose.msra.mxu0 0
  %913 = vmatprep.subr.bf16.mxu0 0
  %914 = vmatpush2.bf16.xpose.msra.mxu0 0
  %915 = vmatprep.subr.bf16.mxu0 0
  %916 = vmatpush2.bf16.xpose.msra.mxu0 0
  %917 = vmatprep.subr.bf16.mxu0 0
  %918 = vmatpush2.bf16.xpose.msra.mxu0 0
  %919 = vmatprep.mubr.bf16.mxu0 0
  %920 = vmatmul.mubr.bf16.gmra.mxu0 %v876
  %v921 = vpop.f32.mrf.mxu0
  %v922 = vadd.f32 %v671, %v921
  %v923 = vpop.f32.mrf.mxu0
  %v924 = vpop.f32.mrf.mxu0
  %v925 = vadd.f32 %v672, %v924
  %v926 = vpop.f32.mrf.mxu0
  %927 = vmatprep.mubr.bf16.mxu0 0
  %928 = vmatmul.mubr.bf16.gmra.mxu0 %v879
  %v929 = vpop.f32.mrf.mxu0
  %v930 = vadd.f32 %v673, %v929
  %v931 = vpop.f32.mrf.mxu0
  %v932 = vpop.f32.mrf.mxu0
  %v933 = vadd.f32 %v674, %v932
  %v934 = vpop.f32.mrf.mxu0
  %935 = vdwg.mxu0
  %936 = vrot.lane.b32.xlu0 %v372, 64
  %v937 = vpop.permute.xlu0 %936
  %938 = vrot.lane.b32.xlu0 %v374, 64
  %v939 = vpop.permute.xlu0 %938
  %v941 = vsel %vm679, %v372, 0
  %v944 = vsel %vm679, %v374, 0
  %v947 = vsel %vm679, %v937, 0
  %v950 = vsel %vm679, %v939, 0
  %952 = vmatprep.subr.bf16.mxu0 0
  %953 = vmatpush1.bf16.xpose.msra.mxu0 0
  %954 = vmatprep.subr.bf16.mxu0 0
  %955 = vmatpush1.bf16.xpose.msra.mxu0 0
  %956 = vmatprep.subr.bf16.mxu0 0
  %957 = vmatpush1.bf16.xpose.msra.mxu0 0
  %958 = vmatprep.subr.bf16.mxu0 0
  %959 = vmatpush1.bf16.xpose.msra.mxu0 0
  %960 = vmatprep.subr.bf16.mxu0 0
  %961 = vmatpush1.bf16.xpose.msra.mxu0 0
  %962 = vmatprep.subr.bf16.mxu0 0
  %963 = vmatpush1.bf16.xpose.msra.mxu0 0
  %964 = vmatprep.subr.bf16.mxu0 0
  %965 = vmatpush1.bf16.xpose.msra.mxu0 %v950
  %966 = vmatprep.subr.bf16.mxu0 0
  %967 = vmatpush1.bf16.xpose.msra.mxu0 %v947
  %968 = vmatprep.subr.bf16.mxu0 0
  %969 = vmatpush2.bf16.xpose.msra.mxu0 0
  %970 = vmatprep.subr.bf16.mxu0 0
  %971 = vmatpush2.bf16.xpose.msra.mxu0 0
  %972 = vmatprep.subr.bf16.mxu0 0
  %973 = vmatpush2.bf16.xpose.msra.mxu0 0
  %974 = vmatprep.subr.bf16.mxu0 0
  %975 = vmatpush2.bf16.xpose.msra.mxu0 0
  %976 = vmatprep.subr.bf16.mxu0 0
  %977 = vmatpush2.bf16.xpose.msra.mxu0 0
  %978 = vmatprep.subr.bf16.mxu0 0
  %979 = vmatpush2.bf16.xpose.msra.mxu0 0
  %980 = vmatprep.subr.bf16.mxu0 0
  %981 = vmatpush2.bf16.xpose.msra.mxu0 0
  %982 = vmatprep.subr.bf16.mxu0 0
  %983 = vmatpush2.bf16.xpose.msra.mxu0 0
  %984 = vmatprep.mubr.bf16.mxu0 0
  %985 = vmatmul.mubr.bf16.gmra.mxu0 %v941
  %v986 = vpop.f32.mrf.mxu0
  %v987 = vadd.f32 %v671, %v986
  %v988 = vpop.f32.mrf.mxu0
  %v989 = vpop.f32.mrf.mxu0
  %v990 = vadd.f32 %v672, %v989
  %v991 = vpop.f32.mrf.mxu0
  %992 = vmatprep.mubr.bf16.mxu0 0
  %993 = vmatmul.mubr.bf16.gmra.mxu0 %v944
  %v994 = vpop.f32.mrf.mxu0
  %v995 = vadd.f32 %v673, %v994
  %v996 = vpop.f32.mrf.mxu0
  %v997 = vpop.f32.mrf.mxu0
  %v998 = vadd.f32 %v674, %v997
  %v999 = vpop.f32.mrf.mxu0
  %1000 = vdwg.mxu0
  %1001 = vrot.lane.b32.xlu0 %v376, 64
  %v1002 = vpop.permute.xlu0 %1001
  %1003 = vrot.lane.b32.xlu0 %v378, 64
  %v1004 = vpop.permute.xlu0 %1003
  %v1006 = vsel %vm679, %v376, 0
  %v1009 = vsel %vm679, %v378, 0
  %v1012 = vsel %vm679, %v1002, 0
  %v1015 = vsel %vm679, %v1004, 0
  %1017 = vmatprep.subr.bf16.mxu0 0
  %1018 = vmatpush1.bf16.xpose.msra.mxu0 0
  %1019 = vmatprep.subr.bf16.mxu0 0
  %1020 = vmatpush1.bf16.xpose.msra.mxu0 0
  %1021 = vmatprep.subr.bf16.mxu0 0
  %1022 = vmatpush1.bf16.xpose.msra.mxu0 0
  %1023 = vmatprep.subr.bf16.mxu0 0
  %1024 = vmatpush1.bf16.xpose.msra.mxu0 0
  %1025 = vmatprep.subr.bf16.mxu0 0
  %1026 = vmatpush1.bf16.xpose.msra.mxu0 0
  %1027 = vmatprep.subr.bf16.mxu0 0
  %1028 = vmatpush1.bf16.xpose.msra.mxu0 0
  %1029 = vmatprep.subr.bf16.mxu0 0
  %1030 = vmatpush1.bf16.xpose.msra.mxu0 %v1015
  %1031 = vmatprep.subr.bf16.mxu0 0
  %1032 = vmatpush1.bf16.xpose.msra.mxu0 %v1012
  %1033 = vmatprep.subr.bf16.mxu0 0
  %1034 = vmatpush2.bf16.xpose.msra.mxu0 0
  %1035 = vmatprep.subr.bf16.mxu0 0
  %1036 = vmatpush2.bf16.xpose.msra.mxu0 0
  %1037 = vmatprep.subr.bf16.mxu0 0
  %1038 = vmatpush2.bf16.xpose.msra.mxu0 0
  %1039 = vmatprep.subr.bf16.mxu0 0
  %1040 = vmatpush2.bf16.xpose.msra.mxu0 0
  %1041 = vmatprep.subr.bf16.mxu0 0
  %1042 = vmatpush2.bf16.xpose.msra.mxu0 0
  %1043 = vmatprep.subr.bf16.mxu0 0
  %1044 = vmatpush2.bf16.xpose.msra.mxu0 0
  %1045 = vmatprep.subr.bf16.mxu0 0
  %1046 = vmatpush2.bf16.xpose.msra.mxu0 0
  %1047 = vmatprep.subr.bf16.mxu0 0
  %1048 = vmatpush2.bf16.xpose.msra.mxu0 0
  %1049 = vmatprep.mubr.bf16.mxu0 0
  %1050 = vmatmul.mubr.bf16.gmra.mxu0 %v1006
  %v1051 = vpop.f32.mrf.mxu0
  %v1052 = vadd.f32 %v671, %v1051
  %v1053 = vpop.f32.mrf.mxu0
  %v1054 = vpop.f32.mrf.mxu0
  %v1055 = vadd.f32 %v672, %v1054
  %v1056 = vpop.f32.mrf.mxu0
  %1057 = vmatprep.mubr.bf16.mxu0 0
  %1058 = vmatmul.mubr.bf16.gmra.mxu0 %v1009
  %v1059 = vpop.f32.mrf.mxu0
  %v1060 = vadd.f32 %v673, %v1059
  %v1061 = vpop.f32.mrf.mxu0
  %v1062 = vpop.f32.mrf.mxu0
  %v1063 = vadd.f32 %v674, %v1062
  %v1064 = vpop.f32.mrf.mxu0
  %1065 = vdwg.mxu0
  %1066 = vrot.lane.b32.xlu0 %v380, 64
  %v1067 = vpop.permute.xlu0 %1066
  %1068 = vrot.lane.b32.xlu0 %v382, 64
  %v1069 = vpop.permute.xlu0 %1068
  %v1071 = vsel %vm679, %v380, 0
  %v1074 = vsel %vm679, %v382, 0
  %v1077 = vsel %vm679, %v1067, 0
  %v1080 = vsel %vm679, %v1069, 0
  %1082 = vmatprep.subr.bf16.mxu0 0
  %1083 = vmatpush1.bf16.xpose.msra.mxu0 0
  %1084 = vmatprep.subr.bf16.mxu0 0
  %1085 = vmatpush1.bf16.xpose.msra.mxu0 0
  %1086 = vmatprep.subr.bf16.mxu0 0
  %1087 = vmatpush1.bf16.xpose.msra.mxu0 0
  %1088 = vmatprep.subr.bf16.mxu0 0
  %1089 = vmatpush1.bf16.xpose.msra.mxu0 0
  %1090 = vmatprep.subr.bf16.mxu0 0
  %1091 = vmatpush1.bf16.xpose.msra.mxu0 0
  %1092 = vmatprep.subr.bf16.mxu0 0
  %1093 = vmatpush1.bf16.xpose.msra.mxu0 0
  %1094 = vmatprep.subr.bf16.mxu0 0
  %1095 = vmatpush1.bf16.xpose.msra.mxu0 %v1080
  %1096 = vmatprep.subr.bf16.mxu0 0
  %1097 = vmatpush1.bf16.xpose.msra.mxu0 %v1077
  %1098 = vmatprep.subr.bf16.mxu0 0
  %1099 = vmatpush2.bf16.xpose.msra.mxu0 0
  %1100 = vmatprep.subr.bf16.mxu0 0
  %1101 = vmatpush2.bf16.xpose.msra.mxu0 0
  %1102 = vmatprep.subr.bf16.mxu0 0
  %1103 = vmatpush2.bf16.xpose.msra.mxu0 0
  %1104 = vmatprep.subr.bf16.mxu0 0
  %1105 = vmatpush2.bf16.xpose.msra.mxu0 0
  %1106 = vmatprep.subr.bf16.mxu0 0
  %1107 = vmatpush2.bf16.xpose.msra.mxu0 0
  %1108 = vmatprep.subr.bf16.mxu0 0
  %1109 = vmatpush2.bf16.xpose.msra.mxu0 0
  %1110 = vmatprep.subr.bf16.mxu0 0
  %1111 = vmatpush2.bf16.xpose.msra.mxu0 0
  %1112 = vmatprep.subr.bf16.mxu0 0
  %1113 = vmatpush2.bf16.xpose.msra.mxu0 0
  %1114 = vmatprep.mubr.bf16.mxu0 0
  %1115 = vmatmul.mubr.bf16.gmra.mxu0 %v1071
  %v1116 = vpop.f32.mrf.mxu0
  %v1117 = vadd.f32 %v671, %v1116
  %v1118 = vpop.f32.mrf.mxu0
  %v1119 = vpop.f32.mrf.mxu0
  %v1120 = vadd.f32 %v672, %v1119
  %v1121 = vpop.f32.mrf.mxu0
  %1122 = vmatprep.mubr.bf16.mxu0 0
  %1123 = vmatmul.mubr.bf16.gmra.mxu0 %v1074
  %v1124 = vpop.f32.mrf.mxu0
  %v1125 = vadd.f32 %v673, %v1124
  %v1126 = vpop.f32.mrf.mxu0
  %v1127 = vpop.f32.mrf.mxu0
  %v1128 = vadd.f32 %v674, %v1127
  %v1129 = vpop.f32.mrf.mxu0
  %1130 = vdwg.mxu0
  %1131 = vrot.lane.b32.xlu0 %v384, 64
  %v1132 = vpop.permute.xlu0 %1131
  %1133 = vrot.lane.b32.xlu0 %v386, 64
  %v1134 = vpop.permute.xlu0 %1133
  %v1136 = vsel %vm679, %v384, 0
  %v1139 = vsel %vm679, %v386, 0
  %v1142 = vsel %vm679, %v1132, 0
  %v1145 = vsel %vm679, %v1134, 0
  %1147 = vmatprep.subr.bf16.mxu0 0
  %1148 = vmatpush1.bf16.xpose.msra.mxu0 0
  %1149 = vmatprep.subr.bf16.mxu0 0
  %1150 = vmatpush1.bf16.xpose.msra.mxu0 0
  %1151 = vmatprep.subr.bf16.mxu0 0
  %1152 = vmatpush1.bf16.xpose.msra.mxu0 0
  %1153 = vmatprep.subr.bf16.mxu0 0
  %1154 = vmatpush1.bf16.xpose.msra.mxu0 0
  %1155 = vmatprep.subr.bf16.mxu0 0
  %1156 = vmatpush1.bf16.xpose.msra.mxu0 0
  %1157 = vmatprep.subr.bf16.mxu0 0
  %1158 = vmatpush1.bf16.xpose.msra.mxu0 0
  %1159 = vmatprep.subr.bf16.mxu0 0
  %1160 = vmatpush1.bf16.xpose.msra.mxu0 %v1145
  %1161 = vmatprep.subr.bf16.mxu0 0
  %1162 = vmatpush1.bf16.xpose.msra.mxu0 %v1142
  %1163 = vmatprep.subr.bf16.mxu0 0
  %1164 = vmatpush2.bf16.xpose.msra.mxu0 0
  %1165 = vmatprep.subr.bf16.mxu0 0
  %1166 = vmatpush2.bf16.xpose.msra.mxu0 0
  %1167 = vmatprep.subr.bf16.mxu0 0
  %1168 = vmatpush2.bf16.xpose.msra.mxu0 0
  %1169 = vmatprep.subr.bf16.mxu0 0
  %1170 = vmatpush2.bf16.xpose.msra.mxu0 0
  %1171 = vmatprep.subr.bf16.mxu0 0
  %1172 = vmatpush2.bf16.xpose.msra.mxu0 0
  %1173 = vmatprep.subr.bf16.mxu0 0
  %1174 = vmatpush2.bf16.xpose.msra.mxu0 0
  %1175 = vmatprep.subr.bf16.mxu0 0
  %1176 = vmatpush2.bf16.xpose.msra.mxu0 0
  %1177 = vmatprep.subr.bf16.mxu0 0
  %1178 = vmatpush2.bf16.xpose.msra.mxu0 0
  %1179 = vmatprep.mubr.bf16.mxu0 0
  %1180 = vmatmul.mubr.bf16.gmra.mxu0 %v1136
  %v1181 = vpop.f32.mrf.mxu0
  %v1182 = vadd.f32 %v671, %v1181
  %v1183 = vpop.f32.mrf.mxu0
  %v1184 = vpop.f32.mrf.mxu0
  %v1185 = vadd.f32 %v672, %v1184
  %v1186 = vpop.f32.mrf.mxu0
  %1187 = vmatprep.mubr.bf16.mxu0 0
  %1188 = vmatmul.mubr.bf16.gmra.mxu0 %v1139
  %v1189 = vpop.f32.mrf.mxu0
  %v1190 = vadd.f32 %v673, %v1189
  %v1191 = vpop.f32.mrf.mxu0
  %v1192 = vpop.f32.mrf.mxu0
  %v1193 = vadd.f32 %v674, %v1192
  %v1194 = vpop.f32.mrf.mxu0
  %1195 = vdwg.mxu0
  %1196 = vrot.lane.b32.xlu0 %v405, 64
  %v1197 = vpop.permute.xlu0 %1196
  %1198 = vrot.lane.b32.xlu0 %v407, 64
  %v1199 = vpop.permute.xlu0 %1198
  %v1201 = vsel %vm679, %v405, 0
  %v1204 = vsel %vm679, %v407, 0
  %v1207 = vsel %vm679, %v1197, 0
  %v1210 = vsel %vm679, %v1199, 0
  %1212 = vmatprep.subr.bf16.mxu0 0
  %1213 = vmatpush1.bf16.xpose.msra.mxu0 0
  %1214 = vmatprep.subr.bf16.mxu0 0
  %1215 = vmatpush1.bf16.xpose.msra.mxu0 0
  %1216 = vmatprep.subr.bf16.mxu0 0
  %1217 = vmatpush1.bf16.xpose.msra.mxu0 0
  %1218 = vmatprep.subr.bf16.mxu0 0
  %1219 = vmatpush1.bf16.xpose.msra.mxu0 0
  %1220 = vmatprep.subr.bf16.mxu0 0
  %1221 = vmatpush1.bf16.xpose.msra.mxu0 0
  %1222 = vmatprep.subr.bf16.mxu0 0
  %1223 = vmatpush1.bf16.xpose.msra.mxu0 0
  %1224 = vmatprep.subr.bf16.mxu0 0
  %1225 = vmatpush1.bf16.xpose.msra.mxu0 %v1210
  %1226 = vmatprep.subr.bf16.mxu0 0
  %1227 = vmatpush1.bf16.xpose.msra.mxu0 %v1207
  %1228 = vmatprep.subr.bf16.mxu0 0
  %1229 = vmatpush2.bf16.xpose.msra.mxu0 0
  %1230 = vmatprep.subr.bf16.mxu0 0
  %1231 = vmatpush2.bf16.xpose.msra.mxu0 0
  %1232 = vmatprep.subr.bf16.mxu0 0
  %1233 = vmatpush2.bf16.xpose.msra.mxu0 0
  %1234 = vmatprep.subr.bf16.mxu0 0
  %1235 = vmatpush2.bf16.xpose.msra.mxu0 0
  %1236 = vmatprep.subr.bf16.mxu0 0
  %1237 = vmatpush2.bf16.xpose.msra.mxu0 0
  %1238 = vmatprep.subr.bf16.mxu0 0
  %1239 = vmatpush2.bf16.xpose.msra.mxu0 0
  %1240 = vmatprep.subr.bf16.mxu0 0
  %1241 = vmatpush2.bf16.xpose.msra.mxu0 0
  %1242 = vmatprep.subr.bf16.mxu0 0
  %1243 = vmatpush2.bf16.xpose.msra.mxu0 0
  %1244 = vmatprep.mubr.bf16.mxu0 0
  %1245 = vmatmul.mubr.bf16.gmra.mxu0 %v1201
  %v1246 = vpop.f32.mrf.mxu0
  %v1247 = vadd.f32 %v671, %v1246
  %v1248 = vpop.f32.mrf.mxu0
  %v1249 = vpop.f32.mrf.mxu0
  %v1250 = vadd.f32 %v672, %v1249
  %v1251 = vpop.f32.mrf.mxu0
  %1252 = vmatprep.mubr.bf16.mxu0 0
  %1253 = vmatmul.mubr.bf16.gmra.mxu0 %v1204
  %v1254 = vpop.f32.mrf.mxu0
  %v1255 = vadd.f32 %v673, %v1254
  %v1256 = vpop.f32.mrf.mxu0
  %v1257 = vpop.f32.mrf.mxu0
  %v1258 = vadd.f32 %v674, %v1257
  %v1259 = vpop.f32.mrf.mxu0
  %1260 = vdwg.mxu0
  %1261 = vrot.lane.b32.xlu0 %v409, 64
  %v1262 = vpop.permute.xlu0 %1261
  %1263 = vrot.lane.b32.xlu0 %v411, 64
  %v1264 = vpop.permute.xlu0 %1263
  %v1266 = vsel %vm679, %v409, 0
  %v1269 = vsel %vm679, %v411, 0
  %v1272 = vsel %vm679, %v1262, 0
  %v1275 = vsel %vm679, %v1264, 0
  %1277 = vmatprep.subr.bf16.mxu0 0
  %1278 = vmatpush1.bf16.xpose.msra.mxu0 0
  %1279 = vmatprep.subr.bf16.mxu0 0
  %1280 = vmatpush1.bf16.xpose.msra.mxu0 0
  %1281 = vmatprep.subr.bf16.mxu0 0
  %1282 = vmatpush1.bf16.xpose.msra.mxu0 0
  %1283 = vmatprep.subr.bf16.mxu0 0
  %1284 = vmatpush1.bf16.xpose.msra.mxu0 0
  %1285 = vmatprep.subr.bf16.mxu0 0
  %1286 = vmatpush1.bf16.xpose.msra.mxu0 0
  %1287 = vmatprep.subr.bf16.mxu0 0
  %1288 = vmatpush1.bf16.xpose.msra.mxu0 0
  %1289 = vmatprep.subr.bf16.mxu0 0
  %1290 = vmatpush1.bf16.xpose.msra.mxu0 %v1275
  %1291 = vmatprep.subr.bf16.mxu0 0
  %1292 = vmatpush1.bf16.xpose.msra.mxu0 %v1272
  %1293 = vmatprep.subr.bf16.mxu0 0
  %1294 = vmatpush2.bf16.xpose.msra.mxu0 0
  %1295 = vmatprep.subr.bf16.mxu0 0
  %1296 = vmatpush2.bf16.xpose.msra.mxu0 0
  %1297 = vmatprep.subr.bf16.mxu0 0
  %1298 = vmatpush2.bf16.xpose.msra.mxu0 0
  %1299 = vmatprep.subr.bf16.mxu0 0
  %1300 = vmatpush2.bf16.xpose.msra.mxu0 0
  %1301 = vmatprep.subr.bf16.mxu0 0
  %1302 = vmatpush2.bf16.xpose.msra.mxu0 0
  %1303 = vmatprep.subr.bf16.mxu0 0
  %1304 = vmatpush2.bf16.xpose.msra.mxu0 0
  %1305 = vmatprep.subr.bf16.mxu0 0
  %1306 = vmatpush2.bf16.xpose.msra.mxu0 0
  %1307 = vmatprep.subr.bf16.mxu0 0
  %1308 = vmatpush2.bf16.xpose.msra.mxu0 0
  %1309 = vmatprep.mubr.bf16.mxu0 0
  %1310 = vmatmul.mubr.bf16.gmra.mxu0 %v1266
  %v1311 = vpop.f32.mrf.mxu0
  %v1312 = vadd.f32 %v671, %v1311
  %v1313 = vpop.f32.mrf.mxu0
  %v1314 = vpop.f32.mrf.mxu0
  %v1315 = vadd.f32 %v672, %v1314
  %v1316 = vpop.f32.mrf.mxu0
  %1317 = vmatprep.mubr.bf16.mxu0 0
  %1318 = vmatmul.mubr.bf16.gmra.mxu0 %v1269
  %v1319 = vpop.f32.mrf.mxu0
  %v1320 = vadd.f32 %v673, %v1319
  %v1321 = vpop.f32.mrf.mxu0
  %v1322 = vpop.f32.mrf.mxu0
  %v1323 = vadd.f32 %v674, %v1322
  %v1324 = vpop.f32.mrf.mxu0
  %1325 = vdwg.mxu0
  %1326 = vrot.lane.b32.xlu0 %v413, 64
  %v1327 = vpop.permute.xlu0 %1326
  %1328 = vrot.lane.b32.xlu0 %v415, 64
  %v1329 = vpop.permute.xlu0 %1328
  %v1331 = vsel %vm679, %v413, 0
  %v1334 = vsel %vm679, %v415, 0
  %v1337 = vsel %vm679, %v1327, 0
  %v1340 = vsel %vm679, %v1329, 0
  %1342 = vmatprep.subr.bf16.mxu0 0
  %1343 = vmatpush1.bf16.xpose.msra.mxu0 0
  %1344 = vmatprep.subr.bf16.mxu0 0
  %1345 = vmatpush1.bf16.xpose.msra.mxu0 0
  %1346 = vmatprep.subr.bf16.mxu0 0
  %1347 = vmatpush1.bf16.xpose.msra.mxu0 0
  %1348 = vmatprep.subr.bf16.mxu0 0
  %1349 = vmatpush1.bf16.xpose.msra.mxu0 0
  %1350 = vmatprep.subr.bf16.mxu0 0
  %1351 = vmatpush1.bf16.xpose.msra.mxu0 0
  %1352 = vmatprep.subr.bf16.mxu0 0
  %1353 = vmatpush1.bf16.xpose.msra.mxu0 0
  %1354 = vmatprep.subr.bf16.mxu0 0
  %1355 = vmatpush1.bf16.xpose.msra.mxu0 %v1340
  %1356 = vmatprep.subr.bf16.mxu0 0
  %1357 = vmatpush1.bf16.xpose.msra.mxu0 %v1337
  %1358 = vmatprep.subr.bf16.mxu0 0
  %1359 = vmatpush2.bf16.xpose.msra.mxu0 0
  %1360 = vmatprep.subr.bf16.mxu0 0
  %1361 = vmatpush2.bf16.xpose.msra.mxu0 0
  %1362 = vmatprep.subr.bf16.mxu0 0
  %1363 = vmatpush2.bf16.xpose.msra.mxu0 0
  %1364 = vmatprep.subr.bf16.mxu0 0
  %1365 = vmatpush2.bf16.xpose.msra.mxu0 0
  %1366 = vmatprep.subr.bf16.mxu0 0
  %1367 = vmatpush2.bf16.xpose.msra.mxu0 0
  %1368 = vmatprep.subr.bf16.mxu0 0
  %1369 = vmatpush2.bf16.xpose.msra.mxu0 0
  %1370 = vmatprep.subr.bf16.mxu0 0
  %1371 = vmatpush2.bf16.xpose.msra.mxu0 0
  %1372 = vmatprep.subr.bf16.mxu0 0
  %1373 = vmatpush2.bf16.xpose.msra.mxu0 0
  %1374 = vmatprep.mubr.bf16.mxu0 0
  %1375 = vmatmul.mubr.bf16.gmra.mxu0 %v1331
  %v1376 = vpop.f32.mrf.mxu0
  %v1377 = vadd.f32 %v671, %v1376
  %v1378 = vpop.f32.mrf.mxu0
  %v1379 = vpop.f32.mrf.mxu0
  %v1380 = vadd.f32 %v672, %v1379
  %v1381 = vpop.f32.mrf.mxu0
  %1382 = vmatprep.mubr.bf16.mxu0 0
  %1383 = vmatmul.mubr.bf16.gmra.mxu0 %v1334
  %v1384 = vpop.f32.mrf.mxu0
  %v1385 = vadd.f32 %v673, %v1384
  %v1386 = vpop.f32.mrf.mxu0
  %v1387 = vpop.f32.mrf.mxu0
  %v1388 = vadd.f32 %v674, %v1387
  %v1389 = vpop.f32.mrf.mxu0
  %1390 = vdwg.mxu0
  %1391 = vrot.lane.b32.xlu0 %v417, 64
  %v1392 = vpop.permute.xlu0 %1391
  %1393 = vrot.lane.b32.xlu0 %v419, 64
  %v1394 = vpop.permute.xlu0 %1393
  %v1396 = vsel %vm679, %v417, 0
  %v1399 = vsel %vm679, %v419, 0
  %v1402 = vsel %vm679, %v1392, 0
  %v1405 = vsel %vm679, %v1394, 0
  %1407 = vmatprep.subr.bf16.mxu0 0
  %1408 = vmatpush1.bf16.xpose.msra.mxu0 0
  %1409 = vmatprep.subr.bf16.mxu0 0
  %1410 = vmatpush1.bf16.xpose.msra.mxu0 0
  %1411 = vmatprep.subr.bf16.mxu0 0
  %1412 = vmatpush1.bf16.xpose.msra.mxu0 0
  %1413 = vmatprep.subr.bf16.mxu0 0
  %1414 = vmatpush1.bf16.xpose.msra.mxu0 0
  %1415 = vmatprep.subr.bf16.mxu0 0
  %1416 = vmatpush1.bf16.xpose.msra.mxu0 0
  %1417 = vmatprep.subr.bf16.mxu0 0
  %1418 = vmatpush1.bf16.xpose.msra.mxu0 0
  %1419 = vmatprep.subr.bf16.mxu0 0
  %1420 = vmatpush1.bf16.xpose.msra.mxu0 %v1405
  %1421 = vmatprep.subr.bf16.mxu0 0
  %1422 = vmatpush1.bf16.xpose.msra.mxu0 %v1402
  %1423 = vmatprep.subr.bf16.mxu0 0
  %1424 = vmatpush2.bf16.xpose.msra.mxu0 0
  %1425 = vmatprep.subr.bf16.mxu0 0
  %1426 = vmatpush2.bf16.xpose.msra.mxu0 0
  %1427 = vmatprep.subr.bf16.mxu0 0
  %1428 = vmatpush2.bf16.xpose.msra.mxu0 0
  %1429 = vmatprep.subr.bf16.mxu0 0
  %1430 = vmatpush2.bf16.xpose.msra.mxu0 0
  %1431 = vmatprep.subr.bf16.mxu0 0
  %1432 = vmatpush2.bf16.xpose.msra.mxu0 0
  %1433 = vmatprep.subr.bf16.mxu0 0
  %1434 = vmatpush2.bf16.xpose.msra.mxu0 0
  %1435 = vmatprep.subr.bf16.mxu0 0
  %1436 = vmatpush2.bf16.xpose.msra.mxu0 0
  %1437 = vmatprep.subr.bf16.mxu0 0
  %1438 = vmatpush2.bf16.xpose.msra.mxu0 0
  %1439 = vmatprep.mubr.bf16.mxu0 0
  %1440 = vmatmul.mubr.bf16.gmra.mxu0 %v1396
  %v1441 = vpop.f32.mrf.mxu0
  %v1442 = vadd.f32 %v671, %v1441
  %v1443 = vpop.f32.mrf.mxu0
  %v1444 = vpop.f32.mrf.mxu0
  %v1445 = vadd.f32 %v672, %v1444
  %v1446 = vpop.f32.mrf.mxu0
  %1447 = vmatprep.mubr.bf16.mxu0 0
  %1448 = vmatmul.mubr.bf16.gmra.mxu0 %v1399
  %v1449 = vpop.f32.mrf.mxu0
  %v1450 = vadd.f32 %v673, %v1449
  %v1451 = vpop.f32.mrf.mxu0
  %v1452 = vpop.f32.mrf.mxu0
  %v1453 = vadd.f32 %v674, %v1452
  %v1454 = vpop.f32.mrf.mxu0
  %1455 = vdwg.mxu0
  %1456 = vrot.lane.b32.xlu0 %v421, 64
  %v1457 = vpop.permute.xlu0 %1456
  %1458 = vrot.lane.b32.xlu0 %v423, 64
  %v1459 = vpop.permute.xlu0 %1458
  %v1461 = vsel %vm679, %v421, 0
  %v1464 = vsel %vm679, %v423, 0
  %v1467 = vsel %vm679, %v1457, 0
  %v1470 = vsel %vm679, %v1459, 0
  %1472 = vmatprep.subr.bf16.mxu0 0
  %1473 = vmatpush1.bf16.xpose.msra.mxu0 0
  %1474 = vmatprep.subr.bf16.mxu0 0
  %1475 = vmatpush1.bf16.xpose.msra.mxu0 0
  %1476 = vmatprep.subr.bf16.mxu0 0
  %1477 = vmatpush1.bf16.xpose.msra.mxu0 0
  %1478 = vmatprep.subr.bf16.mxu0 0
  %1479 = vmatpush1.bf16.xpose.msra.mxu0 0
  %1480 = vmatprep.subr.bf16.mxu0 0
  %1481 = vmatpush1.bf16.xpose.msra.mxu0 0
  %1482 = vmatprep.subr.bf16.mxu0 0
  %1483 = vmatpush1.bf16.xpose.msra.mxu0 0
  %1484 = vmatprep.subr.bf16.mxu0 0
  %1485 = vmatpush1.bf16.xpose.msra.mxu0 %v1470
  %1486 = vmatprep.subr.bf16.mxu0 0
  %1487 = vmatpush1.bf16.xpose.msra.mxu0 %v1467
  %1488 = vmatprep.subr.bf16.mxu0 0
  %1489 = vmatpush2.bf16.xpose.msra.mxu0 0
  %1490 = vmatprep.subr.bf16.mxu0 0
  %1491 = vmatpush2.bf16.xpose.msra.mxu0 0
  %1492 = vmatprep.subr.bf16.mxu0 0
  %1493 = vmatpush2.bf16.xpose.msra.mxu0 0
  %1494 = vmatprep.subr.bf16.mxu0 0
  %1495 = vmatpush2.bf16.xpose.msra.mxu0 0
  %1496 = vmatprep.subr.bf16.mxu0 0
  %1497 = vmatpush2.bf16.xpose.msra.mxu0 0
  %1498 = vmatprep.subr.bf16.mxu0 0
  %1499 = vmatpush2.bf16.xpose.msra.mxu0 0
  %1500 = vmatprep.subr.bf16.mxu0 0
  %1501 = vmatpush2.bf16.xpose.msra.mxu0 0
  %1502 = vmatprep.subr.bf16.mxu0 0
  %1503 = vmatpush2.bf16.xpose.msra.mxu0 0
  %1504 = vmatprep.mubr.bf16.mxu0 0
  %1505 = vmatmul.mubr.bf16.gmra.mxu0 %v1461
  %v1506 = vpop.f32.mrf.mxu0
  %v1507 = vadd.f32 %v671, %v1506
  %v1508 = vpop.f32.mrf.mxu0
  %v1509 = vpop.f32.mrf.mxu0
  %v1510 = vadd.f32 %v672, %v1509
  %v1511 = vpop.f32.mrf.mxu0
  %1512 = vmatprep.mubr.bf16.mxu0 0
  %1513 = vmatmul.mubr.bf16.gmra.mxu0 %v1464
  %v1514 = vpop.f32.mrf.mxu0
  %v1515 = vadd.f32 %v673, %v1514
  %v1516 = vpop.f32.mrf.mxu0
  %v1517 = vpop.f32.mrf.mxu0
  %v1518 = vadd.f32 %v674, %v1517
  %v1519 = vpop.f32.mrf.mxu0
  %1520 = vdwg.mxu0
  %1521 = vrot.lane.b32.xlu0 %v425, 64
  %v1522 = vpop.permute.xlu0 %1521
  %1523 = vrot.lane.b32.xlu0 %v427, 64
  %v1524 = vpop.permute.xlu0 %1523
  %v1526 = vsel %vm679, %v425, 0
  %v1529 = vsel %vm679, %v427, 0
  %v1532 = vsel %vm679, %v1522, 0
  %v1535 = vsel %vm679, %v1524, 0
  %1537 = vmatprep.subr.bf16.mxu0 0
  %1538 = vmatpush1.bf16.xpose.msra.mxu0 0
  %1539 = vmatprep.subr.bf16.mxu0 0
  %1540 = vmatpush1.bf16.xpose.msra.mxu0 0
  %1541 = vmatprep.subr.bf16.mxu0 0
  %1542 = vmatpush1.bf16.xpose.msra.mxu0 0
  %1543 = vmatprep.subr.bf16.mxu0 0
  %1544 = vmatpush1.bf16.xpose.msra.mxu0 0
  %1545 = vmatprep.subr.bf16.mxu0 0
  %1546 = vmatpush1.bf16.xpose.msra.mxu0 0
  %1547 = vmatprep.subr.bf16.mxu0 0
  %1548 = vmatpush1.bf16.xpose.msra.mxu0 0
  %1549 = vmatprep.subr.bf16.mxu0 0
  %1550 = vmatpush1.bf16.xpose.msra.mxu0 %v1535
  %1551 = vmatprep.subr.bf16.mxu0 0
  %1552 = vmatpush1.bf16.xpose.msra.mxu0 %v1532
  %1553 = vmatprep.subr.bf16.mxu0 0
  %1554 = vmatpush2.bf16.xpose.msra.mxu0 0
  %1555 = vmatprep.subr.bf16.mxu0 0
  %1556 = vmatpush2.bf16.xpose.msra.mxu0 0
  %1557 = vmatprep.subr.bf16.mxu0 0
  %1558 = vmatpush2.bf16.xpose.msra.mxu0 0
  %1559 = vmatprep.subr.bf16.mxu0 0
  %1560 = vmatpush2.bf16.xpose.msra.mxu0 0
  %1561 = vmatprep.subr.bf16.mxu0 0
  %1562 = vmatpush2.bf16.xpose.msra.mxu0 0
  %1563 = vmatprep.subr.bf16.mxu0 0
  %1564 = vmatpush2.bf16.xpose.msra.mxu0 0
  %1565 = vmatprep.subr.bf16.mxu0 0
  %1566 = vmatpush2.bf16.xpose.msra.mxu0 0
  %1567 = vmatprep.subr.bf16.mxu0 0
  %1568 = vmatpush2.bf16.xpose.msra.mxu0 0
  %1569 = vmatprep.mubr.bf16.mxu0 0
  %1570 = vmatmul.mubr.bf16.gmra.mxu0 %v1526
  %v1571 = vpop.f32.mrf.mxu0
  %v1572 = vadd.f32 %v671, %v1571
  %v1573 = vpop.f32.mrf.mxu0
  %v1574 = vpop.f32.mrf.mxu0
  %v1575 = vadd.f32 %v672, %v1574
  %v1576 = vpop.f32.mrf.mxu0
  %1577 = vmatprep.mubr.bf16.mxu0 0
  %1578 = vmatmul.mubr.bf16.gmra.mxu0 %v1529
  %v1579 = vpop.f32.mrf.mxu0
  %v1580 = vadd.f32 %v673, %v1579
  %v1581 = vpop.f32.mrf.mxu0
  %v1582 = vpop.f32.mrf.mxu0
  %v1583 = vadd.f32 %v674, %v1582
  %v1584 = vpop.f32.mrf.mxu0
  %1585 = vdwg.mxu0
  %1586 = vrot.lane.b32.xlu0 %v429, 64
  %v1587 = vpop.permute.xlu0 %1586
  %1588 = vrot.lane.b32.xlu0 %v431, 64
  %v1589 = vpop.permute.xlu0 %1588
  %v1591 = vsel %vm679, %v429, 0
  %v1594 = vsel %vm679, %v431, 0
  %v1597 = vsel %vm679, %v1587, 0
  %v1600 = vsel %vm679, %v1589, 0
  %1602 = vmatprep.subr.bf16.mxu0 0
  %1603 = vmatpush1.bf16.xpose.msra.mxu0 0
  %1604 = vmatprep.subr.bf16.mxu0 0
  %1605 = vmatpush1.bf16.xpose.msra.mxu0 0
  %1606 = vmatprep.subr.bf16.mxu0 0
  %1607 = vmatpush1.bf16.xpose.msra.mxu0 0
  %1608 = vmatprep.subr.bf16.mxu0 0
  %1609 = vmatpush1.bf16.xpose.msra.mxu0 0
  %1610 = vmatprep.subr.bf16.mxu0 0
  %1611 = vmatpush1.bf16.xpose.msra.mxu0 0
  %1612 = vmatprep.subr.bf16.mxu0 0
  %1613 = vmatpush1.bf16.xpose.msra.mxu0 0
  %1614 = vmatprep.subr.bf16.mxu0 0
  %1615 = vmatpush1.bf16.xpose.msra.mxu0 %v1600
  %1616 = vmatprep.subr.bf16.mxu0 0
  %1617 = vmatpush1.bf16.xpose.msra.mxu0 %v1597
  %1618 = vmatprep.subr.bf16.mxu0 0
  %1619 = vmatpush2.bf16.xpose.msra.mxu0 0
  %1620 = vmatprep.subr.bf16.mxu0 0
  %1621 = vmatpush2.bf16.xpose.msra.mxu0 0
  %1622 = vmatprep.subr.bf16.mxu0 0
  %1623 = vmatpush2.bf16.xpose.msra.mxu0 0
  %1624 = vmatprep.subr.bf16.mxu0 0
  %1625 = vmatpush2.bf16.xpose.msra.mxu0 0
  %1626 = vmatprep.subr.bf16.mxu0 0
  %1627 = vmatpush2.bf16.xpose.msra.mxu0 0
  %1628 = vmatprep.subr.bf16.mxu0 0
  %1629 = vmatpush2.bf16.xpose.msra.mxu0 0
  %1630 = vmatprep.subr.bf16.mxu0 0
  %1631 = vmatpush2.bf16.xpose.msra.mxu0 0
  %1632 = vmatprep.subr.bf16.mxu0 0
  %1633 = vmatpush2.bf16.xpose.msra.mxu0 0
  %1634 = vmatprep.mubr.bf16.mxu0 0
  %1635 = vmatmul.mubr.bf16.gmra.mxu0 %v1591
  %v1636 = vpop.f32.mrf.mxu0
  %v1637 = vadd.f32 %v671, %v1636
  %v1638 = vpop.f32.mrf.mxu0
  %v1639 = vpop.f32.mrf.mxu0
  %v1640 = vadd.f32 %v672, %v1639
  %v1641 = vpop.f32.mrf.mxu0
  %1642 = vmatprep.mubr.bf16.mxu0 0
  %1643 = vmatmul.mubr.bf16.gmra.mxu0 %v1594
  %v1644 = vpop.f32.mrf.mxu0
  %v1645 = vadd.f32 %v673, %v1644
  %v1646 = vpop.f32.mrf.mxu0
  %v1647 = vpop.f32.mrf.mxu0
  %v1648 = vadd.f32 %v674, %v1647
  %v1649 = vpop.f32.mrf.mxu0
  %1650 = vdwg.mxu0
  %1651 = vrot.lane.b32.xlu0 %v433, 64
  %v1652 = vpop.permute.xlu0 %1651
  %1653 = vrot.lane.b32.xlu0 %v435, 64
  %v1654 = vpop.permute.xlu0 %1653
  %v1656 = vsel %vm679, %v433, 0
  %v1659 = vsel %vm679, %v435, 0
  %v1662 = vsel %vm679, %v1652, 0
  %v1665 = vsel %vm679, %v1654, 0
  %1667 = vmatprep.subr.bf16.mxu0 0
  %1668 = vmatpush1.bf16.xpose.msra.mxu0 0
  %1669 = vmatprep.subr.bf16.mxu0 0
  %1670 = vmatpush1.bf16.xpose.msra.mxu0 0
  %1671 = vmatprep.subr.bf16.mxu0 0
  %1672 = vmatpush1.bf16.xpose.msra.mxu0 0
  %1673 = vmatprep.subr.bf16.mxu0 0
  %1674 = vmatpush1.bf16.xpose.msra.mxu0 0
  %1675 = vmatprep.subr.bf16.mxu0 0
  %1676 = vmatpush1.bf16.xpose.msra.mxu0 0
  %1677 = vmatprep.subr.bf16.mxu0 0
  %1678 = vmatpush1.bf16.xpose.msra.mxu0 0
  %1679 = vmatprep.subr.bf16.mxu0 0
  %1680 = vmatpush1.bf16.xpose.msra.mxu0 %v1665
  %1681 = vmatprep.subr.bf16.mxu0 0
  %1682 = vmatpush1.bf16.xpose.msra.mxu0 %v1662
  %1683 = vmatprep.subr.bf16.mxu0 0
  %1684 = vmatpush2.bf16.xpose.msra.mxu0 0
  %1685 = vmatprep.subr.bf16.mxu0 0
  %1686 = vmatpush2.bf16.xpose.msra.mxu0 0
  %1687 = vmatprep.subr.bf16.mxu0 0
  %1688 = vmatpush2.bf16.xpose.msra.mxu0 0
  %1689 = vmatprep.subr.bf16.mxu0 0
  %1690 = vmatpush2.bf16.xpose.msra.mxu0 0
  %1691 = vmatprep.subr.bf16.mxu0 0
  %1692 = vmatpush2.bf16.xpose.msra.mxu0 0
  %1693 = vmatprep.subr.bf16.mxu0 0
  %1694 = vmatpush2.bf16.xpose.msra.mxu0 0
  %1695 = vmatprep.subr.bf16.mxu0 0
  %1696 = vmatpush2.bf16.xpose.msra.mxu0 0
  %1697 = vmatprep.subr.bf16.mxu0 0
  %1698 = vmatpush2.bf16.xpose.msra.mxu0 0
  %1699 = vmatprep.mubr.bf16.mxu0 0
  %1700 = vmatmul.mubr.bf16.gmra.mxu0 %v1656
  %v1701 = vpop.f32.mrf.mxu0
  %v1702 = vadd.f32 %v671, %v1701
  %v1703 = vpop.f32.mrf.mxu0
  %v1704 = vpop.f32.mrf.mxu0
  %v1705 = vadd.f32 %v672, %v1704
  %v1706 = vpop.f32.mrf.mxu0
  %1707 = vmatprep.mubr.bf16.mxu0 0
  %1708 = vmatmul.mubr.bf16.gmra.mxu0 %v1659
  %v1709 = vpop.f32.mrf.mxu0
  %v1710 = vadd.f32 %v673, %v1709
  %v1711 = vpop.f32.mrf.mxu0
  %v1712 = vpop.f32.mrf.mxu0
  %v1713 = vadd.f32 %v674, %v1712
  %v1714 = vpop.f32.mrf.mxu0
  %1715 = vdwg.mxu0
  %1716 = vrot.lane.b32.xlu0 %v437, 64
  %v1717 = vpop.permute.xlu0 %1716
  %1718 = vrot.lane.b32.xlu0 %v439, 64
  %v1719 = vpop.permute.xlu0 %1718
  %v1721 = vsel %vm679, %v437, 0
  %v1724 = vsel %vm679, %v439, 0
  %v1727 = vsel %vm679, %v1717, 0
  %v1730 = vsel %vm679, %v1719, 0
  %1732 = vmatprep.subr.bf16.mxu0 0
  %1733 = vmatpush1.bf16.xpose.msra.mxu0 0
  %1734 = vmatprep.subr.bf16.mxu0 0
  %1735 = vmatpush1.bf16.xpose.msra.mxu0 0
  %1736 = vmatprep.subr.bf16.mxu0 0
  %1737 = vmatpush1.bf16.xpose.msra.mxu0 0
  %1738 = vmatprep.subr.bf16.mxu0 0
  %1739 = vmatpush1.bf16.xpose.msra.mxu0 0
  %1740 = vmatprep.subr.bf16.mxu0 0
  %1741 = vmatpush1.bf16.xpose.msra.mxu0 0
  %1742 = vmatprep.subr.bf16.mxu0 0
  %1743 = vmatpush1.bf16.xpose.msra.mxu0 0
  %1744 = vmatprep.subr.bf16.mxu0 0
  %1745 = vmatpush1.bf16.xpose.msra.mxu0 %v1730
  %1746 = vmatprep.subr.bf16.mxu0 0
  %1747 = vmatpush1.bf16.xpose.msra.mxu0 %v1727
  %1748 = vmatprep.subr.bf16.mxu0 0
  %1749 = vmatpush2.bf16.xpose.msra.mxu0 0
  %1750 = vmatprep.subr.bf16.mxu0 0
  %1751 = vmatpush2.bf16.xpose.msra.mxu0 0
  %1752 = vmatprep.subr.bf16.mxu0 0
  %1753 = vmatpush2.bf16.xpose.msra.mxu0 0
  %1754 = vmatprep.subr.bf16.mxu0 0
  %1755 = vmatpush2.bf16.xpose.msra.mxu0 0
  %1756 = vmatprep.subr.bf16.mxu0 0
  %1757 = vmatpush2.bf16.xpose.msra.mxu0 0
  %1758 = vmatprep.subr.bf16.mxu0 0
  %1759 = vmatpush2.bf16.xpose.msra.mxu0 0
  %1760 = vmatprep.subr.bf16.mxu0 0
  %1761 = vmatpush2.bf16.xpose.msra.mxu0 0
  %1762 = vmatprep.subr.bf16.mxu0 0
  %1763 = vmatpush2.bf16.xpose.msra.mxu0 0
  %1764 = vmatprep.mubr.bf16.mxu0 0
  %1765 = vmatmul.mubr.bf16.gmra.mxu0 %v1721
  %v1766 = vpop.f32.mrf.mxu0
  %v1767 = vadd.f32 %v671, %v1766
  %v1768 = vpop.f32.mrf.mxu0
  %v1769 = vpop.f32.mrf.mxu0
  %v1770 = vadd.f32 %v672, %v1769
  %v1771 = vpop.f32.mrf.mxu0
  %1772 = vmatprep.mubr.bf16.mxu0 0
  %1773 = vmatmul.mubr.bf16.gmra.mxu0 %v1724
  %v1774 = vpop.f32.mrf.mxu0
  %v1775 = vadd.f32 %v673, %v1774
  %v1776 = vpop.f32.mrf.mxu0
  %v1777 = vpop.f32.mrf.mxu0
  %v1778 = vadd.f32 %v674, %v1777
  %v1779 = vpop.f32.mrf.mxu0
  %1780 = vdwg.mxu0
  %1781 = vrot.lane.b32.xlu0 %v441, 64
  %v1782 = vpop.permute.xlu0 %1781
  %1783 = vrot.lane.b32.xlu0 %v443, 64
  %v1784 = vpop.permute.xlu0 %1783
  %v1786 = vsel %vm679, %v441, 0
  %v1789 = vsel %vm679, %v443, 0
  %v1792 = vsel %vm679, %v1782, 0
  %v1795 = vsel %vm679, %v1784, 0
  %1797 = vmatprep.subr.bf16.mxu0 0
  %1798 = vmatpush1.bf16.xpose.msra.mxu0 0
  %1799 = vmatprep.subr.bf16.mxu0 0
  %1800 = vmatpush1.bf16.xpose.msra.mxu0 0
  %1801 = vmatprep.subr.bf16.mxu0 0
  %1802 = vmatpush1.bf16.xpose.msra.mxu0 0
  %1803 = vmatprep.subr.bf16.mxu0 0
  %1804 = vmatpush1.bf16.xpose.msra.mxu0 0
  %1805 = vmatprep.subr.bf16.mxu0 0
  %1806 = vmatpush1.bf16.xpose.msra.mxu0 0
  %1807 = vmatprep.subr.bf16.mxu0 0
  %1808 = vmatpush1.bf16.xpose.msra.mxu0 0
  %1809 = vmatprep.subr.bf16.mxu0 0
  %1810 = vmatpush1.bf16.xpose.msra.mxu0 %v1795
  %1811 = vmatprep.subr.bf16.mxu0 0
  %1812 = vmatpush1.bf16.xpose.msra.mxu0 %v1792
  %1813 = vmatprep.subr.bf16.mxu0 0
  %1814 = vmatpush2.bf16.xpose.msra.mxu0 0
  %1815 = vmatprep.subr.bf16.mxu0 0
  %1816 = vmatpush2.bf16.xpose.msra.mxu0 0
  %1817 = vmatprep.subr.bf16.mxu0 0
  %1818 = vmatpush2.bf16.xpose.msra.mxu0 0
  %1819 = vmatprep.subr.bf16.mxu0 0
  %1820 = vmatpush2.bf16.xpose.msra.mxu0 0
  %1821 = vmatprep.subr.bf16.mxu0 0
  %1822 = vmatpush2.bf16.xpose.msra.mxu0 0
  %1823 = vmatprep.subr.bf16.mxu0 0
  %1824 = vmatpush2.bf16.xpose.msra.mxu0 0
  %1825 = vmatprep.subr.bf16.mxu0 0
  %1826 = vmatpush2.bf16.xpose.msra.mxu0 0
  %1827 = vmatprep.subr.bf16.mxu0 0
  %1828 = vmatpush2.bf16.xpose.msra.mxu0 0
  %1829 = vmatprep.mubr.bf16.mxu0 0
  %1830 = vmatmul.mubr.bf16.gmra.mxu0 %v1786
  %v1831 = vpop.f32.mrf.mxu0
  %v1832 = vadd.f32 %v671, %v1831
  %v1833 = vpop.f32.mrf.mxu0
  %v1834 = vpop.f32.mrf.mxu0
  %v1835 = vadd.f32 %v672, %v1834
  %v1836 = vpop.f32.mrf.mxu0
  %1837 = vmatprep.mubr.bf16.mxu0 0
  %1838 = vmatmul.mubr.bf16.gmra.mxu0 %v1789
  %v1839 = vpop.f32.mrf.mxu0
  %v1840 = vadd.f32 %v673, %v1839
  %v1841 = vpop.f32.mrf.mxu0
  %v1842 = vpop.f32.mrf.mxu0
  %v1843 = vadd.f32 %v674, %v1842
  %v1844 = vpop.f32.mrf.mxu0
  %1845 = vdwg.mxu0
  %1846 = vrot.lane.b32.xlu0 %v445, 64
  %v1847 = vpop.permute.xlu0 %1846
  %1848 = vrot.lane.b32.xlu0 %v447, 64
  %v1849 = vpop.permute.xlu0 %1848
  %v1851 = vsel %vm679, %v445, 0
  %v1854 = vsel %vm679, %v447, 0
  %v1857 = vsel %vm679, %v1847, 0
  %v1860 = vsel %vm679, %v1849, 0
  %1862 = vmatprep.subr.bf16.mxu0 0
  %1863 = vmatpush1.bf16.xpose.msra.mxu0 0
  %1864 = vmatprep.subr.bf16.mxu0 0
  %1865 = vmatpush1.bf16.xpose.msra.mxu0 0
  %1866 = vmatprep.subr.bf16.mxu0 0
  %1867 = vmatpush1.bf16.xpose.msra.mxu0 0
  %1868 = vmatprep.subr.bf16.mxu0 0
  %1869 = vmatpush1.bf16.xpose.msra.mxu0 0
  %1870 = vmatprep.subr.bf16.mxu0 0
  %1871 = vmatpush1.bf16.xpose.msra.mxu0 0
  %1872 = vmatprep.subr.bf16.mxu0 0
  %1873 = vmatpush1.bf16.xpose.msra.mxu0 0
  %1874 = vmatprep.subr.bf16.mxu0 0
  %1875 = vmatpush1.bf16.xpose.msra.mxu0 %v1860
  %1876 = vmatprep.subr.bf16.mxu0 0
  %1877 = vmatpush1.bf16.xpose.msra.mxu0 %v1857
  %1878 = vmatprep.subr.bf16.mxu0 0
  %1879 = vmatpush2.bf16.xpose.msra.mxu0 0
  %1880 = vmatprep.subr.bf16.mxu0 0
  %1881 = vmatpush2.bf16.xpose.msra.mxu0 0
  %1882 = vmatprep.subr.bf16.mxu0 0
  %1883 = vmatpush2.bf16.xpose.msra.mxu0 0
  %1884 = vmatprep.subr.bf16.mxu0 0
  %1885 = vmatpush2.bf16.xpose.msra.mxu0 0
  %1886 = vmatprep.subr.bf16.mxu0 0
  %1887 = vmatpush2.bf16.xpose.msra.mxu0 0
  %1888 = vmatprep.subr.bf16.mxu0 0
  %1889 = vmatpush2.bf16.xpose.msra.mxu0 0
  %1890 = vmatprep.subr.bf16.mxu0 0
  %1891 = vmatpush2.bf16.xpose.msra.mxu0 0
  %1892 = vmatprep.subr.bf16.mxu0 0
  %1893 = vmatpush2.bf16.xpose.msra.mxu0 0
  %1894 = vmatprep.mubr.bf16.mxu0 0
  %1895 = vmatmul.mubr.bf16.gmra.mxu0 %v1851
  %v1896 = vpop.f32.mrf.mxu0
  %v1897 = vadd.f32 %v671, %v1896
  %v1898 = vpop.f32.mrf.mxu0
  %v1899 = vpop.f32.mrf.mxu0
  %v1900 = vadd.f32 %v672, %v1899
  %v1901 = vpop.f32.mrf.mxu0
  %1902 = vmatprep.mubr.bf16.mxu0 0
  %1903 = vmatmul.mubr.bf16.gmra.mxu0 %v1854
  %v1904 = vpop.f32.mrf.mxu0
  %v1905 = vadd.f32 %v673, %v1904
  %v1906 = vpop.f32.mrf.mxu0
  %v1907 = vpop.f32.mrf.mxu0
  %v1908 = vadd.f32 %v674, %v1907
  %v1909 = vpop.f32.mrf.mxu0
  %1910 = vdwg.mxu0
  %1911 = vrot.lane.b32.xlu0 %v449, 64
  %v1912 = vpop.permute.xlu0 %1911
  %1913 = vrot.lane.b32.xlu0 %v451, 64
  %v1914 = vpop.permute.xlu0 %1913
  %v1916 = vsel %vm679, %v449, 0
  %v1919 = vsel %vm679, %v451, 0
  %v1922 = vsel %vm679, %v1912, 0
  %v1925 = vsel %vm679, %v1914, 0
  %1927 = vmatprep.subr.bf16.mxu0 0
  %1928 = vmatpush1.bf16.xpose.msra.mxu0 0
  %1929 = vmatprep.subr.bf16.mxu0 0
  %1930 = vmatpush1.bf16.xpose.msra.mxu0 0
  %1931 = vmatprep.subr.bf16.mxu0 0
  %1932 = vmatpush1.bf16.xpose.msra.mxu0 0
  %1933 = vmatprep.subr.bf16.mxu0 0
  %1934 = vmatpush1.bf16.xpose.msra.mxu0 0
  %1935 = vmatprep.subr.bf16.mxu0 0
  %1936 = vmatpush1.bf16.xpose.msra.mxu0 0
  %1937 = vmatprep.subr.bf16.mxu0 0
  %1938 = vmatpush1.bf16.xpose.msra.mxu0 0
  %1939 = vmatprep.subr.bf16.mxu0 0
  %1940 = vmatpush1.bf16.xpose.msra.mxu0 %v1925
  %1941 = vmatprep.subr.bf16.mxu0 0
  %1942 = vmatpush1.bf16.xpose.msra.mxu0 %v1922
  %1943 = vmatprep.subr.bf16.mxu0 0
  %1944 = vmatpush2.bf16.xpose.msra.mxu0 0
  %1945 = vmatprep.subr.bf16.mxu0 0
  %1946 = vmatpush2.bf16.xpose.msra.mxu0 0
  %1947 = vmatprep.subr.bf16.mxu0 0
  %1948 = vmatpush2.bf16.xpose.msra.mxu0 0
  %1949 = vmatprep.subr.bf16.mxu0 0
  %1950 = vmatpush2.bf16.xpose.msra.mxu0 0
  %1951 = vmatprep.subr.bf16.mxu0 0
  %1952 = vmatpush2.bf16.xpose.msra.mxu0 0
  %1953 = vmatprep.subr.bf16.mxu0 0
  %1954 = vmatpush2.bf16.xpose.msra.mxu0 0
  %1955 = vmatprep.subr.bf16.mxu0 0
  %1956 = vmatpush2.bf16.xpose.msra.mxu0 0
  %1957 = vmatprep.subr.bf16.mxu0 0
  %1958 = vmatpush2.bf16.xpose.msra.mxu0 0
  %1959 = vmatprep.mubr.bf16.mxu0 0
  %1960 = vmatmul.mubr.bf16.gmra.mxu0 %v1916
  %v1961 = vpop.f32.mrf.mxu0
  %v1962 = vadd.f32 %v671, %v1961
  %v1963 = vpop.f32.mrf.mxu0
  %v1964 = vpop.f32.mrf.mxu0
  %v1965 = vadd.f32 %v672, %v1964
  %v1966 = vpop.f32.mrf.mxu0
  %1967 = vmatprep.mubr.bf16.mxu0 0
  %1968 = vmatmul.mubr.bf16.gmra.mxu0 %v1919
  %v1969 = vpop.f32.mrf.mxu0
  %v1970 = vadd.f32 %v673, %v1969
  %v1971 = vpop.f32.mrf.mxu0
  %v1972 = vpop.f32.mrf.mxu0
  %v1973 = vadd.f32 %v674, %v1972
  %v1974 = vpop.f32.mrf.mxu0
  %1975 = vdwg.mxu0
  %1976 = vrot.lane.b32.xlu0 %v453, 64
  %v1977 = vpop.permute.xlu0 %1976
  %1978 = vrot.lane.b32.xlu0 %v455, 64
  %v1979 = vpop.permute.xlu0 %1978
  %v1981 = vsel %vm679, %v453, 0
  %v1984 = vsel %vm679, %v455, 0
  %v1987 = vsel %vm679, %v1977, 0
  %v1990 = vsel %vm679, %v1979, 0
  %1992 = vmatprep.subr.bf16.mxu0 0
  %1993 = vmatpush1.bf16.xpose.msra.mxu0 0
  %1994 = vmatprep.subr.bf16.mxu0 0
  %1995 = vmatpush1.bf16.xpose.msra.mxu0 0
  %1996 = vmatprep.subr.bf16.mxu0 0
  %1997 = vmatpush1.bf16.xpose.msra.mxu0 0
  %1998 = vmatprep.subr.bf16.mxu0 0
  %1999 = vmatpush1.bf16.xpose.msra.mxu0 0
  %2000 = vmatprep.subr.bf16.mxu0 0
  %2001 = vmatpush1.bf16.xpose.msra.mxu0 0
  %2002 = vmatprep.subr.bf16.mxu0 0
  %2003 = vmatpush1.bf16.xpose.msra.mxu0 0
  %2004 = vmatprep.subr.bf16.mxu0 0
  %2005 = vmatpush1.bf16.xpose.msra.mxu0 %v1990
  %2006 = vmatprep.subr.bf16.mxu0 0
  %2007 = vmatpush1.bf16.xpose.msra.mxu0 %v1987
  %2008 = vmatprep.subr.bf16.mxu0 0
  %2009 = vmatpush2.bf16.xpose.msra.mxu0 0
  %2010 = vmatprep.subr.bf16.mxu0 0
  %2011 = vmatpush2.bf16.xpose.msra.mxu0 0
  %2012 = vmatprep.subr.bf16.mxu0 0
  %2013 = vmatpush2.bf16.xpose.msra.mxu0 0
  %2014 = vmatprep.subr.bf16.mxu0 0
  %2015 = vmatpush2.bf16.xpose.msra.mxu0 0
  %2016 = vmatprep.subr.bf16.mxu0 0
  %2017 = vmatpush2.bf16.xpose.msra.mxu0 0
  %2018 = vmatprep.subr.bf16.mxu0 0
  %2019 = vmatpush2.bf16.xpose.msra.mxu0 0
  %2020 = vmatprep.subr.bf16.mxu0 0
  %2021 = vmatpush2.bf16.xpose.msra.mxu0 0
  %2022 = vmatprep.subr.bf16.mxu0 0
  %2023 = vmatpush2.bf16.xpose.msra.mxu0 0
  %2024 = vmatprep.mubr.bf16.mxu0 0
  %2025 = vmatmul.mubr.bf16.gmra.mxu0 %v1981
  %v2026 = vpop.f32.mrf.mxu0
  %v2027 = vadd.f32 %v671, %v2026
  %v2028 = vpop.f32.mrf.mxu0
  %v2029 = vpop.f32.mrf.mxu0
  %v2030 = vadd.f32 %v672, %v2029
  %v2031 = vpop.f32.mrf.mxu0
  %2032 = vmatprep.mubr.bf16.mxu0 0
  %2033 = vmatmul.mubr.bf16.gmra.mxu0 %v1984
  %v2034 = vpop.f32.mrf.mxu0
  %v2035 = vadd.f32 %v673, %v2034
  %v2036 = vpop.f32.mrf.mxu0
  %v2037 = vpop.f32.mrf.mxu0
  %v2038 = vadd.f32 %v674, %v2037
  %v2039 = vpop.f32.mrf.mxu0
  %2040 = vdwg.mxu0
  %2041 = vrot.lane.b32.xlu0 %v457, 64
  %v2042 = vpop.permute.xlu0 %2041
  %2043 = vrot.lane.b32.xlu0 %v459, 64
  %v2044 = vpop.permute.xlu0 %2043
  %v2046 = vsel %vm679, %v457, 0
  %v2049 = vsel %vm679, %v459, 0
  %v2052 = vsel %vm679, %v2042, 0
  %v2055 = vsel %vm679, %v2044, 0
  %2057 = vmatprep.subr.bf16.mxu0 0
  %2058 = vmatpush1.bf16.xpose.msra.mxu0 0
  %2059 = vmatprep.subr.bf16.mxu0 0
  %2060 = vmatpush1.bf16.xpose.msra.mxu0 0
  %2061 = vmatprep.subr.bf16.mxu0 0
  %2062 = vmatpush1.bf16.xpose.msra.mxu0 0
  %2063 = vmatprep.subr.bf16.mxu0 0
  %2064 = vmatpush1.bf16.xpose.msra.mxu0 0
  %2065 = vmatprep.subr.bf16.mxu0 0
  %2066 = vmatpush1.bf16.xpose.msra.mxu0 0
  %2067 = vmatprep.subr.bf16.mxu0 0
  %2068 = vmatpush1.bf16.xpose.msra.mxu0 0
  %2069 = vmatprep.subr.bf16.mxu0 0
  %2070 = vmatpush1.bf16.xpose.msra.mxu0 %v2055
  %2071 = vmatprep.subr.bf16.mxu0 0
  %2072 = vmatpush1.bf16.xpose.msra.mxu0 %v2052
  %2073 = vmatprep.subr.bf16.mxu0 0
  %2074 = vmatpush2.bf16.xpose.msra.mxu0 0
  %2075 = vmatprep.subr.bf16.mxu0 0
  %2076 = vmatpush2.bf16.xpose.msra.mxu0 0
  %2077 = vmatprep.subr.bf16.mxu0 0
  %2078 = vmatpush2.bf16.xpose.msra.mxu0 0
  %2079 = vmatprep.subr.bf16.mxu0 0
  %2080 = vmatpush2.bf16.xpose.msra.mxu0 0
  %2081 = vmatprep.subr.bf16.mxu0 0
  %2082 = vmatpush2.bf16.xpose.msra.mxu0 0
  %2083 = vmatprep.subr.bf16.mxu0 0
  %2084 = vmatpush2.bf16.xpose.msra.mxu0 0
  %2085 = vmatprep.subr.bf16.mxu0 0
  %2086 = vmatpush2.bf16.xpose.msra.mxu0 0
  %2087 = vmatprep.subr.bf16.mxu0 0
  %2088 = vmatpush2.bf16.xpose.msra.mxu0 0
  %2089 = vmatprep.mubr.bf16.mxu0 0
  %2090 = vmatmul.mubr.bf16.gmra.mxu0 %v2046
  %v2091 = vpop.f32.mrf.mxu0
  %v2092 = vadd.f32 %v671, %v2091
  %v2093 = vpop.f32.mrf.mxu0
  %v2094 = vpop.f32.mrf.mxu0
  %v2095 = vadd.f32 %v672, %v2094
  %v2096 = vpop.f32.mrf.mxu0
  %2097 = vmatprep.mubr.bf16.mxu0 0
  %2098 = vmatmul.mubr.bf16.gmra.mxu0 %v2049
  %v2099 = vpop.f32.mrf.mxu0
  %v2100 = vadd.f32 %v673, %v2099
  %v2101 = vpop.f32.mrf.mxu0
  %v2102 = vpop.f32.mrf.mxu0
  %v2103 = vadd.f32 %v674, %v2102
  %v2104 = vpop.f32.mrf.mxu0
  %2105 = vdwg.mxu0
  %2106 = vrot.lane.b32.xlu0 %v461, 64
  %v2107 = vpop.permute.xlu0 %2106
  %2108 = vrot.lane.b32.xlu0 %v463, 64
  %v2109 = vpop.permute.xlu0 %2108
  %v2111 = vsel %vm679, %v461, 0
  %v2114 = vsel %vm679, %v463, 0
  %v2117 = vsel %vm679, %v2107, 0
  %v2120 = vsel %vm679, %v2109, 0
  %2122 = vmatprep.subr.bf16.mxu0 0
  %2123 = vmatpush1.bf16.xpose.msra.mxu0 0
  %2124 = vmatprep.subr.bf16.mxu0 0
  %2125 = vmatpush1.bf16.xpose.msra.mxu0 0
  %2126 = vmatprep.subr.bf16.mxu0 0
  %2127 = vmatpush1.bf16.xpose.msra.mxu0 0
  %2128 = vmatprep.subr.bf16.mxu0 0
  %2129 = vmatpush1.bf16.xpose.msra.mxu0 0
  %2130 = vmatprep.subr.bf16.mxu0 0
  %2131 = vmatpush1.bf16.xpose.msra.mxu0 0
  %2132 = vmatprep.subr.bf16.mxu0 0
  %2133 = vmatpush1.bf16.xpose.msra.mxu0 0
  %2134 = vmatprep.subr.bf16.mxu0 0
  %2135 = vmatpush1.bf16.xpose.msra.mxu0 %v2120
  %2136 = vmatprep.subr.bf16.mxu0 0
  %2137 = vmatpush1.bf16.xpose.msra.mxu0 %v2117
  %2138 = vmatprep.subr.bf16.mxu0 0
  %2139 = vmatpush2.bf16.xpose.msra.mxu0 0
  %2140 = vmatprep.subr.bf16.mxu0 0
  %2141 = vmatpush2.bf16.xpose.msra.mxu0 0
  %2142 = vmatprep.subr.bf16.mxu0 0
  %2143 = vmatpush2.bf16.xpose.msra.mxu0 0
  %2144 = vmatprep.subr.bf16.mxu0 0
  %2145 = vmatpush2.bf16.xpose.msra.mxu0 0
  %2146 = vmatprep.subr.bf16.mxu0 0
  %2147 = vmatpush2.bf16.xpose.msra.mxu0 0
  %2148 = vmatprep.subr.bf16.mxu0 0
  %2149 = vmatpush2.bf16.xpose.msra.mxu0 0
  %2150 = vmatprep.subr.bf16.mxu0 0
  %2151 = vmatpush2.bf16.xpose.msra.mxu0 0
  %2152 = vmatprep.subr.bf16.mxu0 0
  %2153 = vmatpush2.bf16.xpose.msra.mxu0 0
  %2154 = vmatprep.mubr.bf16.mxu0 0
  %2155 = vmatmul.mubr.bf16.gmra.mxu0 %v2111
  %v2156 = vpop.f32.mrf.mxu0
  %v2157 = vadd.f32 %v671, %v2156
  %v2158 = vpop.f32.mrf.mxu0
  %v2159 = vpop.f32.mrf.mxu0
  %v2160 = vadd.f32 %v672, %v2159
  %v2161 = vpop.f32.mrf.mxu0
  %2162 = vmatprep.mubr.bf16.mxu0 0
  %2163 = vmatmul.mubr.bf16.gmra.mxu0 %v2114
  %v2164 = vpop.f32.mrf.mxu0
  %v2165 = vadd.f32 %v673, %v2164
  %v2166 = vpop.f32.mrf.mxu0
  %v2167 = vpop.f32.mrf.mxu0
  %v2168 = vadd.f32 %v674, %v2167
  %v2169 = vpop.f32.mrf.mxu0
  %2170 = vdwg.mxu0
  %2171 = vrot.lane.b32.xlu0 %v465, 64
  %v2172 = vpop.permute.xlu0 %2171
  %2173 = vrot.lane.b32.xlu0 %v467, 64
  %v2174 = vpop.permute.xlu0 %2173
  %v2176 = vsel %vm679, %v465, 0
  %v2179 = vsel %vm679, %v467, 0
  %v2182 = vsel %vm679, %v2172, 0
  %v2185 = vsel %vm679, %v2174, 0
  %2187 = vmatprep.subr.bf16.mxu0 0
  %2188 = vmatpush1.bf16.xpose.msra.mxu0 0
  %2189 = vmatprep.subr.bf16.mxu0 0
  %2190 = vmatpush1.bf16.xpose.msra.mxu0 0
  %2191 = vmatprep.subr.bf16.mxu0 0
  %2192 = vmatpush1.bf16.xpose.msra.mxu0 0
  %2193 = vmatprep.subr.bf16.mxu0 0
  %2194 = vmatpush1.bf16.xpose.msra.mxu0 0
  %2195 = vmatprep.subr.bf16.mxu0 0
  %2196 = vmatpush1.bf16.xpose.msra.mxu0 0
  %2197 = vmatprep.subr.bf16.mxu0 0
  %2198 = vmatpush1.bf16.xpose.msra.mxu0 0
  %2199 = vmatprep.subr.bf16.mxu0 0
  %2200 = vmatpush1.bf16.xpose.msra.mxu0 %v2185
  %2201 = vmatprep.subr.bf16.mxu0 0
  %2202 = vmatpush1.bf16.xpose.msra.mxu0 %v2182
  %2203 = vmatprep.subr.bf16.mxu0 0
  %2204 = vmatpush2.bf16.xpose.msra.mxu0 0
  %2205 = vmatprep.subr.bf16.mxu0 0
  %2206 = vmatpush2.bf16.xpose.msra.mxu0 0
  %2207 = vmatprep.subr.bf16.mxu0 0
  %2208 = vmatpush2.bf16.xpose.msra.mxu0 0
  %2209 = vmatprep.subr.bf16.mxu0 0
  %2210 = vmatpush2.bf16.xpose.msra.mxu0 0
  %2211 = vmatprep.subr.bf16.mxu0 0
  %2212 = vmatpush2.bf16.xpose.msra.mxu0 0
  %2213 = vmatprep.subr.bf16.mxu0 0
  %2214 = vmatpush2.bf16.xpose.msra.mxu0 0
  %2215 = vmatprep.subr.bf16.mxu0 0
  %2216 = vmatpush2.bf16.xpose.msra.mxu0 0
  %2217 = vmatprep.subr.bf16.mxu0 0
  %2218 = vmatpush2.bf16.xpose.msra.mxu0 0
  %2219 = vmatprep.mubr.bf16.mxu0 0
  %2220 = vmatmul.mubr.bf16.gmra.mxu0 %v2176
  %v2221 = vpop.f32.mrf.mxu0
  %v2222 = vadd.f32 %v671, %v2221
  %v2223 = vpop.f32.mrf.mxu0
  %v2224 = vpop.f32.mrf.mxu0
  %v2225 = vadd.f32 %v672, %v2224
  %v2226 = vpop.f32.mrf.mxu0
  %2227 = vmatprep.mubr.bf16.mxu0 0
  %2228 = vmatmul.mubr.bf16.gmra.mxu0 %v2179
  %v2229 = vpop.f32.mrf.mxu0
  %v2230 = vadd.f32 %v673, %v2229
  %v2231 = vpop.f32.mrf.mxu0
  %v2232 = vpop.f32.mrf.mxu0
  %v2233 = vadd.f32 %v674, %v2232
  %v2234 = vpop.f32.mrf.mxu0
  %2235 = vdwg.mxu0
  %2236 = vrot.lane.b32.xlu0 %v469, 64
  %v2237 = vpop.permute.xlu0 %2236
  %2238 = vrot.lane.b32.xlu0 %v471, 64
  %v2239 = vpop.permute.xlu0 %2238
  %v2241 = vsel %vm679, %v469, 0
  %v2244 = vsel %vm679, %v471, 0
  %v2247 = vsel %vm679, %v2237, 0
  %v2250 = vsel %vm679, %v2239, 0
  %2252 = vmatprep.subr.bf16.mxu0 0
  %2253 = vmatpush1.bf16.xpose.msra.mxu0 0
  %2254 = vmatprep.subr.bf16.mxu0 0
  %2255 = vmatpush1.bf16.xpose.msra.mxu0 0
  %2256 = vmatprep.subr.bf16.mxu0 0
  %2257 = vmatpush1.bf16.xpose.msra.mxu0 0
  %2258 = vmatprep.subr.bf16.mxu0 0
  %2259 = vmatpush1.bf16.xpose.msra.mxu0 0
  %2260 = vmatprep.subr.bf16.mxu0 0
  %2261 = vmatpush1.bf16.xpose.msra.mxu0 0
  %2262 = vmatprep.subr.bf16.mxu0 0
  %2263 = vmatpush1.bf16.xpose.msra.mxu0 0
  %2264 = vmatprep.subr.bf16.mxu0 0
  %2265 = vmatpush1.bf16.xpose.msra.mxu0 %v2250
  %2266 = vmatprep.subr.bf16.mxu0 0
  %2267 = vmatpush1.bf16.xpose.msra.mxu0 %v2247
  %2268 = vmatprep.subr.bf16.mxu0 0
  %2269 = vmatpush2.bf16.xpose.msra.mxu0 0
  %2270 = vmatprep.subr.bf16.mxu0 0
  %2271 = vmatpush2.bf16.xpose.msra.mxu0 0
  %2272 = vmatprep.subr.bf16.mxu0 0
  %2273 = vmatpush2.bf16.xpose.msra.mxu0 0
  %2274 = vmatprep.subr.bf16.mxu0 0
  %2275 = vmatpush2.bf16.xpose.msra.mxu0 0
  %2276 = vmatprep.subr.bf16.mxu0 0
  %2277 = vmatpush2.bf16.xpose.msra.mxu0 0
  %2278 = vmatprep.subr.bf16.mxu0 0
  %2279 = vmatpush2.bf16.xpose.msra.mxu0 0
  %2280 = vmatprep.subr.bf16.mxu0 0
  %2281 = vmatpush2.bf16.xpose.msra.mxu0 0
  %2282 = vmatprep.subr.bf16.mxu0 0
  %2283 = vmatpush2.bf16.xpose.msra.mxu0 0
  %2284 = vmatprep.mubr.bf16.mxu0 0
  %2285 = vmatmul.mubr.bf16.gmra.mxu0 %v2241
  %v2286 = vpop.f32.mrf.mxu0
  %v2287 = vadd.f32 %v671, %v2286
  %v2288 = vpop.f32.mrf.mxu0
  %v2289 = vpop.f32.mrf.mxu0
  %v2290 = vadd.f32 %v672, %v2289
  %v2291 = vpop.f32.mrf.mxu0
  %2292 = vmatprep.mubr.bf16.mxu0 0
  %2293 = vmatmul.mubr.bf16.gmra.mxu0 %v2244
  %v2294 = vpop.f32.mrf.mxu0
  %v2295 = vadd.f32 %v673, %v2294
  %v2296 = vpop.f32.mrf.mxu0
  %v2297 = vpop.f32.mrf.mxu0
  %v2298 = vadd.f32 %v674, %v2297
  %v2299 = vpop.f32.mrf.mxu0
  %2300 = vdwg.mxu0
  %2301 = vrot.lane.b32.xlu0 %v473, 64
  %v2302 = vpop.permute.xlu0 %2301
  %2303 = vrot.lane.b32.xlu0 %v475, 64
  %v2304 = vpop.permute.xlu0 %2303
  %v2306 = vsel %vm679, %v473, 0
  %v2309 = vsel %vm679, %v475, 0
  %v2312 = vsel %vm679, %v2302, 0
  %v2315 = vsel %vm679, %v2304, 0
  %2317 = vmatprep.subr.bf16.mxu0 0
  %2318 = vmatpush1.bf16.xpose.msra.mxu0 0
  %2319 = vmatprep.subr.bf16.mxu0 0
  %2320 = vmatpush1.bf16.xpose.msra.mxu0 0
  %2321 = vmatprep.subr.bf16.mxu0 0
  %2322 = vmatpush1.bf16.xpose.msra.mxu0 0
  %2323 = vmatprep.subr.bf16.mxu0 0
  %2324 = vmatpush1.bf16.xpose.msra.mxu0 0
  %2325 = vmatprep.subr.bf16.mxu0 0
  %2326 = vmatpush1.bf16.xpose.msra.mxu0 0
  %2327 = vmatprep.subr.bf16.mxu0 0
  %2328 = vmatpush1.bf16.xpose.msra.mxu0 0
  %2329 = vmatprep.subr.bf16.mxu0 0
  %2330 = vmatpush1.bf16.xpose.msra.mxu0 %v2315
  %2331 = vmatprep.subr.bf16.mxu0 0
  %2332 = vmatpush1.bf16.xpose.msra.mxu0 %v2312
  %2333 = vmatprep.subr.bf16.mxu0 0
  %2334 = vmatpush2.bf16.xpose.msra.mxu0 0
  %2335 = vmatprep.subr.bf16.mxu0 0
  %2336 = vmatpush2.bf16.xpose.msra.mxu0 0
  %2337 = vmatprep.subr.bf16.mxu0 0
  %2338 = vmatpush2.bf16.xpose.msra.mxu0 0
  %2339 = vmatprep.subr.bf16.mxu0 0
  %2340 = vmatpush2.bf16.xpose.msra.mxu0 0
  %2341 = vmatprep.subr.bf16.mxu0 0
  %2342 = vmatpush2.bf16.xpose.msra.mxu0 0
  %2343 = vmatprep.subr.bf16.mxu0 0
  %2344 = vmatpush2.bf16.xpose.msra.mxu0 0
  %2345 = vmatprep.subr.bf16.mxu0 0
  %2346 = vmatpush2.bf16.xpose.msra.mxu0 0
  %2347 = vmatprep.subr.bf16.mxu0 0
  %2348 = vmatpush2.bf16.xpose.msra.mxu0 0
  %2349 = vmatprep.mubr.bf16.mxu0 0
  %2350 = vmatmul.mubr.bf16.gmra.mxu0 %v2306
  %v2351 = vpop.f32.mrf.mxu0
  %v2352 = vadd.f32 %v671, %v2351
  %v2353 = vpop.f32.mrf.mxu0
  %v2354 = vpop.f32.mrf.mxu0
  %v2355 = vadd.f32 %v672, %v2354
  %v2356 = vpop.f32.mrf.mxu0
  %2357 = vmatprep.mubr.bf16.mxu0 0
  %2358 = vmatmul.mubr.bf16.gmra.mxu0 %v2309
  %v2359 = vpop.f32.mrf.mxu0
  %v2360 = vadd.f32 %v673, %v2359
  %v2361 = vpop.f32.mrf.mxu0
  %v2362 = vpop.f32.mrf.mxu0
  %v2363 = vadd.f32 %v674, %v2362
  %v2364 = vpop.f32.mrf.mxu0
  %2365 = vdwg.mxu0
  %2366 = vrot.lane.b32.xlu0 %v477, 64
  %v2367 = vpop.permute.xlu0 %2366
  %2368 = vrot.lane.b32.xlu0 %v479, 64
  %v2369 = vpop.permute.xlu0 %2368
  %v2371 = vsel %vm679, %v477, 0
  %v2374 = vsel %vm679, %v479, 0
  %v2377 = vsel %vm679, %v2367, 0
  %v2380 = vsel %vm679, %v2369, 0
  %2382 = vmatprep.subr.bf16.mxu0 0
  %2383 = vmatpush1.bf16.xpose.msra.mxu0 0
  %2384 = vmatprep.subr.bf16.mxu0 0
  %2385 = vmatpush1.bf16.xpose.msra.mxu0 0
  %2386 = vmatprep.subr.bf16.mxu0 0
  %2387 = vmatpush1.bf16.xpose.msra.mxu0 0
  %2388 = vmatprep.subr.bf16.mxu0 0
  %2389 = vmatpush1.bf16.xpose.msra.mxu0 0
  %2390 = vmatprep.subr.bf16.mxu0 0
  %2391 = vmatpush1.bf16.xpose.msra.mxu0 0
  %2392 = vmatprep.subr.bf16.mxu0 0
  %2393 = vmatpush1.bf16.xpose.msra.mxu0 0
  %2394 = vmatprep.subr.bf16.mxu0 0
  %2395 = vmatpush1.bf16.xpose.msra.mxu0 %v2380
  %2396 = vmatprep.subr.bf16.mxu0 0
  %2397 = vmatpush1.bf16.xpose.msra.mxu0 %v2377
  %2398 = vmatprep.subr.bf16.mxu0 0
  %2399 = vmatpush2.bf16.xpose.msra.mxu0 0
  %2400 = vmatprep.subr.bf16.mxu0 0
  %2401 = vmatpush2.bf16.xpose.msra.mxu0 0
  %2402 = vmatprep.subr.bf16.mxu0 0
  %2403 = vmatpush2.bf16.xpose.msra.mxu0 0
  %2404 = vmatprep.subr.bf16.mxu0 0
  %2405 = vmatpush2.bf16.xpose.msra.mxu0 0
  %2406 = vmatprep.subr.bf16.mxu0 0
  %2407 = vmatpush2.bf16.xpose.msra.mxu0 0
  %2408 = vmatprep.subr.bf16.mxu0 0
  %2409 = vmatpush2.bf16.xpose.msra.mxu0 0
  %2410 = vmatprep.subr.bf16.mxu0 0
  %2411 = vmatpush2.bf16.xpose.msra.mxu0 0
  %2412 = vmatprep.subr.bf16.mxu0 0
  %2413 = vmatpush2.bf16.xpose.msra.mxu0 0
  %2414 = vmatprep.mubr.bf16.mxu0 0
  %2415 = vmatmul.mubr.bf16.gmra.mxu0 %v2371
  %v2416 = vpop.f32.mrf.mxu0
  %v2417 = vadd.f32 %v671, %v2416
  %v2418 = vpop.f32.mrf.mxu0
  %v2419 = vpop.f32.mrf.mxu0
  %v2420 = vadd.f32 %v672, %v2419
  %v2421 = vpop.f32.mrf.mxu0
  %2422 = vmatprep.mubr.bf16.mxu0 0
  %2423 = vmatmul.mubr.bf16.gmra.mxu0 %v2374
  %v2424 = vpop.f32.mrf.mxu0
  %v2425 = vadd.f32 %v673, %v2424
  %v2426 = vpop.f32.mrf.mxu0
  %v2427 = vpop.f32.mrf.mxu0
  %v2428 = vadd.f32 %v674, %v2427
  %v2429 = vpop.f32.mrf.mxu0
  %2430 = vdwg.mxu0
  %2431 = vrot.lane.b32.xlu0 %v481, 64
  %v2432 = vpop.permute.xlu0 %2431
  %2433 = vrot.lane.b32.xlu0 %v483, 64
  %v2434 = vpop.permute.xlu0 %2433
  %v2436 = vsel %vm679, %v481, 0
  %v2439 = vsel %vm679, %v483, 0
  %v2442 = vsel %vm679, %v2432, 0
  %v2445 = vsel %vm679, %v2434, 0
  %2447 = vmatprep.subr.bf16.mxu0 0
  %2448 = vmatpush1.bf16.xpose.msra.mxu0 0
  %2449 = vmatprep.subr.bf16.mxu0 0
  %2450 = vmatpush1.bf16.xpose.msra.mxu0 0
  %2451 = vmatprep.subr.bf16.mxu0 0
  %2452 = vmatpush1.bf16.xpose.msra.mxu0 0
  %2453 = vmatprep.subr.bf16.mxu0 0
  %2454 = vmatpush1.bf16.xpose.msra.mxu0 0
  %2455 = vmatprep.subr.bf16.mxu0 0
  %2456 = vmatpush1.bf16.xpose.msra.mxu0 0
  %2457 = vmatprep.subr.bf16.mxu0 0
  %2458 = vmatpush1.bf16.xpose.msra.mxu0 0
  %2459 = vmatprep.subr.bf16.mxu0 0
  %2460 = vmatpush1.bf16.xpose.msra.mxu0 %v2445
  %2461 = vmatprep.subr.bf16.mxu0 0
  %2462 = vmatpush1.bf16.xpose.msra.mxu0 %v2442
  %2463 = vmatprep.subr.bf16.mxu0 0
  %2464 = vmatpush2.bf16.xpose.msra.mxu0 0
  %2465 = vmatprep.subr.bf16.mxu0 0
  %2466 = vmatpush2.bf16.xpose.msra.mxu0 0
  %2467 = vmatprep.subr.bf16.mxu0 0
  %2468 = vmatpush2.bf16.xpose.msra.mxu0 0
  %2469 = vmatprep.subr.bf16.mxu0 0
  %2470 = vmatpush2.bf16.xpose.msra.mxu0 0
  %2471 = vmatprep.subr.bf16.mxu0 0
  %2472 = vmatpush2.bf16.xpose.msra.mxu0 0
  %2473 = vmatprep.subr.bf16.mxu0 0
  %2474 = vmatpush2.bf16.xpose.msra.mxu0 0
  %2475 = vmatprep.subr.bf16.mxu0 0
  %2476 = vmatpush2.bf16.xpose.msra.mxu0 0
  %2477 = vmatprep.subr.bf16.mxu0 0
  %2478 = vmatpush2.bf16.xpose.msra.mxu0 0
  %2479 = vmatprep.mubr.bf16.mxu0 0
  %2480 = vmatmul.mubr.bf16.gmra.mxu0 %v2436
  %v2481 = vpop.f32.mrf.mxu0
  %v2482 = vadd.f32 %v671, %v2481
  %v2483 = vpop.f32.mrf.mxu0
  %v2484 = vpop.f32.mrf.mxu0
  %v2485 = vadd.f32 %v672, %v2484
  %v2486 = vpop.f32.mrf.mxu0
  %2487 = vmatprep.mubr.bf16.mxu0 0
  %2488 = vmatmul.mubr.bf16.gmra.mxu0 %v2439
  %v2489 = vpop.f32.mrf.mxu0
  %v2490 = vadd.f32 %v673, %v2489
  %v2491 = vpop.f32.mrf.mxu0
  %v2492 = vpop.f32.mrf.mxu0
  %v2493 = vadd.f32 %v674, %v2492
  %v2494 = vpop.f32.mrf.mxu0
  %2495 = vdwg.mxu0
  %2496 = vrot.lane.b32.xlu0 %v485, 64
  %v2497 = vpop.permute.xlu0 %2496
  %2498 = vrot.lane.b32.xlu0 %v487, 64
  %v2499 = vpop.permute.xlu0 %2498
  %v2501 = vsel %vm679, %v485, 0
  %v2504 = vsel %vm679, %v487, 0
  %v2507 = vsel %vm679, %v2497, 0
  %v2510 = vsel %vm679, %v2499, 0
  %2512 = vmatprep.subr.bf16.mxu0 0
  %2513 = vmatpush1.bf16.xpose.msra.mxu0 0
  %2514 = vmatprep.subr.bf16.mxu0 0
  %2515 = vmatpush1.bf16.xpose.msra.mxu0 0
  %2516 = vmatprep.subr.bf16.mxu0 0
  %2517 = vmatpush1.bf16.xpose.msra.mxu0 0
  %2518 = vmatprep.subr.bf16.mxu0 0
  %2519 = vmatpush1.bf16.xpose.msra.mxu0 0
  %2520 = vmatprep.subr.bf16.mxu0 0
  %2521 = vmatpush1.bf16.xpose.msra.mxu0 0
  %2522 = vmatprep.subr.bf16.mxu0 0
  %2523 = vmatpush1.bf16.xpose.msra.mxu0 0
  %2524 = vmatprep.subr.bf16.mxu0 0
  %2525 = vmatpush1.bf16.xpose.msra.mxu0 %v2510
  %2526 = vmatprep.subr.bf16.mxu0 0
  %2527 = vmatpush1.bf16.xpose.msra.mxu0 %v2507
  %2528 = vmatprep.subr.bf16.mxu0 0
  %2529 = vmatpush2.bf16.xpose.msra.mxu0 0
  %2530 = vmatprep.subr.bf16.mxu0 0
  %2531 = vmatpush2.bf16.xpose.msra.mxu0 0
  %2532 = vmatprep.subr.bf16.mxu0 0
  %2533 = vmatpush2.bf16.xpose.msra.mxu0 0
  %2534 = vmatprep.subr.bf16.mxu0 0
  %2535 = vmatpush2.bf16.xpose.msra.mxu0 0
  %2536 = vmatprep.subr.bf16.mxu0 0
  %2537 = vmatpush2.bf16.xpose.msra.mxu0 0
  %2538 = vmatprep.subr.bf16.mxu0 0
  %2539 = vmatpush2.bf16.xpose.msra.mxu0 0
  %2540 = vmatprep.subr.bf16.mxu0 0
  %2541 = vmatpush2.bf16.xpose.msra.mxu0 0
  %2542 = vmatprep.subr.bf16.mxu0 0
  %2543 = vmatpush2.bf16.xpose.msra.mxu0 0
  %2544 = vmatprep.mubr.bf16.mxu0 0
  %2545 = vmatmul.mubr.bf16.gmra.mxu0 %v2501
  %v2546 = vpop.f32.mrf.mxu0
  %v2547 = vadd.f32 %v671, %v2546
  %v2548 = vpop.f32.mrf.mxu0
  %v2549 = vpop.f32.mrf.mxu0
  %v2550 = vadd.f32 %v672, %v2549
  %v2551 = vpop.f32.mrf.mxu0
  %2552 = vmatprep.mubr.bf16.mxu0 0
  %2553 = vmatmul.mubr.bf16.gmra.mxu0 %v2504
  %v2554 = vpop.f32.mrf.mxu0
  %v2555 = vadd.f32 %v673, %v2554
  %v2556 = vpop.f32.mrf.mxu0
  %v2557 = vpop.f32.mrf.mxu0
  %v2558 = vadd.f32 %v674, %v2557
  %v2559 = vpop.f32.mrf.mxu0
  %2560 = vdwg.mxu0
  %2561 = vrot.lane.b32.xlu0 %v489, 64
  %v2562 = vpop.permute.xlu0 %2561
  %2563 = vrot.lane.b32.xlu0 %v491, 64
  %v2564 = vpop.permute.xlu0 %2563
  %v2566 = vsel %vm679, %v489, 0
  %v2569 = vsel %vm679, %v491, 0
  %v2572 = vsel %vm679, %v2562, 0
  %v2575 = vsel %vm679, %v2564, 0
  %2577 = vmatprep.subr.bf16.mxu0 0
  %2578 = vmatpush1.bf16.xpose.msra.mxu0 0
  %2579 = vmatprep.subr.bf16.mxu0 0
  %2580 = vmatpush1.bf16.xpose.msra.mxu0 0
  %2581 = vmatprep.subr.bf16.mxu0 0
  %2582 = vmatpush1.bf16.xpose.msra.mxu0 0
  %2583 = vmatprep.subr.bf16.mxu0 0
  %2584 = vmatpush1.bf16.xpose.msra.mxu0 0
  %2585 = vmatprep.subr.bf16.mxu0 0
  %2586 = vmatpush1.bf16.xpose.msra.mxu0 0
  %2587 = vmatprep.subr.bf16.mxu0 0
  %2588 = vmatpush1.bf16.xpose.msra.mxu0 0
  %2589 = vmatprep.subr.bf16.mxu0 0
  %2590 = vmatpush1.bf16.xpose.msra.mxu0 %v2575
  %2591 = vmatprep.subr.bf16.mxu0 0
  %2592 = vmatpush1.bf16.xpose.msra.mxu0 %v2572
  %2593 = vmatprep.subr.bf16.mxu0 0
  %2594 = vmatpush2.bf16.xpose.msra.mxu0 0
  %2595 = vmatprep.subr.bf16.mxu0 0
  %2596 = vmatpush2.bf16.xpose.msra.mxu0 0
  %2597 = vmatprep.subr.bf16.mxu0 0
  %2598 = vmatpush2.bf16.xpose.msra.mxu0 0
  %2599 = vmatprep.subr.bf16.mxu0 0
  %2600 = vmatpush2.bf16.xpose.msra.mxu0 0
  %2601 = vmatprep.subr.bf16.mxu0 0
  %2602 = vmatpush2.bf16.xpose.msra.mxu0 0
  %2603 = vmatprep.subr.bf16.mxu0 0
  %2604 = vmatpush2.bf16.xpose.msra.mxu0 0
  %2605 = vmatprep.subr.bf16.mxu0 0
  %2606 = vmatpush2.bf16.xpose.msra.mxu0 0
  %2607 = vmatprep.subr.bf16.mxu0 0
  %2608 = vmatpush2.bf16.xpose.msra.mxu0 0
  %2609 = vmatprep.mubr.bf16.mxu0 0
  %2610 = vmatmul.mubr.bf16.gmra.mxu0 %v2566
  %v2611 = vpop.f32.mrf.mxu0
  %v2612 = vadd.f32 %v671, %v2611
  %v2613 = vpop.f32.mrf.mxu0
  %v2614 = vpop.f32.mrf.mxu0
  %v2615 = vadd.f32 %v672, %v2614
  %v2616 = vpop.f32.mrf.mxu0
  %2617 = vmatprep.mubr.bf16.mxu0 0
  %2618 = vmatmul.mubr.bf16.gmra.mxu0 %v2569
  %v2619 = vpop.f32.mrf.mxu0
  %v2620 = vadd.f32 %v673, %v2619
  %v2621 = vpop.f32.mrf.mxu0
  %v2622 = vpop.f32.mrf.mxu0
  %v2623 = vadd.f32 %v674, %v2622
  %v2624 = vpop.f32.mrf.mxu0
  %2625 = vdwg.mxu0
  %2626 = vrot.lane.b32.xlu0 %v493, 64
  %v2627 = vpop.permute.xlu0 %2626
  %2628 = vrot.lane.b32.xlu0 %v495, 64
  %v2629 = vpop.permute.xlu0 %2628
  %v2631 = vsel %vm679, %v493, 0
  %v2634 = vsel %vm679, %v495, 0
  %v2637 = vsel %vm679, %v2627, 0
  %v2640 = vsel %vm679, %v2629, 0
  %2642 = vmatprep.subr.bf16.mxu0 0
  %2643 = vmatpush1.bf16.xpose.msra.mxu0 0
  %2644 = vmatprep.subr.bf16.mxu0 0
  %2645 = vmatpush1.bf16.xpose.msra.mxu0 0
  %2646 = vmatprep.subr.bf16.mxu0 0
  %2647 = vmatpush1.bf16.xpose.msra.mxu0 0
  %2648 = vmatprep.subr.bf16.mxu0 0
  %2649 = vmatpush1.bf16.xpose.msra.mxu0 0
  %2650 = vmatprep.subr.bf16.mxu0 0
  %2651 = vmatpush1.bf16.xpose.msra.mxu0 0
  %2652 = vmatprep.subr.bf16.mxu0 0
  %2653 = vmatpush1.bf16.xpose.msra.mxu0 0
  %2654 = vmatprep.subr.bf16.mxu0 0
  %2655 = vmatpush1.bf16.xpose.msra.mxu0 %v2640
  %2656 = vmatprep.subr.bf16.mxu0 0
  %2657 = vmatpush1.bf16.xpose.msra.mxu0 %v2637
  %2658 = vmatprep.subr.bf16.mxu0 0
  %2659 = vmatpush2.bf16.xpose.msra.mxu0 0
  %2660 = vmatprep.subr.bf16.mxu0 0
  %2661 = vmatpush2.bf16.xpose.msra.mxu0 0
  %2662 = vmatprep.subr.bf16.mxu0 0
  %2663 = vmatpush2.bf16.xpose.msra.mxu0 0
  %2664 = vmatprep.subr.bf16.mxu0 0
  %2665 = vmatpush2.bf16.xpose.msra.mxu0 0
  %2666 = vmatprep.subr.bf16.mxu0 0
  %2667 = vmatpush2.bf16.xpose.msra.mxu0 0
  %2668 = vmatprep.subr.bf16.mxu0 0
  %2669 = vmatpush2.bf16.xpose.msra.mxu0 0
  %2670 = vmatprep.subr.bf16.mxu0 0
  %2671 = vmatpush2.bf16.xpose.msra.mxu0 0
  %2672 = vmatprep.subr.bf16.mxu0 0
  %2673 = vmatpush2.bf16.xpose.msra.mxu0 0
  %2674 = vmatprep.mubr.bf16.mxu0 0
  %2675 = vmatmul.mubr.bf16.gmra.mxu0 %v2631
  %v2676 = vpop.f32.mrf.mxu0
  %v2677 = vadd.f32 %v671, %v2676
  %v2678 = vpop.f32.mrf.mxu0
  %v2679 = vpop.f32.mrf.mxu0
  %v2680 = vadd.f32 %v672, %v2679
  %v2681 = vpop.f32.mrf.mxu0
  %2682 = vmatprep.mubr.bf16.mxu0 0
  %2683 = vmatmul.mubr.bf16.gmra.mxu0 %v2634
  %v2684 = vpop.f32.mrf.mxu0
  %v2685 = vadd.f32 %v673, %v2684
  %v2686 = vpop.f32.mrf.mxu0
  %v2687 = vpop.f32.mrf.mxu0
  %v2688 = vadd.f32 %v674, %v2687
  %v2689 = vpop.f32.mrf.mxu0
  %2690 = vdwg.mxu0
  %2691 = vrot.lane.b32.xlu0 %v497, 64
  %v2692 = vpop.permute.xlu0 %2691
  %2693 = vrot.lane.b32.xlu0 %v499, 64
  %v2694 = vpop.permute.xlu0 %2693
  %v2696 = vsel %vm679, %v497, 0
  %v2699 = vsel %vm679, %v499, 0
  %v2702 = vsel %vm679, %v2692, 0
  %v2705 = vsel %vm679, %v2694, 0
  %2707 = vmatprep.subr.bf16.mxu0 0
  %2708 = vmatpush1.bf16.xpose.msra.mxu0 0
  %2709 = vmatprep.subr.bf16.mxu0 0
  %2710 = vmatpush1.bf16.xpose.msra.mxu0 0
  %2711 = vmatprep.subr.bf16.mxu0 0
  %2712 = vmatpush1.bf16.xpose.msra.mxu0 0
  %2713 = vmatprep.subr.bf16.mxu0 0
  %2714 = vmatpush1.bf16.xpose.msra.mxu0 0
  %2715 = vmatprep.subr.bf16.mxu0 0
  %2716 = vmatpush1.bf16.xpose.msra.mxu0 0
  %2717 = vmatprep.subr.bf16.mxu0 0
  %2718 = vmatpush1.bf16.xpose.msra.mxu0 0
  %2719 = vmatprep.subr.bf16.mxu0 0
  %2720 = vmatpush1.bf16.xpose.msra.mxu0 %v2705
  %2721 = vmatprep.subr.bf16.mxu0 0
  %2722 = vmatpush1.bf16.xpose.msra.mxu0 %v2702
  %2723 = vmatprep.subr.bf16.mxu0 0
  %2724 = vmatpush2.bf16.xpose.msra.mxu0 0
  %2725 = vmatprep.subr.bf16.mxu0 0
  %2726 = vmatpush2.bf16.xpose.msra.mxu0 0
  %2727 = vmatprep.subr.bf16.mxu0 0
  %2728 = vmatpush2.bf16.xpose.msra.mxu0 0
  %2729 = vmatprep.subr.bf16.mxu0 0
  %2730 = vmatpush2.bf16.xpose.msra.mxu0 0
  %2731 = vmatprep.subr.bf16.mxu0 0
  %2732 = vmatpush2.bf16.xpose.msra.mxu0 0
  %2733 = vmatprep.subr.bf16.mxu0 0
  %2734 = vmatpush2.bf16.xpose.msra.mxu0 0
  %2735 = vmatprep.subr.bf16.mxu0 0
  %2736 = vmatpush2.bf16.xpose.msra.mxu0 0
  %2737 = vmatprep.subr.bf16.mxu0 0
  %2738 = vmatpush2.bf16.xpose.msra.mxu0 0
  %2739 = vmatprep.mubr.bf16.mxu0 0
  %2740 = vmatmul.mubr.bf16.gmra.mxu0 %v2696
  %v2741 = vpop.f32.mrf.mxu0
  %v2742 = vadd.f32 %v671, %v2741
  %v2743 = vpop.f32.mrf.mxu0
  %v2744 = vpop.f32.mrf.mxu0
  %v2745 = vadd.f32 %v672, %v2744
  %v2746 = vpop.f32.mrf.mxu0
  %2747 = vmatprep.mubr.bf16.mxu0 0
  %2748 = vmatmul.mubr.bf16.gmra.mxu0 %v2699
  %v2749 = vpop.f32.mrf.mxu0
  %v2750 = vadd.f32 %v673, %v2749
  %v2751 = vpop.f32.mrf.mxu0
  %v2752 = vpop.f32.mrf.mxu0
  %v2753 = vadd.f32 %v674, %v2752
  %v2754 = vpop.f32.mrf.mxu0
  %2755 = vdwg.mxu0
  %vm2756 = vcmask 261120
  %v2757 = vsel %vm2756, %v727, -inf
  %2758 = vmax.xlane.f32.xlu0 %v2757
  %v2759 = vpop.xlane.xlu0 %2758
  %v2760 = vsel %vm2756, %v730, -inf
  %2761 = vmax.xlane.f32.xlu0 %v2760
  %v2762 = vpop.xlane.xlu0 %2761
  %v2763 = vsel %vm2756, %v735, -inf
  %2764 = vmax.xlane.f32.xlu0 %v2763
  %v2765 = vpop.xlane.xlu0 %2764
  %v2766 = vsel %vm2756, %v738, -inf
  %2767 = vmax.xlane.f32.xlu0 %v2766
  %v2768 = vpop.xlane.xlu0 %2767
  %v2769 = vsel %vm2756, %v792, -inf
  %2770 = vmax.xlane.f32.xlu0 %v2769
  %v2771 = vpop.xlane.xlu0 %2770
  %v2772 = vsel %vm2756, %v795, -inf
  %2773 = vmax.xlane.f32.xlu0 %v2772
  %v2774 = vpop.xlane.xlu0 %2773
  %v2775 = vsel %vm2756, %v800, -inf
  %2776 = vmax.xlane.f32.xlu0 %v2775
  %v2777 = vpop.xlane.xlu0 %2776
  %v2778 = vsel %vm2756, %v803, -inf
  %2779 = vmax.xlane.f32.xlu0 %v2778
  %v2780 = vpop.xlane.xlu0 %2779
  %v2781 = vsel %vm2756, %v857, -inf
  %2782 = vmax.xlane.f32.xlu0 %v2781
  %v2783 = vpop.xlane.xlu0 %2782
  %v2784 = vsel %vm2756, %v860, -inf
  %2785 = vmax.xlane.f32.xlu0 %v2784
  %v2786 = vpop.xlane.xlu0 %2785
  %v2787 = vsel %vm2756, %v865, -inf
  %2788 = vmax.xlane.f32.xlu0 %v2787
  %v2789 = vpop.xlane.xlu0 %2788
  %v2790 = vsel %vm2756, %v868, -inf
  %2791 = vmax.xlane.f32.xlu0 %v2790
  %v2792 = vpop.xlane.xlu0 %2791
  %v2793 = vsel %vm2756, %v922, -inf
  %2794 = vmax.xlane.f32.xlu0 %v2793
  %v2795 = vpop.xlane.xlu0 %2794
  %v2796 = vsel %vm2756, %v925, -inf
  %2797 = vmax.xlane.f32.xlu0 %v2796
  %v2798 = vpop.xlane.xlu0 %2797
  %v2799 = vsel %vm2756, %v930, -inf
  %2800 = vmax.xlane.f32.xlu0 %v2799
  %v2801 = vpop.xlane.xlu0 %2800
  %v2802 = vsel %vm2756, %v933, -inf
  %2803 = vmax.xlane.f32.xlu0 %v2802
  %v2804 = vpop.xlane.xlu0 %2803
  %v2805 = vsel %vm2756, %v987, -inf
  %2806 = vmax.xlane.f32.xlu0 %v2805
  %v2807 = vpop.xlane.xlu0 %2806
  %v2808 = vsel %vm2756, %v990, -inf
  %2809 = vmax.xlane.f32.xlu0 %v2808
  %v2810 = vpop.xlane.xlu0 %2809
  %v2811 = vsel %vm2756, %v995, -inf
  %2812 = vmax.xlane.f32.xlu0 %v2811
  %v2813 = vpop.xlane.xlu0 %2812
  %v2814 = vsel %vm2756, %v998, -inf
  %2815 = vmax.xlane.f32.xlu0 %v2814
  %v2816 = vpop.xlane.xlu0 %2815
  %v2817 = vsel %vm2756, %v1052, -inf
  %2818 = vmax.xlane.f32.xlu0 %v2817
  %v2819 = vpop.xlane.xlu0 %2818
  %v2820 = vsel %vm2756, %v1055, -inf
  %2821 = vmax.xlane.f32.xlu0 %v2820
  %v2822 = vpop.xlane.xlu0 %2821
  %v2823 = vsel %vm2756, %v1060, -inf
  %2824 = vmax.xlane.f32.xlu0 %v2823
  %v2825 = vpop.xlane.xlu0 %2824
  %v2826 = vsel %vm2756, %v1063, -inf
  %2827 = vmax.xlane.f32.xlu0 %v2826
  %v2828 = vpop.xlane.xlu0 %2827
  %v2829 = vsel %vm2756, %v1117, -inf
  %2830 = vmax.xlane.f32.xlu0 %v2829
  %v2831 = vpop.xlane.xlu0 %2830
  %v2832 = vsel %vm2756, %v1120, -inf
  %2833 = vmax.xlane.f32.xlu0 %v2832
  %v2834 = vpop.xlane.xlu0 %2833
  %v2835 = vsel %vm2756, %v1125, -inf
  %2836 = vmax.xlane.f32.xlu0 %v2835
  %v2837 = vpop.xlane.xlu0 %2836
  %v2838 = vsel %vm2756, %v1128, -inf
  %2839 = vmax.xlane.f32.xlu0 %v2838
  %v2840 = vpop.xlane.xlu0 %2839
  %v2841 = vsel %vm2756, %v1182, -inf
  %2842 = vmax.xlane.f32.xlu0 %v2841
  %v2843 = vpop.xlane.xlu0 %2842
  %v2844 = vsel %vm2756, %v1185, -inf
  %2845 = vmax.xlane.f32.xlu0 %v2844
  %v2846 = vpop.xlane.xlu0 %2845
  %v2847 = vsel %vm2756, %v1190, -inf
  %2848 = vmax.xlane.f32.xlu0 %v2847
  %v2849 = vpop.xlane.xlu0 %2848
  %v2850 = vsel %vm2756, %v1193, -inf
  %2851 = vmax.xlane.f32.xlu0 %v2850
  %v2852 = vpop.xlane.xlu0 %2851
  %v2853 = vsel %vm2756, %v1247, -inf
  %2854 = vmax.xlane.f32.xlu0 %v2853
  %v2855 = vpop.xlane.xlu0 %2854
  %v2856 = vsel %vm2756, %v1250, -inf
  %2857 = vmax.xlane.f32.xlu0 %v2856
  %v2858 = vpop.xlane.xlu0 %2857
  %v2859 = vsel %vm2756, %v1255, -inf
  %2860 = vmax.xlane.f32.xlu0 %v2859
  %v2861 = vpop.xlane.xlu0 %2860
  %v2862 = vsel %vm2756, %v1258, -inf
  %2863 = vmax.xlane.f32.xlu0 %v2862
  %v2864 = vpop.xlane.xlu0 %2863
  %v2865 = vsel %vm2756, %v1312, -inf
  %2866 = vmax.xlane.f32.xlu0 %v2865
  %v2867 = vpop.xlane.xlu0 %2866
  %v2868 = vsel %vm2756, %v1315, -inf
  %2869 = vmax.xlane.f32.xlu0 %v2868
  %v2870 = vpop.xlane.xlu0 %2869
  %v2871 = vsel %vm2756, %v1320, -inf
  %2872 = vmax.xlane.f32.xlu0 %v2871
  %v2873 = vpop.xlane.xlu0 %2872
  %v2874 = vsel %vm2756, %v1323, -inf
  %2875 = vmax.xlane.f32.xlu0 %v2874
  %v2876 = vpop.xlane.xlu0 %2875
  %v2877 = vsel %vm2756, %v1377, -inf
  %2878 = vmax.xlane.f32.xlu0 %v2877
  %v2879 = vpop.xlane.xlu0 %2878
  %v2880 = vsel %vm2756, %v1380, -inf
  %2881 = vmax.xlane.f32.xlu0 %v2880
  %v2882 = vpop.xlane.xlu0 %2881
  %v2883 = vsel %vm2756, %v1385, -inf
  %2884 = vmax.xlane.f32.xlu0 %v2883
  %v2885 = vpop.xlane.xlu0 %2884
  %v2886 = vsel %vm2756, %v1388, -inf
  %2887 = vmax.xlane.f32.xlu0 %v2886
  %v2888 = vpop.xlane.xlu0 %2887
  %v2889 = vsel %vm2756, %v1442, -inf
  %2890 = vmax.xlane.f32.xlu0 %v2889
  %v2891 = vpop.xlane.xlu0 %2890
  %v2892 = vsel %vm2756, %v1445, -inf
  %2893 = vmax.xlane.f32.xlu0 %v2892
  %v2894 = vpop.xlane.xlu0 %2893
  %v2895 = vsel %vm2756, %v1450, -inf
  %2896 = vmax.xlane.f32.xlu0 %v2895
  %v2897 = vpop.xlane.xlu0 %2896
  %v2898 = vsel %vm2756, %v1453, -inf
  %2899 = vmax.xlane.f32.xlu0 %v2898
  %v2900 = vpop.xlane.xlu0 %2899
  %v2901 = vsel %vm2756, %v1507, -inf
  %2902 = vmax.xlane.f32.xlu0 %v2901
  %v2903 = vpop.xlane.xlu0 %2902
  %v2904 = vsel %vm2756, %v1510, -inf
  %2905 = vmax.xlane.f32.xlu0 %v2904
  %v2906 = vpop.xlane.xlu0 %2905
  %v2907 = vsel %vm2756, %v1515, -inf
  %2908 = vmax.xlane.f32.xlu0 %v2907
  %v2909 = vpop.xlane.xlu0 %2908
  %v2910 = vsel %vm2756, %v1518, -inf
  %2911 = vmax.xlane.f32.xlu0 %v2910
  %v2912 = vpop.xlane.xlu0 %2911
  %v2913 = vsel %vm2756, %v1572, -inf
  %2914 = vmax.xlane.f32.xlu0 %v2913
  %v2915 = vpop.xlane.xlu0 %2914
  %v2916 = vsel %vm2756, %v1575, -inf
  %2917 = vmax.xlane.f32.xlu0 %v2916
  %v2918 = vpop.xlane.xlu0 %2917
  %v2919 = vsel %vm2756, %v1580, -inf
  %2920 = vmax.xlane.f32.xlu0 %v2919
  %v2921 = vpop.xlane.xlu0 %2920
  %v2922 = vsel %vm2756, %v1583, -inf
  %2923 = vmax.xlane.f32.xlu0 %v2922
  %v2924 = vpop.xlane.xlu0 %2923
  %v2925 = vsel %vm2756, %v1637, -inf
  %2926 = vmax.xlane.f32.xlu0 %v2925
  %v2927 = vpop.xlane.xlu0 %2926
  %v2928 = vsel %vm2756, %v1640, -inf
  %2929 = vmax.xlane.f32.xlu0 %v2928
  %v2930 = vpop.xlane.xlu0 %2929
  %v2931 = vsel %vm2756, %v1645, -inf
  %2932 = vmax.xlane.f32.xlu0 %v2931
  %v2933 = vpop.xlane.xlu0 %2932
  %v2934 = vsel %vm2756, %v1648, -inf
  %2935 = vmax.xlane.f32.xlu0 %v2934
  %v2936 = vpop.xlane.xlu0 %2935
  %v2937 = vsel %vm2756, %v1702, -inf
  %2938 = vmax.xlane.f32.xlu0 %v2937
  %v2939 = vpop.xlane.xlu0 %2938
  %v2940 = vsel %vm2756, %v1705, -inf
  %2941 = vmax.xlane.f32.xlu0 %v2940
  %v2942 = vpop.xlane.xlu0 %2941
  %v2943 = vsel %vm2756, %v1710, -inf
  %2944 = vmax.xlane.f32.xlu0 %v2943
  %v2945 = vpop.xlane.xlu0 %2944
  %v2946 = vsel %vm2756, %v1713, -inf
  %2947 = vmax.xlane.f32.xlu0 %v2946
  %v2948 = vpop.xlane.xlu0 %2947
  %v2949 = vsel %vm2756, %v1767, -inf
  %2950 = vmax.xlane.f32.xlu0 %v2949
  %v2951 = vpop.xlane.xlu0 %2950
  %v2952 = vsel %vm2756, %v1770, -inf
  %2953 = vmax.xlane.f32.xlu0 %v2952
  %v2954 = vpop.xlane.xlu0 %2953
  %v2955 = vsel %vm2756, %v1775, -inf
  %2956 = vmax.xlane.f32.xlu0 %v2955
  %v2957 = vpop.xlane.xlu0 %2956
  %v2958 = vsel %vm2756, %v1778, -inf
  %2959 = vmax.xlane.f32.xlu0 %v2958
  %v2960 = vpop.xlane.xlu0 %2959
  %v2961 = vsel %vm2756, %v1832, -inf
  %2962 = vmax.xlane.f32.xlu0 %v2961
  %v2963 = vpop.xlane.xlu0 %2962
  %v2964 = vsel %vm2756, %v1835, -inf
  %2965 = vmax.xlane.f32.xlu0 %v2964
  %v2966 = vpop.xlane.xlu0 %2965
  %v2967 = vsel %vm2756, %v1840, -inf
  %2968 = vmax.xlane.f32.xlu0 %v2967
  %v2969 = vpop.xlane.xlu0 %2968
  %v2970 = vsel %vm2756, %v1843, -inf
  %2971 = vmax.xlane.f32.xlu0 %v2970
  %v2972 = vpop.xlane.xlu0 %2971
  %v2973 = vsel %vm2756, %v1897, -inf
  %2974 = vmax.xlane.f32.xlu0 %v2973
  %v2975 = vpop.xlane.xlu0 %2974
  %v2976 = vsel %vm2756, %v1900, -inf
  %2977 = vmax.xlane.f32.xlu0 %v2976
  %v2978 = vpop.xlane.xlu0 %2977
  %v2979 = vsel %vm2756, %v1905, -inf
  %2980 = vmax.xlane.f32.xlu0 %v2979
  %v2981 = vpop.xlane.xlu0 %2980
  %v2982 = vsel %vm2756, %v1908, -inf
  %2983 = vmax.xlane.f32.xlu0 %v2982
  %v2984 = vpop.xlane.xlu0 %2983
  %v2985 = vsel %vm2756, %v1962, -inf
  %2986 = vmax.xlane.f32.xlu0 %v2985
  %v2987 = vpop.xlane.xlu0 %2986
  %v2988 = vsel %vm2756, %v1965, -inf
  %2989 = vmax.xlane.f32.xlu0 %v2988
  %v2990 = vpop.xlane.xlu0 %2989
  %v2991 = vsel %vm2756, %v1970, -inf
  %2992 = vmax.xlane.f32.xlu0 %v2991
  %v2993 = vpop.xlane.xlu0 %2992
  %v2994 = vsel %vm2756, %v1973, -inf
  %2995 = vmax.xlane.f32.xlu0 %v2994
  %v2996 = vpop.xlane.xlu0 %2995
  %v2997 = vsel %vm2756, %v2027, -inf
  %2998 = vmax.xlane.f32.xlu0 %v2997
  %v2999 = vpop.xlane.xlu0 %2998
  %v3000 = vsel %vm2756, %v2030, -inf
  %3001 = vmax.xlane.f32.xlu0 %v3000
  %v3002 = vpop.xlane.xlu0 %3001
  %v3003 = vsel %vm2756, %v2035, -inf
  %3004 = vmax.xlane.f32.xlu0 %v3003
  %v3005 = vpop.xlane.xlu0 %3004
  %v3006 = vsel %vm2756, %v2038, -inf
  %3007 = vmax.xlane.f32.xlu0 %v3006
  %v3008 = vpop.xlane.xlu0 %3007
  %v3009 = vsel %vm2756, %v2092, -inf
  %3010 = vmax.xlane.f32.xlu0 %v3009
  %v3011 = vpop.xlane.xlu0 %3010
  %v3012 = vsel %vm2756, %v2095, -inf
  %3013 = vmax.xlane.f32.xlu0 %v3012
  %v3014 = vpop.xlane.xlu0 %3013
  %v3015 = vsel %vm2756, %v2100, -inf
  %3016 = vmax.xlane.f32.xlu0 %v3015
  %v3017 = vpop.xlane.xlu0 %3016
  %v3018 = vsel %vm2756, %v2103, -inf
  %3019 = vmax.xlane.f32.xlu0 %v3018
  %v3020 = vpop.xlane.xlu0 %3019
  %v3021 = vsel %vm2756, %v2157, -inf
  %3022 = vmax.xlane.f32.xlu0 %v3021
  %v3023 = vpop.xlane.xlu0 %3022
  %v3024 = vsel %vm2756, %v2160, -inf
  %3025 = vmax.xlane.f32.xlu0 %v3024
  %v3026 = vpop.xlane.xlu0 %3025
  %v3027 = vsel %vm2756, %v2165, -inf
  %3028 = vmax.xlane.f32.xlu0 %v3027
  %v3029 = vpop.xlane.xlu0 %3028
  %v3030 = vsel %vm2756, %v2168, -inf
  %3031 = vmax.xlane.f32.xlu0 %v3030
  %v3032 = vpop.xlane.xlu0 %3031
  %v3033 = vsel %vm2756, %v2222, -inf
  %3034 = vmax.xlane.f32.xlu0 %v3033
  %v3035 = vpop.xlane.xlu0 %3034
  %v3036 = vsel %vm2756, %v2225, -inf
  %3037 = vmax.xlane.f32.xlu0 %v3036
  %v3038 = vpop.xlane.xlu0 %3037
  %v3039 = vsel %vm2756, %v2230, -inf
  %3040 = vmax.xlane.f32.xlu0 %v3039
  %v3041 = vpop.xlane.xlu0 %3040
  %v3042 = vsel %vm2756, %v2233, -inf
  %3043 = vmax.xlane.f32.xlu0 %v3042
  %v3044 = vpop.xlane.xlu0 %3043
  %v3045 = vsel %vm2756, %v2287, -inf
  %3046 = vmax.xlane.f32.xlu0 %v3045
  %v3047 = vpop.xlane.xlu0 %3046
  %v3048 = vsel %vm2756, %v2290, -inf
  %3049 = vmax.xlane.f32.xlu0 %v3048
  %v3050 = vpop.xlane.xlu0 %3049
  %v3051 = vsel %vm2756, %v2295, -inf
  %3052 = vmax.xlane.f32.xlu0 %v3051
  %v3053 = vpop.xlane.xlu0 %3052
  %v3054 = vsel %vm2756, %v2298, -inf
  %3055 = vmax.xlane.f32.xlu0 %v3054
  %v3056 = vpop.xlane.xlu0 %3055
  %v3057 = vsel %vm2756, %v2352, -inf
  %3058 = vmax.xlane.f32.xlu0 %v3057
  %v3059 = vpop.xlane.xlu0 %3058
  %v3060 = vsel %vm2756, %v2355, -inf
  %3061 = vmax.xlane.f32.xlu0 %v3060
  %v3062 = vpop.xlane.xlu0 %3061
  %v3063 = vsel %vm2756, %v2360, -inf
  %3064 = vmax.xlane.f32.xlu0 %v3063
  %v3065 = vpop.xlane.xlu0 %3064
  %v3066 = vsel %vm2756, %v2363, -inf
  %3067 = vmax.xlane.f32.xlu0 %v3066
  %v3068 = vpop.xlane.xlu0 %3067
  %v3069 = vsel %vm2756, %v2417, -inf
  %3070 = vmax.xlane.f32.xlu0 %v3069
  %v3071 = vpop.xlane.xlu0 %3070
  %v3072 = vsel %vm2756, %v2420, -inf
  %3073 = vmax.xlane.f32.xlu0 %v3072
  %v3074 = vpop.xlane.xlu0 %3073
  %v3075 = vsel %vm2756, %v2425, -inf
  %3076 = vmax.xlane.f32.xlu0 %v3075
  %v3077 = vpop.xlane.xlu0 %3076
  %v3078 = vsel %vm2756, %v2428, -inf
  %3079 = vmax.xlane.f32.xlu0 %v3078
  %v3080 = vpop.xlane.xlu0 %3079
  %v3081 = vsel %vm2756, %v2482, -inf
  %3082 = vmax.xlane.f32.xlu0 %v3081
  %v3083 = vpop.xlane.xlu0 %3082
  %v3084 = vsel %vm2756, %v2485, -inf
  %3085 = vmax.xlane.f32.xlu0 %v3084
  %v3086 = vpop.xlane.xlu0 %3085
  %v3087 = vsel %vm2756, %v2490, -inf
  %3088 = vmax.xlane.f32.xlu0 %v3087
  %v3089 = vpop.xlane.xlu0 %3088
  %v3090 = vsel %vm2756, %v2493, -inf
  %3091 = vmax.xlane.f32.xlu0 %v3090
  %v3092 = vpop.xlane.xlu0 %3091
  %v3093 = vsel %vm2756, %v2547, -inf
  %3094 = vmax.xlane.f32.xlu0 %v3093
  %v3095 = vpop.xlane.xlu0 %3094
  %v3096 = vsel %vm2756, %v2550, -inf
  %3097 = vmax.xlane.f32.xlu0 %v3096
  %v3098 = vpop.xlane.xlu0 %3097
  %v3099 = vsel %vm2756, %v2555, -inf
  %3100 = vmax.xlane.f32.xlu0 %v3099
  %v3101 = vpop.xlane.xlu0 %3100
  %v3102 = vsel %vm2756, %v2558, -inf
  %3103 = vmax.xlane.f32.xlu0 %v3102
  %v3104 = vpop.xlane.xlu0 %3103
  %v3105 = vsel %vm2756, %v2612, -inf
  %3106 = vmax.xlane.f32.xlu0 %v3105
  %v3107 = vpop.xlane.xlu0 %3106
  %v3108 = vsel %vm2756, %v2615, -inf
  %3109 = vmax.xlane.f32.xlu0 %v3108
  %v3110 = vpop.xlane.xlu0 %3109
  %v3111 = vsel %vm2756, %v2620, -inf
  %3112 = vmax.xlane.f32.xlu0 %v3111
  %v3113 = vpop.xlane.xlu0 %3112
  %v3114 = vsel %vm2756, %v2623, -inf
  %3115 = vmax.xlane.f32.xlu0 %v3114
  %v3116 = vpop.xlane.xlu0 %3115
  %v3117 = vsel %vm2756, %v2677, -inf
  %3118 = vmax.xlane.f32.xlu0 %v3117
  %v3119 = vpop.xlane.xlu0 %3118
  %v3120 = vsel %vm2756, %v2680, -inf
  %3121 = vmax.xlane.f32.xlu0 %v3120
  %v3122 = vpop.xlane.xlu0 %3121
  %v3123 = vsel %vm2756, %v2685, -inf
  %3124 = vmax.xlane.f32.xlu0 %v3123
  %v3125 = vpop.xlane.xlu0 %3124
  %v3126 = vsel %vm2756, %v2688, -inf
  %3127 = vmax.xlane.f32.xlu0 %v3126
  %v3128 = vpop.xlane.xlu0 %3127
  %v3129 = vsel %vm2756, %v2742, -inf
  %3130 = vmax.xlane.f32.xlu0 %v3129
  %v3131 = vpop.xlane.xlu0 %3130
  %v3132 = vsel %vm2756, %v2745, -inf
  %3133 = vmax.xlane.f32.xlu0 %v3132
  %v3134 = vpop.xlane.xlu0 %3133
  %v3135 = vsel %vm2756, %v2750, -inf
  %3136 = vmax.xlane.f32.xlu0 %v3135
  %v3137 = vpop.xlane.xlu0 %3136
  %v3138 = vsel %vm2756, %v2753, -inf
  %3139 = vmax.xlane.f32.xlu0 %v3138
  %v3140 = vpop.xlane.xlu0 %3139
  %v3141 = vsub.f32 %v727, %v2759
  %v3142 = vsub.f32 %v730, %v2762
  %v3143 = vsub.f32 %v735, %v2765
  %v3144 = vsub.f32 %v738, %v2768
  %v3145 = vsub.f32 %v792, %v2771
  %v3146 = vsub.f32 %v795, %v2774
  %v3147 = vsub.f32 %v800, %v2777
  %v3148 = vsub.f32 %v803, %v2780
  %v3149 = vsub.f32 %v857, %v2783
  %v3150 = vsub.f32 %v860, %v2786
  %v3151 = vsub.f32 %v865, %v2789
  %v3152 = vsub.f32 %v868, %v2792
  %v3153 = vsub.f32 %v922, %v2795
  %v3154 = vsub.f32 %v925, %v2798
  %v3155 = vsub.f32 %v930, %v2801
  %v3156 = vsub.f32 %v933, %v2804
  %v3157 = vsub.f32 %v987, %v2807
  %v3158 = vsub.f32 %v990, %v2810
  %v3159 = vsub.f32 %v995, %v2813
  %v3160 = vsub.f32 %v998, %v2816
  %v3161 = vsub.f32 %v1052, %v2819
  %v3162 = vsub.f32 %v1055, %v2822
  %v3163 = vsub.f32 %v1060, %v2825
  %v3164 = vsub.f32 %v1063, %v2828
  %v3165 = vsub.f32 %v1117, %v2831
  %v3166 = vsub.f32 %v1120, %v2834
  %v3167 = vsub.f32 %v1125, %v2837
  %v3168 = vsub.f32 %v1128, %v2840
  %v3169 = vsub.f32 %v1182, %v2843
  %v3170 = vsub.f32 %v1185, %v2846
  %v3171 = vsub.f32 %v1190, %v2849
  %v3172 = vsub.f32 %v1193, %v2852
  %v3173 = vsub.f32 %v1247, %v2855
  %v3174 = vsub.f32 %v1250, %v2858
  %v3175 = vsub.f32 %v1255, %v2861
  %v3176 = vsub.f32 %v1258, %v2864
  %v3177 = vsub.f32 %v1312, %v2867
  %v3178 = vsub.f32 %v1315, %v2870
  %v3179 = vsub.f32 %v1320, %v2873
  %v3180 = vsub.f32 %v1323, %v2876
  %v3181 = vsub.f32 %v1377, %v2879
  %v3182 = vsub.f32 %v1380, %v2882
  %v3183 = vsub.f32 %v1385, %v2885
  %v3184 = vsub.f32 %v1388, %v2888
  %v3185 = vsub.f32 %v1442, %v2891
  %v3186 = vsub.f32 %v1445, %v2894
  %v3187 = vsub.f32 %v1450, %v2897
  %v3188 = vsub.f32 %v1453, %v2900
  %v3189 = vsub.f32 %v1507, %v2903
  %v3190 = vsub.f32 %v1510, %v2906
  %v3191 = vsub.f32 %v1515, %v2909
  %v3192 = vsub.f32 %v1518, %v2912
  %v3193 = vsub.f32 %v1572, %v2915
  %v3194 = vsub.f32 %v1575, %v2918
  %v3195 = vsub.f32 %v1580, %v2921
  %v3196 = vsub.f32 %v1583, %v2924
  %v3197 = vsub.f32 %v1637, %v2927
  %v3198 = vsub.f32 %v1640, %v2930
  %v3199 = vsub.f32 %v1645, %v2933
  %v3200 = vsub.f32 %v1648, %v2936
  %v3201 = vsub.f32 %v1702, %v2939
  %v3202 = vsub.f32 %v1705, %v2942
  %v3203 = vsub.f32 %v1710, %v2945
  %v3204 = vsub.f32 %v1713, %v2948
  %v3205 = vsub.f32 %v1767, %v2951
  %v3206 = vsub.f32 %v1770, %v2954
  %v3207 = vsub.f32 %v1775, %v2957
  %v3208 = vsub.f32 %v1778, %v2960
  %v3209 = vsub.f32 %v1832, %v2963
  %v3210 = vsub.f32 %v1835, %v2966
  %v3211 = vsub.f32 %v1840, %v2969
  %v3212 = vsub.f32 %v1843, %v2972
  %v3213 = vsub.f32 %v1897, %v2975
  %v3214 = vsub.f32 %v1900, %v2978
  %v3215 = vsub.f32 %v1905, %v2981
  %v3216 = vsub.f32 %v1908, %v2984
  %v3217 = vsub.f32 %v1962, %v2987
  %v3218 = vsub.f32 %v1965, %v2990
  %v3219 = vsub.f32 %v1970, %v2993
  %v3220 = vsub.f32 %v1973, %v2996
  %v3221 = vsub.f32 %v2027, %v2999
  %v3222 = vsub.f32 %v2030, %v3002
  %v3223 = vsub.f32 %v2035, %v3005
  %v3224 = vsub.f32 %v2038, %v3008
  %v3225 = vsub.f32 %v2092, %v3011
  %v3226 = vsub.f32 %v2095, %v3014
  %v3227 = vsub.f32 %v2100, %v3017
  %v3228 = vsub.f32 %v2103, %v3020
  %v3229 = vsub.f32 %v2157, %v3023
  %v3230 = vsub.f32 %v2160, %v3026
  %v3231 = vsub.f32 %v2165, %v3029
  %v3232 = vsub.f32 %v2168, %v3032
  %v3233 = vsub.f32 %v2222, %v3035
  %v3234 = vsub.f32 %v2225, %v3038
  %v3235 = vsub.f32 %v2230, %v3041
  %v3236 = vsub.f32 %v2233, %v3044
  %v3237 = vsub.f32 %v2287, %v3047
  %v3238 = vsub.f32 %v2290, %v3050
  %v3239 = vsub.f32 %v2295, %v3053
  %v3240 = vsub.f32 %v2298, %v3056
  %v3241 = vsub.f32 %v2352, %v3059
  %v3242 = vsub.f32 %v2355, %v3062
  %v3243 = vsub.f32 %v2360, %v3065
  %v3244 = vsub.f32 %v2363, %v3068
  %v3245 = vsub.f32 %v2417, %v3071
  %v3246 = vsub.f32 %v2420, %v3074
  %v3247 = vsub.f32 %v2425, %v3077
  %v3248 = vsub.f32 %v2428, %v3080
  %v3249 = vsub.f32 %v2482, %v3083
  %v3250 = vsub.f32 %v2485, %v3086
  %v3251 = vsub.f32 %v2490, %v3089
  %v3252 = vsub.f32 %v2493, %v3092
  %v3253 = vsub.f32 %v2547, %v3095
  %v3254 = vsub.f32 %v2550, %v3098
  %v3255 = vsub.f32 %v2555, %v3101
  %v3256 = vsub.f32 %v2558, %v3104
  %v3257 = vsub.f32 %v2612, %v3107
  %v3258 = vsub.f32 %v2615, %v3110
  %v3259 = vsub.f32 %v2620, %v3113
  %v3260 = vsub.f32 %v2623, %v3116
  %v3261 = vsub.f32 %v2677, %v3119
  %v3262 = vsub.f32 %v2680, %v3122
  %v3263 = vsub.f32 %v2685, %v3125
  %v3264 = vsub.f32 %v2688, %v3128
  %v3265 = vsub.f32 %v2742, %v3131
  %v3266 = vsub.f32 %v2745, %v3134
  %v3267 = vsub.f32 %v2750, %v3137
  %v3268 = vsub.f32 %v2753, %v3140
  %v3269 = vmul.f32 %v3141, 1.442695
  %v3270 = vpow.pop %v3269
  %v3271 = vmul.f32 %v3142, 1.442695
  %v3272 = vpow.pop %v3271
  %v3273 = vmul.f32 %v3143, 1.442695
  %v3274 = vpow.pop %v3273
  %v3275 = vmul.f32 %v3144, 1.442695
  %v3276 = vpow.pop %v3275
  %v3277 = vmul.f32 %v3145, 1.442695
  %v3278 = vpow.pop %v3277
  %v3279 = vmul.f32 %v3146, 1.442695
  %v3280 = vpow.pop %v3279
  %v3281 = vmul.f32 %v3147, 1.442695
  %v3282 = vpow.pop %v3281
  %v3283 = vmul.f32 %v3148, 1.442695
  %v3284 = vpow.pop %v3283
  %v3285 = vmul.f32 %v3149, 1.442695
  %v3286 = vpow.pop %v3285
  %v3287 = vmul.f32 %v3150, 1.442695
  %v3288 = vpow.pop %v3287
  %v3289 = vmul.f32 %v3151, 1.442695
  %v3290 = vpow.pop %v3289
  %v3291 = vmul.f32 %v3152, 1.442695
  %v3292 = vpow.pop %v3291
  %v3293 = vmul.f32 %v3153, 1.442695
  %v3294 = vpow.pop %v3293
  %v3295 = vmul.f32 %v3154, 1.442695
  %v3296 = vpow.pop %v3295
  %v3297 = vmul.f32 %v3155, 1.442695
  %v3298 = vpow.pop %v3297
  %v3299 = vmul.f32 %v3156, 1.442695
  %v3300 = vpow.pop %v3299
  %v3301 = vmul.f32 %v3157, 1.442695
  %v3302 = vpow.pop %v3301
  %v3303 = vmul.f32 %v3158, 1.442695
  %v3304 = vpow.pop %v3303
  %v3305 = vmul.f32 %v3159, 1.442695
  %v3306 = vpow.pop %v3305
  %v3307 = vmul.f32 %v3160, 1.442695
  %v3308 = vpow.pop %v3307
  %v3309 = vmul.f32 %v3161, 1.442695
  %v3310 = vpow.pop %v3309
  %v3311 = vmul.f32 %v3162, 1.442695
  %v3312 = vpow.pop %v3311
  %v3313 = vmul.f32 %v3163, 1.442695
  %v3314 = vpow.pop %v3313
  %v3315 = vmul.f32 %v3164, 1.442695
  %v3316 = vpow.pop %v3315
  %v3317 = vmul.f32 %v3165, 1.442695
  %v3318 = vpow.pop %v3317
  %v3319 = vmul.f32 %v3166, 1.442695
  %v3320 = vpow.pop %v3319
  %v3321 = vmul.f32 %v3167, 1.442695
  %v3322 = vpow.pop %v3321
  %v3323 = vmul.f32 %v3168, 1.442695
  %v3324 = vpow.pop %v3323
  %v3325 = vmul.f32 %v3169, 1.442695
  %v3326 = vpow.pop %v3325
  %v3327 = vmul.f32 %v3170, 1.442695
  %v3328 = vpow.pop %v3327
  %v3329 = vmul.f32 %v3171, 1.442695
  %v3330 = vpow.pop %v3329
  %v3331 = vmul.f32 %v3172, 1.442695
  %v3332 = vpow.pop %v3331
  %v3333 = vmul.f32 %v3173, 1.442695
  %v3334 = vpow.pop %v3333
  %v3335 = vmul.f32 %v3174, 1.442695
  %v3336 = vpow.pop %v3335
  %v3337 = vmul.f32 %v3175, 1.442695
  %v3338 = vpow.pop %v3337
  %v3339 = vmul.f32 %v3176, 1.442695
  %v3340 = vpow.pop %v3339
  %v3341 = vmul.f32 %v3177, 1.442695
  %v3342 = vpow.pop %v3341
  %v3343 = vmul.f32 %v3178, 1.442695
  %v3344 = vpow.pop %v3343
  %v3345 = vmul.f32 %v3179, 1.442695
  %v3346 = vpow.pop %v3345
  %v3347 = vmul.f32 %v3180, 1.442695
  %v3348 = vpow.pop %v3347
  %v3349 = vmul.f32 %v3181, 1.442695
  %v3350 = vpow.pop %v3349
  %v3351 = vmul.f32 %v3182, 1.442695
  %v3352 = vpow.pop %v3351
  %v3353 = vmul.f32 %v3183, 1.442695
  %v3354 = vpow.pop %v3353
  %v3355 = vmul.f32 %v3184, 1.442695
  %v3356 = vpow.pop %v3355
  %v3357 = vmul.f32 %v3185, 1.442695
  %v3358 = vpow.pop %v3357
  %v3359 = vmul.f32 %v3186, 1.442695
  %v3360 = vpow.pop %v3359
  %v3361 = vmul.f32 %v3187, 1.442695
  %v3362 = vpow.pop %v3361
  %v3363 = vmul.f32 %v3188, 1.442695
  %v3364 = vpow.pop %v3363
  %v3365 = vmul.f32 %v3189, 1.442695
  %v3366 = vpow.pop %v3365
  %v3367 = vmul.f32 %v3190, 1.442695
  %v3368 = vpow.pop %v3367
  %v3369 = vmul.f32 %v3191, 1.442695
  %v3370 = vpow.pop %v3369
  %v3371 = vmul.f32 %v3192, 1.442695
  %v3372 = vpow.pop %v3371
  %v3373 = vmul.f32 %v3193, 1.442695
  %v3374 = vpow.pop %v3373
  %v3375 = vmul.f32 %v3194, 1.442695
  %v3376 = vpow.pop %v3375
  %v3377 = vmul.f32 %v3195, 1.442695
  %v3378 = vpow.pop %v3377
  %v3379 = vmul.f32 %v3196, 1.442695
  %v3380 = vpow.pop %v3379
  %v3381 = vmul.f32 %v3197, 1.442695
  %v3382 = vpow.pop %v3381
  %v3383 = vmul.f32 %v3198, 1.442695
  %v3384 = vpow.pop %v3383
  %v3385 = vmul.f32 %v3199, 1.442695
  %v3386 = vpow.pop %v3385
  %v3387 = vmul.f32 %v3200, 1.442695
  %v3388 = vpow.pop %v3387
  %v3389 = vmul.f32 %v3201, 1.442695
  %v3390 = vpow.pop %v3389
  %v3391 = vmul.f32 %v3202, 1.442695
  %v3392 = vpow.pop %v3391
  %v3393 = vmul.f32 %v3203, 1.442695
  %v3394 = vpow.pop %v3393
  %v3395 = vmul.f32 %v3204, 1.442695
  %v3396 = vpow.pop %v3395
  %v3397 = vmul.f32 %v3205, 1.442695
  %v3398 = vpow.pop %v3397
  %v3399 = vmul.f32 %v3206, 1.442695
  %v3400 = vpow.pop %v3399
  %v3401 = vmul.f32 %v3207, 1.442695
  %v3402 = vpow.pop %v3401
  %v3403 = vmul.f32 %v3208, 1.442695
  %v3404 = vpow.pop %v3403
  %v3405 = vmul.f32 %v3209, 1.442695
  %v3406 = vpow.pop %v3405
  %v3407 = vmul.f32 %v3210, 1.442695
  %v3408 = vpow.pop %v3407
  %v3409 = vmul.f32 %v3211, 1.442695
  %v3410 = vpow.pop %v3409
  %v3411 = vmul.f32 %v3212, 1.442695
  %v3412 = vpow.pop %v3411
  %v3413 = vmul.f32 %v3213, 1.442695
  %v3414 = vpow.pop %v3413
  %v3415 = vmul.f32 %v3214, 1.442695
  %v3416 = vpow.pop %v3415
  %v3417 = vmul.f32 %v3215, 1.442695
  %v3418 = vpow.pop %v3417
  %v3419 = vmul.f32 %v3216, 1.442695
  %v3420 = vpow.pop %v3419
  %v3421 = vmul.f32 %v3217, 1.442695
  %v3422 = vpow.pop %v3421
  %v3423 = vmul.f32 %v3218, 1.442695
  %v3424 = vpow.pop %v3423
  %v3425 = vmul.f32 %v3219, 1.442695
  %v3426 = vpow.pop %v3425
  %v3427 = vmul.f32 %v3220, 1.442695
  %v3428 = vpow.pop %v3427
  %v3429 = vmul.f32 %v3221, 1.442695
  %v3430 = vpow.pop %v3429
  %v3431 = vmul.f32 %v3222, 1.442695
  %v3432 = vpow.pop %v3431
  %v3433 = vmul.f32 %v3223, 1.442695
  %v3434 = vpow.pop %v3433
  %v3435 = vmul.f32 %v3224, 1.442695
  %v3436 = vpow.pop %v3435
  %v3437 = vmul.f32 %v3225, 1.442695
  %v3438 = vpow.pop %v3437
  %v3439 = vmul.f32 %v3226, 1.442695
  %v3440 = vpow.pop %v3439
  %v3441 = vmul.f32 %v3227, 1.442695
  %v3442 = vpow.pop %v3441
  %v3443 = vmul.f32 %v3228, 1.442695
  %v3444 = vpow.pop %v3443
  %v3445 = vmul.f32 %v3229, 1.442695
  %v3446 = vpow.pop %v3445
  %v3447 = vmul.f32 %v3230, 1.442695
  %v3448 = vpow.pop %v3447
  %v3449 = vmul.f32 %v3231, 1.442695
  %v3450 = vpow.pop %v3449
  %v3451 = vmul.f32 %v3232, 1.442695
  %v3452 = vpow.pop %v3451
  %v3453 = vmul.f32 %v3233, 1.442695
  %v3454 = vpow.pop %v3453
  %v3455 = vmul.f32 %v3234, 1.442695
  %v3456 = vpow.pop %v3455
  %v3457 = vmul.f32 %v3235, 1.442695
  %v3458 = vpow.pop %v3457
  %v3459 = vmul.f32 %v3236, 1.442695
  %v3460 = vpow.pop %v3459
  %v3461 = vmul.f32 %v3237, 1.442695
  %v3462 = vpow.pop %v3461
  %v3463 = vmul.f32 %v3238, 1.442695
  %v3464 = vpow.pop %v3463
  %v3465 = vmul.f32 %v3239, 1.442695
  %v3466 = vpow.pop %v3465
  %v3467 = vmul.f32 %v3240, 1.442695
  %v3468 = vpow.pop %v3467
  %v3469 = vmul.f32 %v3241, 1.442695
  %v3470 = vpow.pop %v3469
  %v3471 = vmul.f32 %v3242, 1.442695
  %v3472 = vpow.pop %v3471
  %v3473 = vmul.f32 %v3243, 1.442695
  %v3474 = vpow.pop %v3473
  %v3475 = vmul.f32 %v3244, 1.442695
  %v3476 = vpow.pop %v3475
  %v3477 = vmul.f32 %v3245, 1.442695
  %v3478 = vpow.pop %v3477
  %v3479 = vmul.f32 %v3246, 1.442695
  %v3480 = vpow.pop %v3479
  %v3481 = vmul.f32 %v3247, 1.442695
  %v3482 = vpow.pop %v3481
  %v3483 = vmul.f32 %v3248, 1.442695
  %v3484 = vpow.pop %v3483
  %v3485 = vmul.f32 %v3249, 1.442695
  %v3486 = vpow.pop %v3485
  %v3487 = vmul.f32 %v3250, 1.442695
  %v3488 = vpow.pop %v3487
  %v3489 = vmul.f32 %v3251, 1.442695
  %v3490 = vpow.pop %v3489
  %v3491 = vmul.f32 %v3252, 1.442695
  %v3492 = vpow.pop %v3491
  %v3493 = vmul.f32 %v3253, 1.442695
  %v3494 = vpow.pop %v3493
  %v3495 = vmul.f32 %v3254, 1.442695
  %v3496 = vpow.pop %v3495
  %v3497 = vmul.f32 %v3255, 1.442695
  %v3498 = vpow.pop %v3497
  %v3499 = vmul.f32 %v3256, 1.442695
  %v3500 = vpow.pop %v3499
  %v3501 = vmul.f32 %v3257, 1.442695
  %v3502 = vpow.pop %v3501
  %v3503 = vmul.f32 %v3258, 1.442695
  %v3504 = vpow.pop %v3503
  %v3505 = vmul.f32 %v3259, 1.442695
  %v3506 = vpow.pop %v3505
  %v3507 = vmul.f32 %v3260, 1.442695
  %v3508 = vpow.pop %v3507
  %v3509 = vmul.f32 %v3261, 1.442695
  %v3510 = vpow.pop %v3509
  %v3511 = vmul.f32 %v3262, 1.442695
  %v3512 = vpow.pop %v3511
  %v3513 = vmul.f32 %v3263, 1.442695
  %v3514 = vpow.pop %v3513
  %v3515 = vmul.f32 %v3264, 1.442695
  %v3516 = vpow.pop %v3515
  %v3517 = vmul.f32 %v3265, 1.442695
  %v3518 = vpow.pop %v3517
  %v3519 = vmul.f32 %v3266, 1.442695
  %v3520 = vpow.pop %v3519
  %v3521 = vmul.f32 %v3267, 1.442695
  %v3522 = vpow.pop %v3521
  %v3523 = vmul.f32 %v3268, 1.442695
  %v3524 = vpow.pop %v3523
  %v3525 = vsel %vm2756, %v3270, 0.0
  %3526 = vadd.xlane.f32.xlu0 %v3525
  %v3527 = vpop.xlane.xlu0 %3526
  %v3528 = vsel %vm2756, %v3272, 0.0
  %3529 = vadd.xlane.f32.xlu0 %v3528
  %v3530 = vpop.xlane.xlu0 %3529
  %v3531 = vsel %vm2756, %v3274, 0.0
  %3532 = vadd.xlane.f32.xlu0 %v3531
  %v3533 = vpop.xlane.xlu0 %3532
  %v3534 = vsel %vm2756, %v3276, 0.0
  %3535 = vadd.xlane.f32.xlu0 %v3534
  %v3536 = vpop.xlane.xlu0 %3535
  %v3537 = vsel %vm2756, %v3278, 0.0
  %3538 = vadd.xlane.f32.xlu0 %v3537
  %v3539 = vpop.xlane.xlu0 %3538
  %v3540 = vsel %vm2756, %v3280, 0.0
  %3541 = vadd.xlane.f32.xlu0 %v3540
  %v3542 = vpop.xlane.xlu0 %3541
  %v3543 = vsel %vm2756, %v3282, 0.0
  %3544 = vadd.xlane.f32.xlu0 %v3543
  %v3545 = vpop.xlane.xlu0 %3544
  %v3546 = vsel %vm2756, %v3284, 0.0
  %3547 = vadd.xlane.f32.xlu0 %v3546
  %v3548 = vpop.xlane.xlu0 %3547
  %v3549 = vsel %vm2756, %v3286, 0.0
  %3550 = vadd.xlane.f32.xlu0 %v3549
  %v3551 = vpop.xlane.xlu0 %3550
  %v3552 = vsel %vm2756, %v3288, 0.0
  %3553 = vadd.xlane.f32.xlu0 %v3552
  %v3554 = vpop.xlane.xlu0 %3553
  %v3555 = vsel %vm2756, %v3290, 0.0
  %3556 = vadd.xlane.f32.xlu0 %v3555
  %v3557 = vpop.xlane.xlu0 %3556
  %v3558 = vsel %vm2756, %v3292, 0.0
  %3559 = vadd.xlane.f32.xlu0 %v3558
  %v3560 = vpop.xlane.xlu0 %3559
  %v3561 = vsel %vm2756, %v3294, 0.0
  %3562 = vadd.xlane.f32.xlu0 %v3561
  %v3563 = vpop.xlane.xlu0 %3562
  %v3564 = vsel %vm2756, %v3296, 0.0
  %3565 = vadd.xlane.f32.xlu0 %v3564
  %v3566 = vpop.xlane.xlu0 %3565
  %v3567 = vsel %vm2756, %v3298, 0.0
  %3568 = vadd.xlane.f32.xlu0 %v3567
  %v3569 = vpop.xlane.xlu0 %3568
  %v3570 = vsel %vm2756, %v3300, 0.0
  %3571 = vadd.xlane.f32.xlu0 %v3570
  %v3572 = vpop.xlane.xlu0 %3571
  %v3573 = vsel %vm2756, %v3302, 0.0
  %3574 = vadd.xlane.f32.xlu0 %v3573
  %v3575 = vpop.xlane.xlu0 %3574
  %v3576 = vsel %vm2756, %v3304, 0.0
  %3577 = vadd.xlane.f32.xlu0 %v3576
  %v3578 = vpop.xlane.xlu0 %3577
  %v3579 = vsel %vm2756, %v3306, 0.0
  %3580 = vadd.xlane.f32.xlu0 %v3579
  %v3581 = vpop.xlane.xlu0 %3580
  %v3582 = vsel %vm2756, %v3308, 0.0
  %3583 = vadd.xlane.f32.xlu0 %v3582
  %v3584 = vpop.xlane.xlu0 %3583
  %v3585 = vsel %vm2756, %v3310, 0.0
  %3586 = vadd.xlane.f32.xlu0 %v3585
  %v3587 = vpop.xlane.xlu0 %3586
  %v3588 = vsel %vm2756, %v3312, 0.0
  %3589 = vadd.xlane.f32.xlu0 %v3588
  %v3590 = vpop.xlane.xlu0 %3589
  %v3591 = vsel %vm2756, %v3314, 0.0
  %3592 = vadd.xlane.f32.xlu0 %v3591
  %v3593 = vpop.xlane.xlu0 %3592
  %v3594 = vsel %vm2756, %v3316, 0.0
  %3595 = vadd.xlane.f32.xlu0 %v3594
  %v3596 = vpop.xlane.xlu0 %3595
  %v3597 = vsel %vm2756, %v3318, 0.0
  %3598 = vadd.xlane.f32.xlu0 %v3597
  %v3599 = vpop.xlane.xlu0 %3598
  %v3600 = vsel %vm2756, %v3320, 0.0
  %3601 = vadd.xlane.f32.xlu0 %v3600
  %v3602 = vpop.xlane.xlu0 %3601
  %v3603 = vsel %vm2756, %v3322, 0.0
  %3604 = vadd.xlane.f32.xlu0 %v3603
  %v3605 = vpop.xlane.xlu0 %3604
  %v3606 = vsel %vm2756, %v3324, 0.0
  %3607 = vadd.xlane.f32.xlu0 %v3606
  %v3608 = vpop.xlane.xlu0 %3607
  %v3609 = vsel %vm2756, %v3326, 0.0
  %3610 = vadd.xlane.f32.xlu0 %v3609
  %v3611 = vpop.xlane.xlu0 %3610
  %v3612 = vsel %vm2756, %v3328, 0.0
  %3613 = vadd.xlane.f32.xlu0 %v3612
  %v3614 = vpop.xlane.xlu0 %3613
  %v3615 = vsel %vm2756, %v3330, 0.0
  %3616 = vadd.xlane.f32.xlu0 %v3615
  %v3617 = vpop.xlane.xlu0 %3616
  %v3618 = vsel %vm2756, %v3332, 0.0
  %3619 = vadd.xlane.f32.xlu0 %v3618
  %v3620 = vpop.xlane.xlu0 %3619
  %v3621 = vsel %vm2756, %v3334, 0.0
  %3622 = vadd.xlane.f32.xlu0 %v3621
  %v3623 = vpop.xlane.xlu0 %3622
  %v3624 = vsel %vm2756, %v3336, 0.0
  %3625 = vadd.xlane.f32.xlu0 %v3624
  %v3626 = vpop.xlane.xlu0 %3625
  %v3627 = vsel %vm2756, %v3338, 0.0
  %3628 = vadd.xlane.f32.xlu0 %v3627
  %v3629 = vpop.xlane.xlu0 %3628
  %v3630 = vsel %vm2756, %v3340, 0.0
  %3631 = vadd.xlane.f32.xlu0 %v3630
  %v3632 = vpop.xlane.xlu0 %3631
  %v3633 = vsel %vm2756, %v3342, 0.0
  %3634 = vadd.xlane.f32.xlu0 %v3633
  %v3635 = vpop.xlane.xlu0 %3634
  %v3636 = vsel %vm2756, %v3344, 0.0
  %3637 = vadd.xlane.f32.xlu0 %v3636
  %v3638 = vpop.xlane.xlu0 %3637
  %v3639 = vsel %vm2756, %v3346, 0.0
  %3640 = vadd.xlane.f32.xlu0 %v3639
  %v3641 = vpop.xlane.xlu0 %3640
  %v3642 = vsel %vm2756, %v3348, 0.0
  %3643 = vadd.xlane.f32.xlu0 %v3642
  %v3644 = vpop.xlane.xlu0 %3643
  %v3645 = vsel %vm2756, %v3350, 0.0
  %3646 = vadd.xlane.f32.xlu0 %v3645
  %v3647 = vpop.xlane.xlu0 %3646
  %v3648 = vsel %vm2756, %v3352, 0.0
  %3649 = vadd.xlane.f32.xlu0 %v3648
  %v3650 = vpop.xlane.xlu0 %3649
  %v3651 = vsel %vm2756, %v3354, 0.0
  %3652 = vadd.xlane.f32.xlu0 %v3651
  %v3653 = vpop.xlane.xlu0 %3652
  %v3654 = vsel %vm2756, %v3356, 0.0
  %3655 = vadd.xlane.f32.xlu0 %v3654
  %v3656 = vpop.xlane.xlu0 %3655
  %v3657 = vsel %vm2756, %v3358, 0.0
  %3658 = vadd.xlane.f32.xlu0 %v3657
  %v3659 = vpop.xlane.xlu0 %3658
  %v3660 = vsel %vm2756, %v3360, 0.0
  %3661 = vadd.xlane.f32.xlu0 %v3660
  %v3662 = vpop.xlane.xlu0 %3661
  %v3663 = vsel %vm2756, %v3362, 0.0
  %3664 = vadd.xlane.f32.xlu0 %v3663
  %v3665 = vpop.xlane.xlu0 %3664
  %v3666 = vsel %vm2756, %v3364, 0.0
  %3667 = vadd.xlane.f32.xlu0 %v3666
  %v3668 = vpop.xlane.xlu0 %3667
  %v3669 = vsel %vm2756, %v3366, 0.0
  %3670 = vadd.xlane.f32.xlu0 %v3669
  %v3671 = vpop.xlane.xlu0 %3670
  %v3672 = vsel %vm2756, %v3368, 0.0
  %3673 = vadd.xlane.f32.xlu0 %v3672
  %v3674 = vpop.xlane.xlu0 %3673
  %v3675 = vsel %vm2756, %v3370, 0.0
  %3676 = vadd.xlane.f32.xlu0 %v3675
  %v3677 = vpop.xlane.xlu0 %3676
  %v3678 = vsel %vm2756, %v3372, 0.0
  %3679 = vadd.xlane.f32.xlu0 %v3678
  %v3680 = vpop.xlane.xlu0 %3679
  %v3681 = vsel %vm2756, %v3374, 0.0
  %3682 = vadd.xlane.f32.xlu0 %v3681
  %v3683 = vpop.xlane.xlu0 %3682
  %v3684 = vsel %vm2756, %v3376, 0.0
  %3685 = vadd.xlane.f32.xlu0 %v3684
  %v3686 = vpop.xlane.xlu0 %3685
  %v3687 = vsel %vm2756, %v3378, 0.0
  %3688 = vadd.xlane.f32.xlu0 %v3687
  %v3689 = vpop.xlane.xlu0 %3688
  %v3690 = vsel %vm2756, %v3380, 0.0
  %3691 = vadd.xlane.f32.xlu0 %v3690
  %v3692 = vpop.xlane.xlu0 %3691
  %v3693 = vsel %vm2756, %v3382, 0.0
  %3694 = vadd.xlane.f32.xlu0 %v3693
  %v3695 = vpop.xlane.xlu0 %3694
  %v3696 = vsel %vm2756, %v3384, 0.0
  %3697 = vadd.xlane.f32.xlu0 %v3696
  %v3698 = vpop.xlane.xlu0 %3697
  %v3699 = vsel %vm2756, %v3386, 0.0
  %3700 = vadd.xlane.f32.xlu0 %v3699
  %v3701 = vpop.xlane.xlu0 %3700
  %v3702 = vsel %vm2756, %v3388, 0.0
  %3703 = vadd.xlane.f32.xlu0 %v3702
  %v3704 = vpop.xlane.xlu0 %3703
  %v3705 = vsel %vm2756, %v3390, 0.0
  %3706 = vadd.xlane.f32.xlu0 %v3705
  %v3707 = vpop.xlane.xlu0 %3706
  %v3708 = vsel %vm2756, %v3392, 0.0
  %3709 = vadd.xlane.f32.xlu0 %v3708
  %v3710 = vpop.xlane.xlu0 %3709
  %v3711 = vsel %vm2756, %v3394, 0.0
  %3712 = vadd.xlane.f32.xlu0 %v3711
  %v3713 = vpop.xlane.xlu0 %3712
  %v3714 = vsel %vm2756, %v3396, 0.0
  %3715 = vadd.xlane.f32.xlu0 %v3714
  %v3716 = vpop.xlane.xlu0 %3715
  %v3717 = vsel %vm2756, %v3398, 0.0
  %3718 = vadd.xlane.f32.xlu0 %v3717
  %v3719 = vpop.xlane.xlu0 %3718
  %v3720 = vsel %vm2756, %v3400, 0.0
  %3721 = vadd.xlane.f32.xlu0 %v3720
  %v3722 = vpop.xlane.xlu0 %3721
  %v3723 = vsel %vm2756, %v3402, 0.0
  %3724 = vadd.xlane.f32.xlu0 %v3723
  %v3725 = vpop.xlane.xlu0 %3724
  %v3726 = vsel %vm2756, %v3404, 0.0
  %3727 = vadd.xlane.f32.xlu0 %v3726
  %v3728 = vpop.xlane.xlu0 %3727
  %v3729 = vsel %vm2756, %v3406, 0.0
  %3730 = vadd.xlane.f32.xlu0 %v3729
  %v3731 = vpop.xlane.xlu0 %3730
  %v3732 = vsel %vm2756, %v3408, 0.0
  %3733 = vadd.xlane.f32.xlu0 %v3732
  %v3734 = vpop.xlane.xlu0 %3733
  %v3735 = vsel %vm2756, %v3410, 0.0
  %3736 = vadd.xlane.f32.xlu0 %v3735
  %v3737 = vpop.xlane.xlu0 %3736
  %v3738 = vsel %vm2756, %v3412, 0.0
  %3739 = vadd.xlane.f32.xlu0 %v3738
  %v3740 = vpop.xlane.xlu0 %3739
  %v3741 = vsel %vm2756, %v3414, 0.0
  %3742 = vadd.xlane.f32.xlu0 %v3741
  %v3743 = vpop.xlane.xlu0 %3742
  %v3744 = vsel %vm2756, %v3416, 0.0
  %3745 = vadd.xlane.f32.xlu0 %v3744
  %v3746 = vpop.xlane.xlu0 %3745
  %v3747 = vsel %vm2756, %v3418, 0.0
  %3748 = vadd.xlane.f32.xlu0 %v3747
  %v3749 = vpop.xlane.xlu0 %3748
  %v3750 = vsel %vm2756, %v3420, 0.0
  %3751 = vadd.xlane.f32.xlu0 %v3750
  %v3752 = vpop.xlane.xlu0 %3751
  %v3753 = vsel %vm2756, %v3422, 0.0
  %3754 = vadd.xlane.f32.xlu0 %v3753
  %v3755 = vpop.xlane.xlu0 %3754
  %v3756 = vsel %vm2756, %v3424, 0.0
  %3757 = vadd.xlane.f32.xlu0 %v3756
  %v3758 = vpop.xlane.xlu0 %3757
  %v3759 = vsel %vm2756, %v3426, 0.0
  %3760 = vadd.xlane.f32.xlu0 %v3759
  %v3761 = vpop.xlane.xlu0 %3760
  %v3762 = vsel %vm2756, %v3428, 0.0
  %3763 = vadd.xlane.f32.xlu0 %v3762
  %v3764 = vpop.xlane.xlu0 %3763
  %v3765 = vsel %vm2756, %v3430, 0.0
  %3766 = vadd.xlane.f32.xlu0 %v3765
  %v3767 = vpop.xlane.xlu0 %3766
  %v3768 = vsel %vm2756, %v3432, 0.0
  %3769 = vadd.xlane.f32.xlu0 %v3768
  %v3770 = vpop.xlane.xlu0 %3769
  %v3771 = vsel %vm2756, %v3434, 0.0
  %3772 = vadd.xlane.f32.xlu0 %v3771
  %v3773 = vpop.xlane.xlu0 %3772
  %v3774 = vsel %vm2756, %v3436, 0.0
  %3775 = vadd.xlane.f32.xlu0 %v3774
  %v3776 = vpop.xlane.xlu0 %3775
  %v3777 = vsel %vm2756, %v3438, 0.0
  %3778 = vadd.xlane.f32.xlu0 %v3777
  %v3779 = vpop.xlane.xlu0 %3778
  %v3780 = vsel %vm2756, %v3440, 0.0
  %3781 = vadd.xlane.f32.xlu0 %v3780
  %v3782 = vpop.xlane.xlu0 %3781
  %v3783 = vsel %vm2756, %v3442, 0.0
  %3784 = vadd.xlane.f32.xlu0 %v3783
  %v3785 = vpop.xlane.xlu0 %3784
  %v3786 = vsel %vm2756, %v3444, 0.0
  %3787 = vadd.xlane.f32.xlu0 %v3786
  %v3788 = vpop.xlane.xlu0 %3787
  %v3789 = vsel %vm2756, %v3446, 0.0
  %3790 = vadd.xlane.f32.xlu0 %v3789
  %v3791 = vpop.xlane.xlu0 %3790
  %v3792 = vsel %vm2756, %v3448, 0.0
  %3793 = vadd.xlane.f32.xlu0 %v3792
  %v3794 = vpop.xlane.xlu0 %3793
  %v3795 = vsel %vm2756, %v3450, 0.0
  %3796 = vadd.xlane.f32.xlu0 %v3795
  %v3797 = vpop.xlane.xlu0 %3796
  %v3798 = vsel %vm2756, %v3452, 0.0
  %3799 = vadd.xlane.f32.xlu0 %v3798
  %v3800 = vpop.xlane.xlu0 %3799
  %v3801 = vsel %vm2756, %v3454, 0.0
  %3802 = vadd.xlane.f32.xlu0 %v3801
  %v3803 = vpop.xlane.xlu0 %3802
  %v3804 = vsel %vm2756, %v3456, 0.0
  %3805 = vadd.xlane.f32.xlu0 %v3804
  %v3806 = vpop.xlane.xlu0 %3805
  %v3807 = vsel %vm2756, %v3458, 0.0
  %3808 = vadd.xlane.f32.xlu0 %v3807
  %v3809 = vpop.xlane.xlu0 %3808
  %v3810 = vsel %vm2756, %v3460, 0.0
  %3811 = vadd.xlane.f32.xlu0 %v3810
  %v3812 = vpop.xlane.xlu0 %3811
  %v3813 = vsel %vm2756, %v3462, 0.0
  %3814 = vadd.xlane.f32.xlu0 %v3813
  %v3815 = vpop.xlane.xlu0 %3814
  %v3816 = vsel %vm2756, %v3464, 0.0
  %3817 = vadd.xlane.f32.xlu0 %v3816
  %v3818 = vpop.xlane.xlu0 %3817
  %v3819 = vsel %vm2756, %v3466, 0.0
  %3820 = vadd.xlane.f32.xlu0 %v3819
  %v3821 = vpop.xlane.xlu0 %3820
  %v3822 = vsel %vm2756, %v3468, 0.0
  %3823 = vadd.xlane.f32.xlu0 %v3822
  %v3824 = vpop.xlane.xlu0 %3823
  %v3825 = vsel %vm2756, %v3470, 0.0
  %3826 = vadd.xlane.f32.xlu0 %v3825
  %v3827 = vpop.xlane.xlu0 %3826
  %v3828 = vsel %vm2756, %v3472, 0.0
  %3829 = vadd.xlane.f32.xlu0 %v3828
  %v3830 = vpop.xlane.xlu0 %3829
  %v3831 = vsel %vm2756, %v3474, 0.0
  %3832 = vadd.xlane.f32.xlu0 %v3831
  %v3833 = vpop.xlane.xlu0 %3832
  %v3834 = vsel %vm2756, %v3476, 0.0
  %3835 = vadd.xlane.f32.xlu0 %v3834
  %v3836 = vpop.xlane.xlu0 %3835
  %v3837 = vsel %vm2756, %v3478, 0.0
  %3838 = vadd.xlane.f32.xlu0 %v3837
  %v3839 = vpop.xlane.xlu0 %3838
  %v3840 = vsel %vm2756, %v3480, 0.0
  %3841 = vadd.xlane.f32.xlu0 %v3840
  %v3842 = vpop.xlane.xlu0 %3841
  %v3843 = vsel %vm2756, %v3482, 0.0
  %3844 = vadd.xlane.f32.xlu0 %v3843
  %v3845 = vpop.xlane.xlu0 %3844
  %v3846 = vsel %vm2756, %v3484, 0.0
  %3847 = vadd.xlane.f32.xlu0 %v3846
  %v3848 = vpop.xlane.xlu0 %3847
  %v3849 = vsel %vm2756, %v3486, 0.0
  %3850 = vadd.xlane.f32.xlu0 %v3849
  %v3851 = vpop.xlane.xlu0 %3850
  %v3852 = vsel %vm2756, %v3488, 0.0
  %3853 = vadd.xlane.f32.xlu0 %v3852
  %v3854 = vpop.xlane.xlu0 %3853
  %v3855 = vsel %vm2756, %v3490, 0.0
  %3856 = vadd.xlane.f32.xlu0 %v3855
  %v3857 = vpop.xlane.xlu0 %3856
  %v3858 = vsel %vm2756, %v3492, 0.0
  %3859 = vadd.xlane.f32.xlu0 %v3858
  %v3860 = vpop.xlane.xlu0 %3859
  %v3861 = vsel %vm2756, %v3494, 0.0
  %3862 = vadd.xlane.f32.xlu0 %v3861
  %v3863 = vpop.xlane.xlu0 %3862
  %v3864 = vsel %vm2756, %v3496, 0.0
  %3865 = vadd.xlane.f32.xlu0 %v3864
  %v3866 = vpop.xlane.xlu0 %3865
  %v3867 = vsel %vm2756, %v3498, 0.0
  %3868 = vadd.xlane.f32.xlu0 %v3867
  %v3869 = vpop.xlane.xlu0 %3868
  %v3870 = vsel %vm2756, %v3500, 0.0
  %3871 = vadd.xlane.f32.xlu0 %v3870
  %v3872 = vpop.xlane.xlu0 %3871
  %v3873 = vsel %vm2756, %v3502, 0.0
  %3874 = vadd.xlane.f32.xlu0 %v3873
  %v3875 = vpop.xlane.xlu0 %3874
  %v3876 = vsel %vm2756, %v3504, 0.0
  %3877 = vadd.xlane.f32.xlu0 %v3876
  %v3878 = vpop.xlane.xlu0 %3877
  %v3879 = vsel %vm2756, %v3506, 0.0
  %3880 = vadd.xlane.f32.xlu0 %v3879
  %v3881 = vpop.xlane.xlu0 %3880
  %v3882 = vsel %vm2756, %v3508, 0.0
  %3883 = vadd.xlane.f32.xlu0 %v3882
  %v3884 = vpop.xlane.xlu0 %3883
  %v3885 = vsel %vm2756, %v3510, 0.0
  %3886 = vadd.xlane.f32.xlu0 %v3885
  %v3887 = vpop.xlane.xlu0 %3886
  %v3888 = vsel %vm2756, %v3512, 0.0
  %3889 = vadd.xlane.f32.xlu0 %v3888
  %v3890 = vpop.xlane.xlu0 %3889
  %v3891 = vsel %vm2756, %v3514, 0.0
  %3892 = vadd.xlane.f32.xlu0 %v3891
  %v3893 = vpop.xlane.xlu0 %3892
  %v3894 = vsel %vm2756, %v3516, 0.0
  %3895 = vadd.xlane.f32.xlu0 %v3894
  %v3896 = vpop.xlane.xlu0 %3895
  %v3897 = vsel %vm2756, %v3518, 0.0
  %3898 = vadd.xlane.f32.xlu0 %v3897
  %v3899 = vpop.xlane.xlu0 %3898
  %v3900 = vsel %vm2756, %v3520, 0.0
  %3901 = vadd.xlane.f32.xlu0 %v3900
  %v3902 = vpop.xlane.xlu0 %3901
  %v3903 = vsel %vm2756, %v3522, 0.0
  %3904 = vadd.xlane.f32.xlu0 %v3903
  %v3905 = vpop.xlane.xlu0 %3904
  %v3906 = vsel %vm2756, %v3524, 0.0
  %3907 = vadd.xlane.f32.xlu0 %v3906
  %v3908 = vpop.xlane.xlu0 %3907
  %v3909 = vpack.c.bf16 %v3272, %v3270
  %v3910 = vpack.c.bf16 %v3276, %v3274
  %v3911 = vpack.c.bf16 %v3280, %v3278
  %v3912 = vpack.c.bf16 %v3284, %v3282
  %v3913 = vpack.c.bf16 %v3288, %v3286
  %v3914 = vpack.c.bf16 %v3292, %v3290
  %v3915 = vpack.c.bf16 %v3296, %v3294
  %v3916 = vpack.c.bf16 %v3300, %v3298
  %v3917 = vpack.c.bf16 %v3304, %v3302
  %v3918 = vpack.c.bf16 %v3308, %v3306
  %v3919 = vpack.c.bf16 %v3312, %v3310
  %v3920 = vpack.c.bf16 %v3316, %v3314
  %v3921 = vpack.c.bf16 %v3320, %v3318
  %v3922 = vpack.c.bf16 %v3324, %v3322
  %v3923 = vpack.c.bf16 %v3328, %v3326
  %v3924 = vpack.c.bf16 %v3332, %v3330
  %v3925 = vpack.c.bf16 %v3336, %v3334
  %v3926 = vpack.c.bf16 %v3340, %v3338
  %v3927 = vpack.c.bf16 %v3344, %v3342
  %v3928 = vpack.c.bf16 %v3348, %v3346
  %v3929 = vpack.c.bf16 %v3352, %v3350
  %v3930 = vpack.c.bf16 %v3356, %v3354
  %v3931 = vpack.c.bf16 %v3360, %v3358
  %v3932 = vpack.c.bf16 %v3364, %v3362
  %v3933 = vpack.c.bf16 %v3368, %v3366
  %v3934 = vpack.c.bf16 %v3372, %v3370
  %v3935 = vpack.c.bf16 %v3376, %v3374
  %v3936 = vpack.c.bf16 %v3380, %v3378
  %v3937 = vpack.c.bf16 %v3384, %v3382
  %v3938 = vpack.c.bf16 %v3388, %v3386
  %v3939 = vpack.c.bf16 %v3392, %v3390
  %v3940 = vpack.c.bf16 %v3396, %v3394
  %v3941 = vpack.c.bf16 %v3400, %v3398
  %v3942 = vpack.c.bf16 %v3404, %v3402
  %v3943 = vpack.c.bf16 %v3408, %v3406
  %v3944 = vpack.c.bf16 %v3412, %v3410
  %v3945 = vpack.c.bf16 %v3416, %v3414
  %v3946 = vpack.c.bf16 %v3420, %v3418
  %v3947 = vpack.c.bf16 %v3424, %v3422
  %v3948 = vpack.c.bf16 %v3428, %v3426
  %v3949 = vpack.c.bf16 %v3432, %v3430
  %v3950 = vpack.c.bf16 %v3436, %v3434
  %v3951 = vpack.c.bf16 %v3440, %v3438
  %v3952 = vpack.c.bf16 %v3444, %v3442
  %v3953 = vpack.c.bf16 %v3448, %v3446
  %v3954 = vpack.c.bf16 %v3452, %v3450
  %v3955 = vpack.c.bf16 %v3456, %v3454
  %v3956 = vpack.c.bf16 %v3460, %v3458
  %v3957 = vpack.c.bf16 %v3464, %v3462
  %v3958 = vpack.c.bf16 %v3468, %v3466
  %v3959 = vpack.c.bf16 %v3472, %v3470
  %v3960 = vpack.c.bf16 %v3476, %v3474
  %v3961 = vpack.c.bf16 %v3480, %v3478
  %v3962 = vpack.c.bf16 %v3484, %v3482
  %v3963 = vpack.c.bf16 %v3488, %v3486
  %v3964 = vpack.c.bf16 %v3492, %v3490
  %v3965 = vpack.c.bf16 %v3496, %v3494
  %v3966 = vpack.c.bf16 %v3500, %v3498
  %v3967 = vpack.c.bf16 %v3504, %v3502
  %v3968 = vpack.c.bf16 %v3508, %v3506
  %v3969 = vpack.c.bf16 %v3512, %v3510
  %v3970 = vpack.c.bf16 %v3516, %v3514
  %v3971 = vpack.c.bf16 %v3520, %v3518
  %v3972 = vpack.c.bf16 %v3524, %v3522
  %v3974 = vsel %vm2756, %v3909, 0
  %v3977 = vsel %vm2756, %v3910, 0
  %3979 = vmatprep.subr.bf16.mxu0 0
  %3980 = vmatpush1.bf16.msra.mxu0 0
  %3981 = vmatprep.subr.bf16.mxu0 0
  %3982 = vmatpush1.bf16.msra.mxu0 0
  %3983 = vmatprep.subr.bf16.mxu0 0
  %3984 = vmatpush1.bf16.msra.mxu0 0
  %3985 = vmatprep.subr.bf16.mxu0 0
  %3986 = vmatpush1.bf16.msra.mxu0 0
  %3987 = vmatprep.subr.bf16.mxu0 0
  %3988 = vmatpush1.bf16.msra.mxu0 0
  %3989 = vmatprep.subr.bf16.mxu0 0
  %3990 = vmatpush1.bf16.msra.mxu0 0
  %3991 = vmatprep.subr.bf16.mxu0 0
  %3992 = vmatpush1.bf16.msra.mxu0 %v359
  %3993 = vmatprep.subr.bf16.mxu0 0
  %3994 = vmatpush1.bf16.msra.mxu0 %v357
  %3995 = vmatprep.subr.bf16.mxu0 0
  %3996 = vmatpush2.bf16.msra.mxu0 0
  %3997 = vmatprep.subr.bf16.mxu0 0
  %3998 = vmatpush2.bf16.msra.mxu0 0
  %3999 = vmatprep.subr.bf16.mxu0 0
  %4000 = vmatpush2.bf16.msra.mxu0 0
  %4001 = vmatprep.subr.bf16.mxu0 0
  %4002 = vmatpush2.bf16.msra.mxu0 0
  %4003 = vmatprep.subr.bf16.mxu0 0
  %4004 = vmatpush2.bf16.msra.mxu0 0
  %4005 = vmatprep.subr.bf16.mxu0 0
  %4006 = vmatpush2.bf16.msra.mxu0 0
  %4007 = vmatprep.subr.bf16.mxu0 0
  %4008 = vmatpush2.bf16.msra.mxu0 0
  %4009 = vmatprep.subr.bf16.mxu0 0
  %4010 = vmatpush2.bf16.msra.mxu0 0
  %4011 = vmatprep.mubr.bf16.mxu0 0
  %4012 = vmatmul.mubr.bf16.gmra.mxu0 %v3974
  %v4013 = vpop.f32.mrf.mxu0
  %v4014 = vadd.f32 0.0, %v4013
  %v4015 = vpop.f32.mrf.mxu0
  %v4016 = vpop.f32.mrf.mxu0
  %v4017 = vadd.f32 0.0, %v4016
  %v4018 = vpop.f32.mrf.mxu0
  %4019 = vmatprep.mubr.bf16.mxu0 0
  %4020 = vmatmul.mubr.bf16.gmra.mxu0 %v3977
  %v4021 = vpop.f32.mrf.mxu0
  %v4022 = vadd.f32 0.0, %v4021
  %v4023 = vpop.f32.mrf.mxu0
  %v4024 = vpop.f32.mrf.mxu0
  %v4025 = vadd.f32 0.0, %v4024
  %v4026 = vpop.f32.mrf.mxu0
  %4027 = vdwg.mxu0
  %v4029 = vsel %vm2756, %v3911, 0
  %v4032 = vsel %vm2756, %v3912, 0
  %4034 = vmatprep.subr.bf16.mxu0 0
  %4035 = vmatpush1.bf16.msra.mxu0 0
  %4036 = vmatprep.subr.bf16.mxu0 0
  %4037 = vmatpush1.bf16.msra.mxu0 0
  %4038 = vmatprep.subr.bf16.mxu0 0
  %4039 = vmatpush1.bf16.msra.mxu0 0
  %4040 = vmatprep.subr.bf16.mxu0 0
  %4041 = vmatpush1.bf16.msra.mxu0 0
  %4042 = vmatprep.subr.bf16.mxu0 0
  %4043 = vmatpush1.bf16.msra.mxu0 0
  %4044 = vmatprep.subr.bf16.mxu0 0
  %4045 = vmatpush1.bf16.msra.mxu0 0
  %4046 = vmatprep.subr.bf16.mxu0 0
  %4047 = vmatpush1.bf16.msra.mxu0 %v363
  %4048 = vmatprep.subr.bf16.mxu0 0
  %4049 = vmatpush1.bf16.msra.mxu0 %v361
  %4050 = vmatprep.subr.bf16.mxu0 0
  %4051 = vmatpush2.bf16.msra.mxu0 0
  %4052 = vmatprep.subr.bf16.mxu0 0
  %4053 = vmatpush2.bf16.msra.mxu0 0
  %4054 = vmatprep.subr.bf16.mxu0 0
  %4055 = vmatpush2.bf16.msra.mxu0 0
  %4056 = vmatprep.subr.bf16.mxu0 0
  %4057 = vmatpush2.bf16.msra.mxu0 0
  %4058 = vmatprep.subr.bf16.mxu0 0
  %4059 = vmatpush2.bf16.msra.mxu0 0
  %4060 = vmatprep.subr.bf16.mxu0 0
  %4061 = vmatpush2.bf16.msra.mxu0 0
  %4062 = vmatprep.subr.bf16.mxu0 0
  %4063 = vmatpush2.bf16.msra.mxu0 0
  %4064 = vmatprep.subr.bf16.mxu0 0
  %4065 = vmatpush2.bf16.msra.mxu0 0
  %4066 = vmatprep.mubr.bf16.mxu0 0
  %4067 = vmatmul.mubr.bf16.gmra.mxu0 %v4029
  %v4068 = vpop.f32.mrf.mxu0
  %v4069 = vadd.f32 0.0, %v4068
  %v4070 = vpop.f32.mrf.mxu0
  %v4071 = vpop.f32.mrf.mxu0
  %v4072 = vadd.f32 0.0, %v4071
  %v4073 = vpop.f32.mrf.mxu0
  %4074 = vmatprep.mubr.bf16.mxu0 0
  %4075 = vmatmul.mubr.bf16.gmra.mxu0 %v4032
  %v4076 = vpop.f32.mrf.mxu0
  %v4077 = vadd.f32 0.0, %v4076
  %v4078 = vpop.f32.mrf.mxu0
  %v4079 = vpop.f32.mrf.mxu0
  %v4080 = vadd.f32 0.0, %v4079
  %v4081 = vpop.f32.mrf.mxu0
  %4082 = vdwg.mxu0
  %v4084 = vsel %vm2756, %v3913, 0
  %v4087 = vsel %vm2756, %v3914, 0
  %4089 = vmatprep.subr.bf16.mxu0 0
  %4090 = vmatpush1.bf16.msra.mxu0 0
  %4091 = vmatprep.subr.bf16.mxu0 0
  %4092 = vmatpush1.bf16.msra.mxu0 0
  %4093 = vmatprep.subr.bf16.mxu0 0
  %4094 = vmatpush1.bf16.msra.mxu0 0
  %4095 = vmatprep.subr.bf16.mxu0 0
  %4096 = vmatpush1.bf16.msra.mxu0 0
  %4097 = vmatprep.subr.bf16.mxu0 0
  %4098 = vmatpush1.bf16.msra.mxu0 0
  %4099 = vmatprep.subr.bf16.mxu0 0
  %4100 = vmatpush1.bf16.msra.mxu0 0
  %4101 = vmatprep.subr.bf16.mxu0 0
  %4102 = vmatpush1.bf16.msra.mxu0 %v367
  %4103 = vmatprep.subr.bf16.mxu0 0
  %4104 = vmatpush1.bf16.msra.mxu0 %v365
  %4105 = vmatprep.subr.bf16.mxu0 0
  %4106 = vmatpush2.bf16.msra.mxu0 0
  %4107 = vmatprep.subr.bf16.mxu0 0
  %4108 = vmatpush2.bf16.msra.mxu0 0
  %4109 = vmatprep.subr.bf16.mxu0 0
  %4110 = vmatpush2.bf16.msra.mxu0 0
  %4111 = vmatprep.subr.bf16.mxu0 0
  %4112 = vmatpush2.bf16.msra.mxu0 0
  %4113 = vmatprep.subr.bf16.mxu0 0
  %4114 = vmatpush2.bf16.msra.mxu0 0
  %4115 = vmatprep.subr.bf16.mxu0 0
  %4116 = vmatpush2.bf16.msra.mxu0 0
  %4117 = vmatprep.subr.bf16.mxu0 0
  %4118 = vmatpush2.bf16.msra.mxu0 0
  %4119 = vmatprep.subr.bf16.mxu0 0
  %4120 = vmatpush2.bf16.msra.mxu0 0
  %4121 = vmatprep.mubr.bf16.mxu0 0
  %4122 = vmatmul.mubr.bf16.gmra.mxu0 %v4084
  %v4123 = vpop.f32.mrf.mxu0
  %v4124 = vadd.f32 0.0, %v4123
  %v4125 = vpop.f32.mrf.mxu0
  %v4126 = vpop.f32.mrf.mxu0
  %v4127 = vadd.f32 0.0, %v4126
  %v4128 = vpop.f32.mrf.mxu0
  %4129 = vmatprep.mubr.bf16.mxu0 0
  %4130 = vmatmul.mubr.bf16.gmra.mxu0 %v4087
  %v4131 = vpop.f32.mrf.mxu0
  %v4132 = vadd.f32 0.0, %v4131
  %v4133 = vpop.f32.mrf.mxu0
  %v4134 = vpop.f32.mrf.mxu0
  %v4135 = vadd.f32 0.0, %v4134
  %v4136 = vpop.f32.mrf.mxu0
  %4137 = vdwg.mxu0
  %v4139 = vsel %vm2756, %v3915, 0
  %v4142 = vsel %vm2756, %v3916, 0
  %4144 = vmatprep.subr.bf16.mxu0 0
  %4145 = vmatpush1.bf16.msra.mxu0 0
  %4146 = vmatprep.subr.bf16.mxu0 0
  %4147 = vmatpush1.bf16.msra.mxu0 0
  %4148 = vmatprep.subr.bf16.mxu0 0
  %4149 = vmatpush1.bf16.msra.mxu0 0
  %4150 = vmatprep.subr.bf16.mxu0 0
  %4151 = vmatpush1.bf16.msra.mxu0 0
  %4152 = vmatprep.subr.bf16.mxu0 0
  %4153 = vmatpush1.bf16.msra.mxu0 0
  %4154 = vmatprep.subr.bf16.mxu0 0
  %4155 = vmatpush1.bf16.msra.mxu0 0
  %4156 = vmatprep.subr.bf16.mxu0 0
  %4157 = vmatpush1.bf16.msra.mxu0 %v371
  %4158 = vmatprep.subr.bf16.mxu0 0
  %4159 = vmatpush1.bf16.msra.mxu0 %v369
  %4160 = vmatprep.subr.bf16.mxu0 0
  %4161 = vmatpush2.bf16.msra.mxu0 0
  %4162 = vmatprep.subr.bf16.mxu0 0
  %4163 = vmatpush2.bf16.msra.mxu0 0
  %4164 = vmatprep.subr.bf16.mxu0 0
  %4165 = vmatpush2.bf16.msra.mxu0 0
  %4166 = vmatprep.subr.bf16.mxu0 0
  %4167 = vmatpush2.bf16.msra.mxu0 0
  %4168 = vmatprep.subr.bf16.mxu0 0
  %4169 = vmatpush2.bf16.msra.mxu0 0
  %4170 = vmatprep.subr.bf16.mxu0 0
  %4171 = vmatpush2.bf16.msra.mxu0 0
  %4172 = vmatprep.subr.bf16.mxu0 0
  %4173 = vmatpush2.bf16.msra.mxu0 0
  %4174 = vmatprep.subr.bf16.mxu0 0
  %4175 = vmatpush2.bf16.msra.mxu0 0
  %4176 = vmatprep.mubr.bf16.mxu0 0
  %4177 = vmatmul.mubr.bf16.gmra.mxu0 %v4139
  %v4178 = vpop.f32.mrf.mxu0
  %v4179 = vadd.f32 0.0, %v4178
  %v4180 = vpop.f32.mrf.mxu0
  %v4181 = vpop.f32.mrf.mxu0
  %v4182 = vadd.f32 0.0, %v4181
  %v4183 = vpop.f32.mrf.mxu0
  %4184 = vmatprep.mubr.bf16.mxu0 0
  %4185 = vmatmul.mubr.bf16.gmra.mxu0 %v4142
  %v4186 = vpop.f32.mrf.mxu0
  %v4187 = vadd.f32 0.0, %v4186
  %v4188 = vpop.f32.mrf.mxu0
  %v4189 = vpop.f32.mrf.mxu0
  %v4190 = vadd.f32 0.0, %v4189
  %v4191 = vpop.f32.mrf.mxu0
  %4192 = vdwg.mxu0
  %v4194 = vsel %vm2756, %v3917, 0
  %v4197 = vsel %vm2756, %v3918, 0
  %4199 = vmatprep.subr.bf16.mxu0 0
  %4200 = vmatpush1.bf16.msra.mxu0 0
  %4201 = vmatprep.subr.bf16.mxu0 0
  %4202 = vmatpush1.bf16.msra.mxu0 0
  %4203 = vmatprep.subr.bf16.mxu0 0
  %4204 = vmatpush1.bf16.msra.mxu0 0
  %4205 = vmatprep.subr.bf16.mxu0 0
  %4206 = vmatpush1.bf16.msra.mxu0 0
  %4207 = vmatprep.subr.bf16.mxu0 0
  %4208 = vmatpush1.bf16.msra.mxu0 0
  %4209 = vmatprep.subr.bf16.mxu0 0
  %4210 = vmatpush1.bf16.msra.mxu0 0
  %4211 = vmatprep.subr.bf16.mxu0 0
  %4212 = vmatpush1.bf16.msra.mxu0 %v375
  %4213 = vmatprep.subr.bf16.mxu0 0
  %4214 = vmatpush1.bf16.msra.mxu0 %v373
  %4215 = vmatprep.subr.bf16.mxu0 0
  %4216 = vmatpush2.bf16.msra.mxu0 0
  %4217 = vmatprep.subr.bf16.mxu0 0
  %4218 = vmatpush2.bf16.msra.mxu0 0
  %4219 = vmatprep.subr.bf16.mxu0 0
  %4220 = vmatpush2.bf16.msra.mxu0 0
  %4221 = vmatprep.subr.bf16.mxu0 0
  %4222 = vmatpush2.bf16.msra.mxu0 0
  %4223 = vmatprep.subr.bf16.mxu0 0
  %4224 = vmatpush2.bf16.msra.mxu0 0
  %4225 = vmatprep.subr.bf16.mxu0 0
  %4226 = vmatpush2.bf16.msra.mxu0 0
  %4227 = vmatprep.subr.bf16.mxu0 0
  %4228 = vmatpush2.bf16.msra.mxu0 0
  %4229 = vmatprep.subr.bf16.mxu0 0
  %4230 = vmatpush2.bf16.msra.mxu0 0
  %4231 = vmatprep.mubr.bf16.mxu0 0
  %4232 = vmatmul.mubr.bf16.gmra.mxu0 %v4194
  %v4233 = vpop.f32.mrf.mxu0
  %v4234 = vadd.f32 0.0, %v4233
  %v4235 = vpop.f32.mrf.mxu0
  %v4236 = vpop.f32.mrf.mxu0
  %v4237 = vadd.f32 0.0, %v4236
  %v4238 = vpop.f32.mrf.mxu0
  %4239 = vmatprep.mubr.bf16.mxu0 0
  %4240 = vmatmul.mubr.bf16.gmra.mxu0 %v4197
  %v4241 = vpop.f32.mrf.mxu0
  %v4242 = vadd.f32 0.0, %v4241
  %v4243 = vpop.f32.mrf.mxu0
  %v4244 = vpop.f32.mrf.mxu0
  %v4245 = vadd.f32 0.0, %v4244
  %v4246 = vpop.f32.mrf.mxu0
  %4247 = vdwg.mxu0
  %v4249 = vsel %vm2756, %v3919, 0
  %v4252 = vsel %vm2756, %v3920, 0
  %4254 = vmatprep.subr.bf16.mxu0 0
  %4255 = vmatpush1.bf16.msra.mxu0 0
  %4256 = vmatprep.subr.bf16.mxu0 0
  %4257 = vmatpush1.bf16.msra.mxu0 0
  %4258 = vmatprep.subr.bf16.mxu0 0
  %4259 = vmatpush1.bf16.msra.mxu0 0
  %4260 = vmatprep.subr.bf16.mxu0 0
  %4261 = vmatpush1.bf16.msra.mxu0 0
  %4262 = vmatprep.subr.bf16.mxu0 0
  %4263 = vmatpush1.bf16.msra.mxu0 0
  %4264 = vmatprep.subr.bf16.mxu0 0
  %4265 = vmatpush1.bf16.msra.mxu0 0
  %4266 = vmatprep.subr.bf16.mxu0 0
  %4267 = vmatpush1.bf16.msra.mxu0 %v379
  %4268 = vmatprep.subr.bf16.mxu0 0
  %4269 = vmatpush1.bf16.msra.mxu0 %v377
  %4270 = vmatprep.subr.bf16.mxu0 0
  %4271 = vmatpush2.bf16.msra.mxu0 0
  %4272 = vmatprep.subr.bf16.mxu0 0
  %4273 = vmatpush2.bf16.msra.mxu0 0
  %4274 = vmatprep.subr.bf16.mxu0 0
  %4275 = vmatpush2.bf16.msra.mxu0 0
  %4276 = vmatprep.subr.bf16.mxu0 0
  %4277 = vmatpush2.bf16.msra.mxu0 0
  %4278 = vmatprep.subr.bf16.mxu0 0
  %4279 = vmatpush2.bf16.msra.mxu0 0
  %4280 = vmatprep.subr.bf16.mxu0 0
  %4281 = vmatpush2.bf16.msra.mxu0 0
  %4282 = vmatprep.subr.bf16.mxu0 0
  %4283 = vmatpush2.bf16.msra.mxu0 0
  %4284 = vmatprep.subr.bf16.mxu0 0
  %4285 = vmatpush2.bf16.msra.mxu0 0
  %4286 = vmatprep.mubr.bf16.mxu0 0
  %4287 = vmatmul.mubr.bf16.gmra.mxu0 %v4249
  %v4288 = vpop.f32.mrf.mxu0
  %v4289 = vadd.f32 0.0, %v4288
  %v4290 = vpop.f32.mrf.mxu0
  %v4291 = vpop.f32.mrf.mxu0
  %v4292 = vadd.f32 0.0, %v4291
  %v4293 = vpop.f32.mrf.mxu0
  %4294 = vmatprep.mubr.bf16.mxu0 0
  %4295 = vmatmul.mubr.bf16.gmra.mxu0 %v4252
  %v4296 = vpop.f32.mrf.mxu0
  %v4297 = vadd.f32 0.0, %v4296
  %v4298 = vpop.f32.mrf.mxu0
  %v4299 = vpop.f32.mrf.mxu0
  %v4300 = vadd.f32 0.0, %v4299
  %v4301 = vpop.f32.mrf.mxu0
  %4302 = vdwg.mxu0
  %v4304 = vsel %vm2756, %v3921, 0
  %v4307 = vsel %vm2756, %v3922, 0
  %4309 = vmatprep.subr.bf16.mxu0 0
  %4310 = vmatpush1.bf16.msra.mxu0 0
  %4311 = vmatprep.subr.bf16.mxu0 0
  %4312 = vmatpush1.bf16.msra.mxu0 0
  %4313 = vmatprep.subr.bf16.mxu0 0
  %4314 = vmatpush1.bf16.msra.mxu0 0
  %4315 = vmatprep.subr.bf16.mxu0 0
  %4316 = vmatpush1.bf16.msra.mxu0 0
  %4317 = vmatprep.subr.bf16.mxu0 0
  %4318 = vmatpush1.bf16.msra.mxu0 0
  %4319 = vmatprep.subr.bf16.mxu0 0
  %4320 = vmatpush1.bf16.msra.mxu0 0
  %4321 = vmatprep.subr.bf16.mxu0 0
  %4322 = vmatpush1.bf16.msra.mxu0 %v383
  %4323 = vmatprep.subr.bf16.mxu0 0
  %4324 = vmatpush1.bf16.msra.mxu0 %v381
  %4325 = vmatprep.subr.bf16.mxu0 0
  %4326 = vmatpush2.bf16.msra.mxu0 0
  %4327 = vmatprep.subr.bf16.mxu0 0
  %4328 = vmatpush2.bf16.msra.mxu0 0
  %4329 = vmatprep.subr.bf16.mxu0 0
  %4330 = vmatpush2.bf16.msra.mxu0 0
  %4331 = vmatprep.subr.bf16.mxu0 0
  %4332 = vmatpush2.bf16.msra.mxu0 0
  %4333 = vmatprep.subr.bf16.mxu0 0
  %4334 = vmatpush2.bf16.msra.mxu0 0
  %4335 = vmatprep.subr.bf16.mxu0 0
  %4336 = vmatpush2.bf16.msra.mxu0 0
  %4337 = vmatprep.subr.bf16.mxu0 0
  %4338 = vmatpush2.bf16.msra.mxu0 0
  %4339 = vmatprep.subr.bf16.mxu0 0
  %4340 = vmatpush2.bf16.msra.mxu0 0
  %4341 = vmatprep.mubr.bf16.mxu0 0
  %4342 = vmatmul.mubr.bf16.gmra.mxu0 %v4304
  %v4343 = vpop.f32.mrf.mxu0
  %v4344 = vadd.f32 0.0, %v4343
  %v4345 = vpop.f32.mrf.mxu0
  %v4346 = vpop.f32.mrf.mxu0
  %v4347 = vadd.f32 0.0, %v4346
  %v4348 = vpop.f32.mrf.mxu0
  %4349 = vmatprep.mubr.bf16.mxu0 0
  %4350 = vmatmul.mubr.bf16.gmra.mxu0 %v4307
  %v4351 = vpop.f32.mrf.mxu0
  %v4352 = vadd.f32 0.0, %v4351
  %v4353 = vpop.f32.mrf.mxu0
  %v4354 = vpop.f32.mrf.mxu0
  %v4355 = vadd.f32 0.0, %v4354
  %v4356 = vpop.f32.mrf.mxu0
  %4357 = vdwg.mxu0
  %v4359 = vsel %vm2756, %v3923, 0
  %v4362 = vsel %vm2756, %v3924, 0
  %4364 = vmatprep.subr.bf16.mxu0 0
  %4365 = vmatpush1.bf16.msra.mxu0 0
  %4366 = vmatprep.subr.bf16.mxu0 0
  %4367 = vmatpush1.bf16.msra.mxu0 0
  %4368 = vmatprep.subr.bf16.mxu0 0
  %4369 = vmatpush1.bf16.msra.mxu0 0
  %4370 = vmatprep.subr.bf16.mxu0 0
  %4371 = vmatpush1.bf16.msra.mxu0 0
  %4372 = vmatprep.subr.bf16.mxu0 0
  %4373 = vmatpush1.bf16.msra.mxu0 0
  %4374 = vmatprep.subr.bf16.mxu0 0
  %4375 = vmatpush1.bf16.msra.mxu0 0
  %4376 = vmatprep.subr.bf16.mxu0 0
  %4377 = vmatpush1.bf16.msra.mxu0 %v387
  %4378 = vmatprep.subr.bf16.mxu0 0
  %4379 = vmatpush1.bf16.msra.mxu0 %v385
  %4380 = vmatprep.subr.bf16.mxu0 0
  %4381 = vmatpush2.bf16.msra.mxu0 0
  %4382 = vmatprep.subr.bf16.mxu0 0
  %4383 = vmatpush2.bf16.msra.mxu0 0
  %4384 = vmatprep.subr.bf16.mxu0 0
  %4385 = vmatpush2.bf16.msra.mxu0 0
  %4386 = vmatprep.subr.bf16.mxu0 0
  %4387 = vmatpush2.bf16.msra.mxu0 0
  %4388 = vmatprep.subr.bf16.mxu0 0
  %4389 = vmatpush2.bf16.msra.mxu0 0
  %4390 = vmatprep.subr.bf16.mxu0 0
  %4391 = vmatpush2.bf16.msra.mxu0 0
  %4392 = vmatprep.subr.bf16.mxu0 0
  %4393 = vmatpush2.bf16.msra.mxu0 0
  %4394 = vmatprep.subr.bf16.mxu0 0
  %4395 = vmatpush2.bf16.msra.mxu0 0
  %4396 = vmatprep.mubr.bf16.mxu0 0
  %4397 = vmatmul.mubr.bf16.gmra.mxu0 %v4359
  %v4398 = vpop.f32.mrf.mxu0
  %v4399 = vadd.f32 0.0, %v4398
  %v4400 = vpop.f32.mrf.mxu0
  %v4401 = vpop.f32.mrf.mxu0
  %v4402 = vadd.f32 0.0, %v4401
  %v4403 = vpop.f32.mrf.mxu0
  %4404 = vmatprep.mubr.bf16.mxu0 0
  %4405 = vmatmul.mubr.bf16.gmra.mxu0 %v4362
  %v4406 = vpop.f32.mrf.mxu0
  %v4407 = vadd.f32 0.0, %v4406
  %v4408 = vpop.f32.mrf.mxu0
  %v4409 = vpop.f32.mrf.mxu0
  %v4410 = vadd.f32 0.0, %v4409
  %v4411 = vpop.f32.mrf.mxu0
  %4412 = vdwg.mxu0
  %v4414 = vsel %vm2756, %v3925, 0
  %v4417 = vsel %vm2756, %v3926, 0
  %4419 = vmatprep.subr.bf16.mxu0 0
  %4420 = vmatpush1.bf16.msra.mxu0 0
  %4421 = vmatprep.subr.bf16.mxu0 0
  %4422 = vmatpush1.bf16.msra.mxu0 0
  %4423 = vmatprep.subr.bf16.mxu0 0
  %4424 = vmatpush1.bf16.msra.mxu0 0
  %4425 = vmatprep.subr.bf16.mxu0 0
  %4426 = vmatpush1.bf16.msra.mxu0 0
  %4427 = vmatprep.subr.bf16.mxu0 0
  %4428 = vmatpush1.bf16.msra.mxu0 0
  %4429 = vmatprep.subr.bf16.mxu0 0
  %4430 = vmatpush1.bf16.msra.mxu0 0
  %4431 = vmatprep.subr.bf16.mxu0 0
  %4432 = vmatpush1.bf16.msra.mxu0 %v519
  %4433 = vmatprep.subr.bf16.mxu0 0
  %4434 = vmatpush1.bf16.msra.mxu0 %v517
  %4435 = vmatprep.subr.bf16.mxu0 0
  %4436 = vmatpush2.bf16.msra.mxu0 0
  %4437 = vmatprep.subr.bf16.mxu0 0
  %4438 = vmatpush2.bf16.msra.mxu0 0
  %4439 = vmatprep.subr.bf16.mxu0 0
  %4440 = vmatpush2.bf16.msra.mxu0 0
  %4441 = vmatprep.subr.bf16.mxu0 0
  %4442 = vmatpush2.bf16.msra.mxu0 0
  %4443 = vmatprep.subr.bf16.mxu0 0
  %4444 = vmatpush2.bf16.msra.mxu0 0
  %4445 = vmatprep.subr.bf16.mxu0 0
  %4446 = vmatpush2.bf16.msra.mxu0 0
  %4447 = vmatprep.subr.bf16.mxu0 0
  %4448 = vmatpush2.bf16.msra.mxu0 0
  %4449 = vmatprep.subr.bf16.mxu0 0
  %4450 = vmatpush2.bf16.msra.mxu0 0
  %4451 = vmatprep.mubr.bf16.mxu0 0
  %4452 = vmatmul.mubr.bf16.gmra.mxu0 %v4414
  %v4453 = vpop.f32.mrf.mxu0
  %v4454 = vadd.f32 0.0, %v4453
  %v4455 = vpop.f32.mrf.mxu0
  %v4456 = vpop.f32.mrf.mxu0
  %v4457 = vadd.f32 0.0, %v4456
  %v4458 = vpop.f32.mrf.mxu0
  %4459 = vmatprep.mubr.bf16.mxu0 0
  %4460 = vmatmul.mubr.bf16.gmra.mxu0 %v4417
  %v4461 = vpop.f32.mrf.mxu0
  %v4462 = vadd.f32 0.0, %v4461
  %v4463 = vpop.f32.mrf.mxu0
  %v4464 = vpop.f32.mrf.mxu0
  %v4465 = vadd.f32 0.0, %v4464
  %v4466 = vpop.f32.mrf.mxu0
  %4467 = vdwg.mxu0
  %v4469 = vsel %vm2756, %v3927, 0
  %v4472 = vsel %vm2756, %v3928, 0
  %4474 = vmatprep.subr.bf16.mxu0 0
  %4475 = vmatpush1.bf16.msra.mxu0 0
  %4476 = vmatprep.subr.bf16.mxu0 0
  %4477 = vmatpush1.bf16.msra.mxu0 0
  %4478 = vmatprep.subr.bf16.mxu0 0
  %4479 = vmatpush1.bf16.msra.mxu0 0
  %4480 = vmatprep.subr.bf16.mxu0 0
  %4481 = vmatpush1.bf16.msra.mxu0 0
  %4482 = vmatprep.subr.bf16.mxu0 0
  %4483 = vmatpush1.bf16.msra.mxu0 0
  %4484 = vmatprep.subr.bf16.mxu0 0
  %4485 = vmatpush1.bf16.msra.mxu0 0
  %4486 = vmatprep.subr.bf16.mxu0 0
  %4487 = vmatpush1.bf16.msra.mxu0 %v523
  %4488 = vmatprep.subr.bf16.mxu0 0
  %4489 = vmatpush1.bf16.msra.mxu0 %v521
  %4490 = vmatprep.subr.bf16.mxu0 0
  %4491 = vmatpush2.bf16.msra.mxu0 0
  %4492 = vmatprep.subr.bf16.mxu0 0
  %4493 = vmatpush2.bf16.msra.mxu0 0
  %4494 = vmatprep.subr.bf16.mxu0 0
  %4495 = vmatpush2.bf16.msra.mxu0 0
  %4496 = vmatprep.subr.bf16.mxu0 0
  %4497 = vmatpush2.bf16.msra.mxu0 0
  %4498 = vmatprep.subr.bf16.mxu0 0
  %4499 = vmatpush2.bf16.msra.mxu0 0
  %4500 = vmatprep.subr.bf16.mxu0 0
  %4501 = vmatpush2.bf16.msra.mxu0 0
  %4502 = vmatprep.subr.bf16.mxu0 0
  %4503 = vmatpush2.bf16.msra.mxu0 0
  %4504 = vmatprep.subr.bf16.mxu0 0
  %4505 = vmatpush2.bf16.msra.mxu0 0
  %4506 = vmatprep.mubr.bf16.mxu0 0
  %4507 = vmatmul.mubr.bf16.gmra.mxu0 %v4469
  %v4508 = vpop.f32.mrf.mxu0
  %v4509 = vadd.f32 0.0, %v4508
  %v4510 = vpop.f32.mrf.mxu0
  %v4511 = vpop.f32.mrf.mxu0
  %v4512 = vadd.f32 0.0, %v4511
  %v4513 = vpop.f32.mrf.mxu0
  %4514 = vmatprep.mubr.bf16.mxu0 0
  %4515 = vmatmul.mubr.bf16.gmra.mxu0 %v4472
  %v4516 = vpop.f32.mrf.mxu0
  %v4517 = vadd.f32 0.0, %v4516
  %v4518 = vpop.f32.mrf.mxu0
  %v4519 = vpop.f32.mrf.mxu0
  %v4520 = vadd.f32 0.0, %v4519
  %v4521 = vpop.f32.mrf.mxu0
  %4522 = vdwg.mxu0
  %v4524 = vsel %vm2756, %v3929, 0
  %v4527 = vsel %vm2756, %v3930, 0
  %4529 = vmatprep.subr.bf16.mxu0 0
  %4530 = vmatpush1.bf16.msra.mxu0 0
  %4531 = vmatprep.subr.bf16.mxu0 0
  %4532 = vmatpush1.bf16.msra.mxu0 0
  %4533 = vmatprep.subr.bf16.mxu0 0
  %4534 = vmatpush1.bf16.msra.mxu0 0
  %4535 = vmatprep.subr.bf16.mxu0 0
  %4536 = vmatpush1.bf16.msra.mxu0 0
  %4537 = vmatprep.subr.bf16.mxu0 0
  %4538 = vmatpush1.bf16.msra.mxu0 0
  %4539 = vmatprep.subr.bf16.mxu0 0
  %4540 = vmatpush1.bf16.msra.mxu0 0
  %4541 = vmatprep.subr.bf16.mxu0 0
  %4542 = vmatpush1.bf16.msra.mxu0 %v527
  %4543 = vmatprep.subr.bf16.mxu0 0
  %4544 = vmatpush1.bf16.msra.mxu0 %v525
  %4545 = vmatprep.subr.bf16.mxu0 0
  %4546 = vmatpush2.bf16.msra.mxu0 0
  %4547 = vmatprep.subr.bf16.mxu0 0
  %4548 = vmatpush2.bf16.msra.mxu0 0
  %4549 = vmatprep.subr.bf16.mxu0 0
  %4550 = vmatpush2.bf16.msra.mxu0 0
  %4551 = vmatprep.subr.bf16.mxu0 0
  %4552 = vmatpush2.bf16.msra.mxu0 0
  %4553 = vmatprep.subr.bf16.mxu0 0
  %4554 = vmatpush2.bf16.msra.mxu0 0
  %4555 = vmatprep.subr.bf16.mxu0 0
  %4556 = vmatpush2.bf16.msra.mxu0 0
  %4557 = vmatprep.subr.bf16.mxu0 0
  %4558 = vmatpush2.bf16.msra.mxu0 0
  %4559 = vmatprep.subr.bf16.mxu0 0
  %4560 = vmatpush2.bf16.msra.mxu0 0
  %4561 = vmatprep.mubr.bf16.mxu0 0
  %4562 = vmatmul.mubr.bf16.gmra.mxu0 %v4524
  %v4563 = vpop.f32.mrf.mxu0
  %v4564 = vadd.f32 0.0, %v4563
  %v4565 = vpop.f32.mrf.mxu0
  %v4566 = vpop.f32.mrf.mxu0
  %v4567 = vadd.f32 0.0, %v4566
  %v4568 = vpop.f32.mrf.mxu0
  %4569 = vmatprep.mubr.bf16.mxu0 0
  %4570 = vmatmul.mubr.bf16.gmra.mxu0 %v4527
  %v4571 = vpop.f32.mrf.mxu0
  %v4572 = vadd.f32 0.0, %v4571
  %v4573 = vpop.f32.mrf.mxu0
  %v4574 = vpop.f32.mrf.mxu0
  %v4575 = vadd.f32 0.0, %v4574
  %v4576 = vpop.f32.mrf.mxu0
  %4577 = vdwg.mxu0
  %v4579 = vsel %vm2756, %v3931, 0
  %v4582 = vsel %vm2756, %v3932, 0
  %4584 = vmatprep.subr.bf16.mxu0 0
  %4585 = vmatpush1.bf16.msra.mxu0 0
  %4586 = vmatprep.subr.bf16.mxu0 0
  %4587 = vmatpush1.bf16.msra.mxu0 0
  %4588 = vmatprep.subr.bf16.mxu0 0
  %4589 = vmatpush1.bf16.msra.mxu0 0
  %4590 = vmatprep.subr.bf16.mxu0 0
  %4591 = vmatpush1.bf16.msra.mxu0 0
  %4592 = vmatprep.subr.bf16.mxu0 0
  %4593 = vmatpush1.bf16.msra.mxu0 0
  %4594 = vmatprep.subr.bf16.mxu0 0
  %4595 = vmatpush1.bf16.msra.mxu0 0
  %4596 = vmatprep.subr.bf16.mxu0 0
  %4597 = vmatpush1.bf16.msra.mxu0 %v531
  %4598 = vmatprep.subr.bf16.mxu0 0
  %4599 = vmatpush1.bf16.msra.mxu0 %v529
  %4600 = vmatprep.subr.bf16.mxu0 0
  %4601 = vmatpush2.bf16.msra.mxu0 0
  %4602 = vmatprep.subr.bf16.mxu0 0
  %4603 = vmatpush2.bf16.msra.mxu0 0
  %4604 = vmatprep.subr.bf16.mxu0 0
  %4605 = vmatpush2.bf16.msra.mxu0 0
  %4606 = vmatprep.subr.bf16.mxu0 0
  %4607 = vmatpush2.bf16.msra.mxu0 0
  %4608 = vmatprep.subr.bf16.mxu0 0
  %4609 = vmatpush2.bf16.msra.mxu0 0
  %4610 = vmatprep.subr.bf16.mxu0 0
  %4611 = vmatpush2.bf16.msra.mxu0 0
  %4612 = vmatprep.subr.bf16.mxu0 0
  %4613 = vmatpush2.bf16.msra.mxu0 0
  %4614 = vmatprep.subr.bf16.mxu0 0
  %4615 = vmatpush2.bf16.msra.mxu0 0
  %4616 = vmatprep.mubr.bf16.mxu0 0
  %4617 = vmatmul.mubr.bf16.gmra.mxu0 %v4579
  %v4618 = vpop.f32.mrf.mxu0
  %v4619 = vadd.f32 0.0, %v4618
  %v4620 = vpop.f32.mrf.mxu0
  %v4621 = vpop.f32.mrf.mxu0
  %v4622 = vadd.f32 0.0, %v4621
  %v4623 = vpop.f32.mrf.mxu0
  %4624 = vmatprep.mubr.bf16.mxu0 0
  %4625 = vmatmul.mubr.bf16.gmra.mxu0 %v4582
  %v4626 = vpop.f32.mrf.mxu0
  %v4627 = vadd.f32 0.0, %v4626
  %v4628 = vpop.f32.mrf.mxu0
  %v4629 = vpop.f32.mrf.mxu0
  %v4630 = vadd.f32 0.0, %v4629
  %v4631 = vpop.f32.mrf.mxu0
  %4632 = vdwg.mxu0
  %v4634 = vsel %vm2756, %v3933, 0
  %v4637 = vsel %vm2756, %v3934, 0
  %4639 = vmatprep.subr.bf16.mxu0 0
  %4640 = vmatpush1.bf16.msra.mxu0 0
  %4641 = vmatprep.subr.bf16.mxu0 0
  %4642 = vmatpush1.bf16.msra.mxu0 0
  %4643 = vmatprep.subr.bf16.mxu0 0
  %4644 = vmatpush1.bf16.msra.mxu0 0
  %4645 = vmatprep.subr.bf16.mxu0 0
  %4646 = vmatpush1.bf16.msra.mxu0 0
  %4647 = vmatprep.subr.bf16.mxu0 0
  %4648 = vmatpush1.bf16.msra.mxu0 0
  %4649 = vmatprep.subr.bf16.mxu0 0
  %4650 = vmatpush1.bf16.msra.mxu0 0
  %4651 = vmatprep.subr.bf16.mxu0 0
  %4652 = vmatpush1.bf16.msra.mxu0 %v535
  %4653 = vmatprep.subr.bf16.mxu0 0
  %4654 = vmatpush1.bf16.msra.mxu0 %v533
  %4655 = vmatprep.subr.bf16.mxu0 0
  %4656 = vmatpush2.bf16.msra.mxu0 0
  %4657 = vmatprep.subr.bf16.mxu0 0
  %4658 = vmatpush2.bf16.msra.mxu0 0
  %4659 = vmatprep.subr.bf16.mxu0 0
  %4660 = vmatpush2.bf16.msra.mxu0 0
  %4661 = vmatprep.subr.bf16.mxu0 0
  %4662 = vmatpush2.bf16.msra.mxu0 0
  %4663 = vmatprep.subr.bf16.mxu0 0
  %4664 = vmatpush2.bf16.msra.mxu0 0
  %4665 = vmatprep.subr.bf16.mxu0 0
  %4666 = vmatpush2.bf16.msra.mxu0 0
  %4667 = vmatprep.subr.bf16.mxu0 0
  %4668 = vmatpush2.bf16.msra.mxu0 0
  %4669 = vmatprep.subr.bf16.mxu0 0
  %4670 = vmatpush2.bf16.msra.mxu0 0
  %4671 = vmatprep.mubr.bf16.mxu0 0
  %4672 = vmatmul.mubr.bf16.gmra.mxu0 %v4634
  %v4673 = vpop.f32.mrf.mxu0
  %v4674 = vadd.f32 0.0, %v4673
  %v4675 = vpop.f32.mrf.mxu0
  %v4676 = vpop.f32.mrf.mxu0
  %v4677 = vadd.f32 0.0, %v4676
  %v4678 = vpop.f32.mrf.mxu0
  %4679 = vmatprep.mubr.bf16.mxu0 0
  %4680 = vmatmul.mubr.bf16.gmra.mxu0 %v4637
  %v4681 = vpop.f32.mrf.mxu0
  %v4682 = vadd.f32 0.0, %v4681
  %v4683 = vpop.f32.mrf.mxu0
  %v4684 = vpop.f32.mrf.mxu0
  %v4685 = vadd.f32 0.0, %v4684
  %v4686 = vpop.f32.mrf.mxu0
  %4687 = vdwg.mxu0
  %v4689 = vsel %vm2756, %v3935, 0
  %v4692 = vsel %vm2756, %v3936, 0
  %4694 = vmatprep.subr.bf16.mxu0 0
  %4695 = vmatpush1.bf16.msra.mxu0 0
  %4696 = vmatprep.subr.bf16.mxu0 0
  %4697 = vmatpush1.bf16.msra.mxu0 0
  %4698 = vmatprep.subr.bf16.mxu0 0
  %4699 = vmatpush1.bf16.msra.mxu0 0
  %4700 = vmatprep.subr.bf16.mxu0 0
  %4701 = vmatpush1.bf16.msra.mxu0 0
  %4702 = vmatprep.subr.bf16.mxu0 0
  %4703 = vmatpush1.bf16.msra.mxu0 0
  %4704 = vmatprep.subr.bf16.mxu0 0
  %4705 = vmatpush1.bf16.msra.mxu0 0
  %4706 = vmatprep.subr.bf16.mxu0 0
  %4707 = vmatpush1.bf16.msra.mxu0 %v539
  %4708 = vmatprep.subr.bf16.mxu0 0
  %4709 = vmatpush1.bf16.msra.mxu0 %v537
  %4710 = vmatprep.subr.bf16.mxu0 0
  %4711 = vmatpush2.bf16.msra.mxu0 0
  %4712 = vmatprep.subr.bf16.mxu0 0
  %4713 = vmatpush2.bf16.msra.mxu0 0
  %4714 = vmatprep.subr.bf16.mxu0 0
  %4715 = vmatpush2.bf16.msra.mxu0 0
  %4716 = vmatprep.subr.bf16.mxu0 0
  %4717 = vmatpush2.bf16.msra.mxu0 0
  %4718 = vmatprep.subr.bf16.mxu0 0
  %4719 = vmatpush2.bf16.msra.mxu0 0
  %4720 = vmatprep.subr.bf16.mxu0 0
  %4721 = vmatpush2.bf16.msra.mxu0 0
  %4722 = vmatprep.subr.bf16.mxu0 0
  %4723 = vmatpush2.bf16.msra.mxu0 0
  %4724 = vmatprep.subr.bf16.mxu0 0
  %4725 = vmatpush2.bf16.msra.mxu0 0
  %4726 = vmatprep.mubr.bf16.mxu0 0
  %4727 = vmatmul.mubr.bf16.gmra.mxu0 %v4689
  %v4728 = vpop.f32.mrf.mxu0
  %v4729 = vadd.f32 0.0, %v4728
  %v4730 = vpop.f32.mrf.mxu0
  %v4731 = vpop.f32.mrf.mxu0
  %v4732 = vadd.f32 0.0, %v4731
  %v4733 = vpop.f32.mrf.mxu0
  %4734 = vmatprep.mubr.bf16.mxu0 0
  %4735 = vmatmul.mubr.bf16.gmra.mxu0 %v4692
  %v4736 = vpop.f32.mrf.mxu0
  %v4737 = vadd.f32 0.0, %v4736
  %v4738 = vpop.f32.mrf.mxu0
  %v4739 = vpop.f32.mrf.mxu0
  %v4740 = vadd.f32 0.0, %v4739
  %v4741 = vpop.f32.mrf.mxu0
  %4742 = vdwg.mxu0
  %v4744 = vsel %vm2756, %v3937, 0
  %v4747 = vsel %vm2756, %v3938, 0
  %4749 = vmatprep.subr.bf16.mxu0 0
  %4750 = vmatpush1.bf16.msra.mxu0 0
  %4751 = vmatprep.subr.bf16.mxu0 0
  %4752 = vmatpush1.bf16.msra.mxu0 0
  %4753 = vmatprep.subr.bf16.mxu0 0
  %4754 = vmatpush1.bf16.msra.mxu0 0
  %4755 = vmatprep.subr.bf16.mxu0 0
  %4756 = vmatpush1.bf16.msra.mxu0 0
  %4757 = vmatprep.subr.bf16.mxu0 0
  %4758 = vmatpush1.bf16.msra.mxu0 0
  %4759 = vmatprep.subr.bf16.mxu0 0
  %4760 = vmatpush1.bf16.msra.mxu0 0
  %4761 = vmatprep.subr.bf16.mxu0 0
  %4762 = vmatpush1.bf16.msra.mxu0 %v543
  %4763 = vmatprep.subr.bf16.mxu0 0
  %4764 = vmatpush1.bf16.msra.mxu0 %v541
  %4765 = vmatprep.subr.bf16.mxu0 0
  %4766 = vmatpush2.bf16.msra.mxu0 0
  %4767 = vmatprep.subr.bf16.mxu0 0
  %4768 = vmatpush2.bf16.msra.mxu0 0
  %4769 = vmatprep.subr.bf16.mxu0 0
  %4770 = vmatpush2.bf16.msra.mxu0 0
  %4771 = vmatprep.subr.bf16.mxu0 0
  %4772 = vmatpush2.bf16.msra.mxu0 0
  %4773 = vmatprep.subr.bf16.mxu0 0
  %4774 = vmatpush2.bf16.msra.mxu0 0
  %4775 = vmatprep.subr.bf16.mxu0 0
  %4776 = vmatpush2.bf16.msra.mxu0 0
  %4777 = vmatprep.subr.bf16.mxu0 0
  %4778 = vmatpush2.bf16.msra.mxu0 0
  %4779 = vmatprep.subr.bf16.mxu0 0
  %4780 = vmatpush2.bf16.msra.mxu0 0
  %4781 = vmatprep.mubr.bf16.mxu0 0
  %4782 = vmatmul.mubr.bf16.gmra.mxu0 %v4744
  %v4783 = vpop.f32.mrf.mxu0
  %v4784 = vadd.f32 0.0, %v4783
  %v4785 = vpop.f32.mrf.mxu0
  %v4786 = vpop.f32.mrf.mxu0
  %v4787 = vadd.f32 0.0, %v4786
  %v4788 = vpop.f32.mrf.mxu0
  %4789 = vmatprep.mubr.bf16.mxu0 0
  %4790 = vmatmul.mubr.bf16.gmra.mxu0 %v4747
  %v4791 = vpop.f32.mrf.mxu0
  %v4792 = vadd.f32 0.0, %v4791
  %v4793 = vpop.f32.mrf.mxu0
  %v4794 = vpop.f32.mrf.mxu0
  %v4795 = vadd.f32 0.0, %v4794
  %v4796 = vpop.f32.mrf.mxu0
  %4797 = vdwg.mxu0
  %v4799 = vsel %vm2756, %v3939, 0
  %v4802 = vsel %vm2756, %v3940, 0
  %4804 = vmatprep.subr.bf16.mxu0 0
  %4805 = vmatpush1.bf16.msra.mxu0 0
  %4806 = vmatprep.subr.bf16.mxu0 0
  %4807 = vmatpush1.bf16.msra.mxu0 0
  %4808 = vmatprep.subr.bf16.mxu0 0
  %4809 = vmatpush1.bf16.msra.mxu0 0
  %4810 = vmatprep.subr.bf16.mxu0 0
  %4811 = vmatpush1.bf16.msra.mxu0 0
  %4812 = vmatprep.subr.bf16.mxu0 0
  %4813 = vmatpush1.bf16.msra.mxu0 0
  %4814 = vmatprep.subr.bf16.mxu0 0
  %4815 = vmatpush1.bf16.msra.mxu0 0
  %4816 = vmatprep.subr.bf16.mxu0 0
  %4817 = vmatpush1.bf16.msra.mxu0 %v547
  %4818 = vmatprep.subr.bf16.mxu0 0
  %4819 = vmatpush1.bf16.msra.mxu0 %v545
  %4820 = vmatprep.subr.bf16.mxu0 0
  %4821 = vmatpush2.bf16.msra.mxu0 0
  %4822 = vmatprep.subr.bf16.mxu0 0
  %4823 = vmatpush2.bf16.msra.mxu0 0
  %4824 = vmatprep.subr.bf16.mxu0 0
  %4825 = vmatpush2.bf16.msra.mxu0 0
  %4826 = vmatprep.subr.bf16.mxu0 0
  %4827 = vmatpush2.bf16.msra.mxu0 0
  %4828 = vmatprep.subr.bf16.mxu0 0
  %4829 = vmatpush2.bf16.msra.mxu0 0
  %4830 = vmatprep.subr.bf16.mxu0 0
  %4831 = vmatpush2.bf16.msra.mxu0 0
  %4832 = vmatprep.subr.bf16.mxu0 0
  %4833 = vmatpush2.bf16.msra.mxu0 0
  %4834 = vmatprep.subr.bf16.mxu0 0
  %4835 = vmatpush2.bf16.msra.mxu0 0
  %4836 = vmatprep.mubr.bf16.mxu0 0
  %4837 = vmatmul.mubr.bf16.gmra.mxu0 %v4799
  %v4838 = vpop.f32.mrf.mxu0
  %v4839 = vadd.f32 0.0, %v4838
  %v4840 = vpop.f32.mrf.mxu0
  %v4841 = vpop.f32.mrf.mxu0
  %v4842 = vadd.f32 0.0, %v4841
  %v4843 = vpop.f32.mrf.mxu0
  %4844 = vmatprep.mubr.bf16.mxu0 0
  %4845 = vmatmul.mubr.bf16.gmra.mxu0 %v4802
  %v4846 = vpop.f32.mrf.mxu0
  %v4847 = vadd.f32 0.0, %v4846
  %v4848 = vpop.f32.mrf.mxu0
  %v4849 = vpop.f32.mrf.mxu0
  %v4850 = vadd.f32 0.0, %v4849
  %v4851 = vpop.f32.mrf.mxu0
  %4852 = vdwg.mxu0
  %v4854 = vsel %vm2756, %v3941, 0
  %v4857 = vsel %vm2756, %v3942, 0
  %4859 = vmatprep.subr.bf16.mxu0 0
  %4860 = vmatpush1.bf16.msra.mxu0 0
  %4861 = vmatprep.subr.bf16.mxu0 0
  %4862 = vmatpush1.bf16.msra.mxu0 0
  %4863 = vmatprep.subr.bf16.mxu0 0
  %4864 = vmatpush1.bf16.msra.mxu0 0
  %4865 = vmatprep.subr.bf16.mxu0 0
  %4866 = vmatpush1.bf16.msra.mxu0 0
  %4867 = vmatprep.subr.bf16.mxu0 0
  %4868 = vmatpush1.bf16.msra.mxu0 0
  %4869 = vmatprep.subr.bf16.mxu0 0
  %4870 = vmatpush1.bf16.msra.mxu0 0
  %4871 = vmatprep.subr.bf16.mxu0 0
  %4872 = vmatpush1.bf16.msra.mxu0 %v567
  %4873 = vmatprep.subr.bf16.mxu0 0
  %4874 = vmatpush1.bf16.msra.mxu0 %v565
  %4875 = vmatprep.subr.bf16.mxu0 0
  %4876 = vmatpush2.bf16.msra.mxu0 0
  %4877 = vmatprep.subr.bf16.mxu0 0
  %4878 = vmatpush2.bf16.msra.mxu0 0
  %4879 = vmatprep.subr.bf16.mxu0 0
  %4880 = vmatpush2.bf16.msra.mxu0 0
  %4881 = vmatprep.subr.bf16.mxu0 0
  %4882 = vmatpush2.bf16.msra.mxu0 0
  %4883 = vmatprep.subr.bf16.mxu0 0
  %4884 = vmatpush2.bf16.msra.mxu0 0
  %4885 = vmatprep.subr.bf16.mxu0 0
  %4886 = vmatpush2.bf16.msra.mxu0 0
  %4887 = vmatprep.subr.bf16.mxu0 0
  %4888 = vmatpush2.bf16.msra.mxu0 0
  %4889 = vmatprep.subr.bf16.mxu0 0
  %4890 = vmatpush2.bf16.msra.mxu0 0
  %4891 = vmatprep.mubr.bf16.mxu0 0
  %4892 = vmatmul.mubr.bf16.gmra.mxu0 %v4854
  %v4893 = vpop.f32.mrf.mxu0
  %v4894 = vadd.f32 0.0, %v4893
  %v4895 = vpop.f32.mrf.mxu0
  %v4896 = vpop.f32.mrf.mxu0
  %v4897 = vadd.f32 0.0, %v4896
  %v4898 = vpop.f32.mrf.mxu0
  %4899 = vmatprep.mubr.bf16.mxu0 0
  %4900 = vmatmul.mubr.bf16.gmra.mxu0 %v4857
  %v4901 = vpop.f32.mrf.mxu0
  %v4902 = vadd.f32 0.0, %v4901
  %v4903 = vpop.f32.mrf.mxu0
  %v4904 = vpop.f32.mrf.mxu0
  %v4905 = vadd.f32 0.0, %v4904
  %v4906 = vpop.f32.mrf.mxu0
  %4907 = vdwg.mxu0
  %v4909 = vsel %vm2756, %v3943, 0
  %v4912 = vsel %vm2756, %v3944, 0
  %4914 = vmatprep.subr.bf16.mxu0 0
  %4915 = vmatpush1.bf16.msra.mxu0 0
  %4916 = vmatprep.subr.bf16.mxu0 0
  %4917 = vmatpush1.bf16.msra.mxu0 0
  %4918 = vmatprep.subr.bf16.mxu0 0
  %4919 = vmatpush1.bf16.msra.mxu0 0
  %4920 = vmatprep.subr.bf16.mxu0 0
  %4921 = vmatpush1.bf16.msra.mxu0 0
  %4922 = vmatprep.subr.bf16.mxu0 0
  %4923 = vmatpush1.bf16.msra.mxu0 0
  %4924 = vmatprep.subr.bf16.mxu0 0
  %4925 = vmatpush1.bf16.msra.mxu0 0
  %4926 = vmatprep.subr.bf16.mxu0 0
  %4927 = vmatpush1.bf16.msra.mxu0 %v571
  %4928 = vmatprep.subr.bf16.mxu0 0
  %4929 = vmatpush1.bf16.msra.mxu0 %v569
  %4930 = vmatprep.subr.bf16.mxu0 0
  %4931 = vmatpush2.bf16.msra.mxu0 0
  %4932 = vmatprep.subr.bf16.mxu0 0
  %4933 = vmatpush2.bf16.msra.mxu0 0
  %4934 = vmatprep.subr.bf16.mxu0 0
  %4935 = vmatpush2.bf16.msra.mxu0 0
  %4936 = vmatprep.subr.bf16.mxu0 0
  %4937 = vmatpush2.bf16.msra.mxu0 0
  %4938 = vmatprep.subr.bf16.mxu0 0
  %4939 = vmatpush2.bf16.msra.mxu0 0
  %4940 = vmatprep.subr.bf16.mxu0 0
  %4941 = vmatpush2.bf16.msra.mxu0 0
  %4942 = vmatprep.subr.bf16.mxu0 0
  %4943 = vmatpush2.bf16.msra.mxu0 0
  %4944 = vmatprep.subr.bf16.mxu0 0
  %4945 = vmatpush2.bf16.msra.mxu0 0
  %4946 = vmatprep.mubr.bf16.mxu0 0
  %4947 = vmatmul.mubr.bf16.gmra.mxu0 %v4909
  %v4948 = vpop.f32.mrf.mxu0
  %v4949 = vadd.f32 0.0, %v4948
  %v4950 = vpop.f32.mrf.mxu0
  %v4951 = vpop.f32.mrf.mxu0
  %v4952 = vadd.f32 0.0, %v4951
  %v4953 = vpop.f32.mrf.mxu0
  %4954 = vmatprep.mubr.bf16.mxu0 0
  %4955 = vmatmul.mubr.bf16.gmra.mxu0 %v4912
  %v4956 = vpop.f32.mrf.mxu0
  %v4957 = vadd.f32 0.0, %v4956
  %v4958 = vpop.f32.mrf.mxu0
  %v4959 = vpop.f32.mrf.mxu0
  %v4960 = vadd.f32 0.0, %v4959
  %v4961 = vpop.f32.mrf.mxu0
  %4962 = vdwg.mxu0
  %v4964 = vsel %vm2756, %v3945, 0
  %v4967 = vsel %vm2756, %v3946, 0
  %4969 = vmatprep.subr.bf16.mxu0 0
  %4970 = vmatpush1.bf16.msra.mxu0 0
  %4971 = vmatprep.subr.bf16.mxu0 0
  %4972 = vmatpush1.bf16.msra.mxu0 0
  %4973 = vmatprep.subr.bf16.mxu0 0
  %4974 = vmatpush1.bf16.msra.mxu0 0
  %4975 = vmatprep.subr.bf16.mxu0 0
  %4976 = vmatpush1.bf16.msra.mxu0 0
  %4977 = vmatprep.subr.bf16.mxu0 0
  %4978 = vmatpush1.bf16.msra.mxu0 0
  %4979 = vmatprep.subr.bf16.mxu0 0
  %4980 = vmatpush1.bf16.msra.mxu0 0
  %4981 = vmatprep.subr.bf16.mxu0 0
  %4982 = vmatpush1.bf16.msra.mxu0 %v575
  %4983 = vmatprep.subr.bf16.mxu0 0
  %4984 = vmatpush1.bf16.msra.mxu0 %v573
  %4985 = vmatprep.subr.bf16.mxu0 0
  %4986 = vmatpush2.bf16.msra.mxu0 0
  %4987 = vmatprep.subr.bf16.mxu0 0
  %4988 = vmatpush2.bf16.msra.mxu0 0
  %4989 = vmatprep.subr.bf16.mxu0 0
  %4990 = vmatpush2.bf16.msra.mxu0 0
  %4991 = vmatprep.subr.bf16.mxu0 0
  %4992 = vmatpush2.bf16.msra.mxu0 0
  %4993 = vmatprep.subr.bf16.mxu0 0
  %4994 = vmatpush2.bf16.msra.mxu0 0
  %4995 = vmatprep.subr.bf16.mxu0 0
  %4996 = vmatpush2.bf16.msra.mxu0 0
  %4997 = vmatprep.subr.bf16.mxu0 0
  %4998 = vmatpush2.bf16.msra.mxu0 0
  %4999 = vmatprep.subr.bf16.mxu0 0
  %5000 = vmatpush2.bf16.msra.mxu0 0
  %5001 = vmatprep.mubr.bf16.mxu0 0
  %5002 = vmatmul.mubr.bf16.gmra.mxu0 %v4964
  %v5003 = vpop.f32.mrf.mxu0
  %v5004 = vadd.f32 0.0, %v5003
  %v5005 = vpop.f32.mrf.mxu0
  %v5006 = vpop.f32.mrf.mxu0
  %v5007 = vadd.f32 0.0, %v5006
  %v5008 = vpop.f32.mrf.mxu0
  %5009 = vmatprep.mubr.bf16.mxu0 0
  %5010 = vmatmul.mubr.bf16.gmra.mxu0 %v4967
  %v5011 = vpop.f32.mrf.mxu0
  %v5012 = vadd.f32 0.0, %v5011
  %v5013 = vpop.f32.mrf.mxu0
  %v5014 = vpop.f32.mrf.mxu0
  %v5015 = vadd.f32 0.0, %v5014
  %v5016 = vpop.f32.mrf.mxu0
  %5017 = vdwg.mxu0
  %v5019 = vsel %vm2756, %v3947, 0
  %v5022 = vsel %vm2756, %v3948, 0
  %5024 = vmatprep.subr.bf16.mxu0 0
  %5025 = vmatpush1.bf16.msra.mxu0 0
  %5026 = vmatprep.subr.bf16.mxu0 0
  %5027 = vmatpush1.bf16.msra.mxu0 0
  %5028 = vmatprep.subr.bf16.mxu0 0
  %5029 = vmatpush1.bf16.msra.mxu0 0
  %5030 = vmatprep.subr.bf16.mxu0 0
  %5031 = vmatpush1.bf16.msra.mxu0 0
  %5032 = vmatprep.subr.bf16.mxu0 0
  %5033 = vmatpush1.bf16.msra.mxu0 0
  %5034 = vmatprep.subr.bf16.mxu0 0
  %5035 = vmatpush1.bf16.msra.mxu0 0
  %5036 = vmatprep.subr.bf16.mxu0 0
  %5037 = vmatpush1.bf16.msra.mxu0 %v579
  %5038 = vmatprep.subr.bf16.mxu0 0
  %5039 = vmatpush1.bf16.msra.mxu0 %v577
  %5040 = vmatprep.subr.bf16.mxu0 0
  %5041 = vmatpush2.bf16.msra.mxu0 0
  %5042 = vmatprep.subr.bf16.mxu0 0
  %5043 = vmatpush2.bf16.msra.mxu0 0
  %5044 = vmatprep.subr.bf16.mxu0 0
  %5045 = vmatpush2.bf16.msra.mxu0 0
  %5046 = vmatprep.subr.bf16.mxu0 0
  %5047 = vmatpush2.bf16.msra.mxu0 0
  %5048 = vmatprep.subr.bf16.mxu0 0
  %5049 = vmatpush2.bf16.msra.mxu0 0
  %5050 = vmatprep.subr.bf16.mxu0 0
  %5051 = vmatpush2.bf16.msra.mxu0 0
  %5052 = vmatprep.subr.bf16.mxu0 0
  %5053 = vmatpush2.bf16.msra.mxu0 0
  %5054 = vmatprep.subr.bf16.mxu0 0
  %5055 = vmatpush2.bf16.msra.mxu0 0
  %5056 = vmatprep.mubr.bf16.mxu0 0
  %5057 = vmatmul.mubr.bf16.gmra.mxu0 %v5019
  %v5058 = vpop.f32.mrf.mxu0
  %v5059 = vadd.f32 0.0, %v5058
  %v5060 = vpop.f32.mrf.mxu0
  %v5061 = vpop.f32.mrf.mxu0
  %v5062 = vadd.f32 0.0, %v5061
  %v5063 = vpop.f32.mrf.mxu0
  %5064 = vmatprep.mubr.bf16.mxu0 0
  %5065 = vmatmul.mubr.bf16.gmra.mxu0 %v5022
  %v5066 = vpop.f32.mrf.mxu0
  %v5067 = vadd.f32 0.0, %v5066
  %v5068 = vpop.f32.mrf.mxu0
  %v5069 = vpop.f32.mrf.mxu0
  %v5070 = vadd.f32 0.0, %v5069
  %v5071 = vpop.f32.mrf.mxu0
  %5072 = vdwg.mxu0
  %v5074 = vsel %vm2756, %v3949, 0
  %v5077 = vsel %vm2756, %v3950, 0
  %5079 = vmatprep.subr.bf16.mxu0 0
  %5080 = vmatpush1.bf16.msra.mxu0 0
  %5081 = vmatprep.subr.bf16.mxu0 0
  %5082 = vmatpush1.bf16.msra.mxu0 0
  %5083 = vmatprep.subr.bf16.mxu0 0
  %5084 = vmatpush1.bf16.msra.mxu0 0
  %5085 = vmatprep.subr.bf16.mxu0 0
  %5086 = vmatpush1.bf16.msra.mxu0 0
  %5087 = vmatprep.subr.bf16.mxu0 0
  %5088 = vmatpush1.bf16.msra.mxu0 0
  %5089 = vmatprep.subr.bf16.mxu0 0
  %5090 = vmatpush1.bf16.msra.mxu0 0
  %5091 = vmatprep.subr.bf16.mxu0 0
  %5092 = vmatpush1.bf16.msra.mxu0 %v583
  %5093 = vmatprep.subr.bf16.mxu0 0
  %5094 = vmatpush1.bf16.msra.mxu0 %v581
  %5095 = vmatprep.subr.bf16.mxu0 0
  %5096 = vmatpush2.bf16.msra.mxu0 0
  %5097 = vmatprep.subr.bf16.mxu0 0
  %5098 = vmatpush2.bf16.msra.mxu0 0
  %5099 = vmatprep.subr.bf16.mxu0 0
  %5100 = vmatpush2.bf16.msra.mxu0 0
  %5101 = vmatprep.subr.bf16.mxu0 0
  %5102 = vmatpush2.bf16.msra.mxu0 0
  %5103 = vmatprep.subr.bf16.mxu0 0
  %5104 = vmatpush2.bf16.msra.mxu0 0
  %5105 = vmatprep.subr.bf16.mxu0 0
  %5106 = vmatpush2.bf16.msra.mxu0 0
  %5107 = vmatprep.subr.bf16.mxu0 0
  %5108 = vmatpush2.bf16.msra.mxu0 0
  %5109 = vmatprep.subr.bf16.mxu0 0
  %5110 = vmatpush2.bf16.msra.mxu0 0
  %5111 = vmatprep.mubr.bf16.mxu0 0
  %5112 = vmatmul.mubr.bf16.gmra.mxu0 %v5074
  %v5113 = vpop.f32.mrf.mxu0
  %v5114 = vadd.f32 0.0, %v5113
  %v5115 = vpop.f32.mrf.mxu0
  %v5116 = vpop.f32.mrf.mxu0
  %v5117 = vadd.f32 0.0, %v5116
  %v5118 = vpop.f32.mrf.mxu0
  %5119 = vmatprep.mubr.bf16.mxu0 0
  %5120 = vmatmul.mubr.bf16.gmra.mxu0 %v5077
  %v5121 = vpop.f32.mrf.mxu0
  %v5122 = vadd.f32 0.0, %v5121
  %v5123 = vpop.f32.mrf.mxu0
  %v5124 = vpop.f32.mrf.mxu0
  %v5125 = vadd.f32 0.0, %v5124
  %v5126 = vpop.f32.mrf.mxu0
  %5127 = vdwg.mxu0
  %v5129 = vsel %vm2756, %v3951, 0
  %v5132 = vsel %vm2756, %v3952, 0
  %5134 = vmatprep.subr.bf16.mxu0 0
  %5135 = vmatpush1.bf16.msra.mxu0 0
  %5136 = vmatprep.subr.bf16.mxu0 0
  %5137 = vmatpush1.bf16.msra.mxu0 0
  %5138 = vmatprep.subr.bf16.mxu0 0
  %5139 = vmatpush1.bf16.msra.mxu0 0
  %5140 = vmatprep.subr.bf16.mxu0 0
  %5141 = vmatpush1.bf16.msra.mxu0 0
  %5142 = vmatprep.subr.bf16.mxu0 0
  %5143 = vmatpush1.bf16.msra.mxu0 0
  %5144 = vmatprep.subr.bf16.mxu0 0
  %5145 = vmatpush1.bf16.msra.mxu0 0
  %5146 = vmatprep.subr.bf16.mxu0 0
  %5147 = vmatpush1.bf16.msra.mxu0 %v587
  %5148 = vmatprep.subr.bf16.mxu0 0
  %5149 = vmatpush1.bf16.msra.mxu0 %v585
  %5150 = vmatprep.subr.bf16.mxu0 0
  %5151 = vmatpush2.bf16.msra.mxu0 0
  %5152 = vmatprep.subr.bf16.mxu0 0
  %5153 = vmatpush2.bf16.msra.mxu0 0
  %5154 = vmatprep.subr.bf16.mxu0 0
  %5155 = vmatpush2.bf16.msra.mxu0 0
  %5156 = vmatprep.subr.bf16.mxu0 0
  %5157 = vmatpush2.bf16.msra.mxu0 0
  %5158 = vmatprep.subr.bf16.mxu0 0
  %5159 = vmatpush2.bf16.msra.mxu0 0
  %5160 = vmatprep.subr.bf16.mxu0 0
  %5161 = vmatpush2.bf16.msra.mxu0 0
  %5162 = vmatprep.subr.bf16.mxu0 0
  %5163 = vmatpush2.bf16.msra.mxu0 0
  %5164 = vmatprep.subr.bf16.mxu0 0
  %5165 = vmatpush2.bf16.msra.mxu0 0
  %5166 = vmatprep.mubr.bf16.mxu0 0
  %5167 = vmatmul.mubr.bf16.gmra.mxu0 %v5129
  %v5168 = vpop.f32.mrf.mxu0
  %v5169 = vadd.f32 0.0, %v5168
  %v5170 = vpop.f32.mrf.mxu0
  %v5171 = vpop.f32.mrf.mxu0
  %v5172 = vadd.f32 0.0, %v5171
  %v5173 = vpop.f32.mrf.mxu0
  %5174 = vmatprep.mubr.bf16.mxu0 0
  %5175 = vmatmul.mubr.bf16.gmra.mxu0 %v5132
  %v5176 = vpop.f32.mrf.mxu0
  %v5177 = vadd.f32 0.0, %v5176
  %v5178 = vpop.f32.mrf.mxu0
  %v5179 = vpop.f32.mrf.mxu0
  %v5180 = vadd.f32 0.0, %v5179
  %v5181 = vpop.f32.mrf.mxu0
  %5182 = vdwg.mxu0
  %v5184 = vsel %vm2756, %v3953, 0
  %v5187 = vsel %vm2756, %v3954, 0
  %5189 = vmatprep.subr.bf16.mxu0 0
  %5190 = vmatpush1.bf16.msra.mxu0 0
  %5191 = vmatprep.subr.bf16.mxu0 0
  %5192 = vmatpush1.bf16.msra.mxu0 0
  %5193 = vmatprep.subr.bf16.mxu0 0
  %5194 = vmatpush1.bf16.msra.mxu0 0
  %5195 = vmatprep.subr.bf16.mxu0 0
  %5196 = vmatpush1.bf16.msra.mxu0 0
  %5197 = vmatprep.subr.bf16.mxu0 0
  %5198 = vmatpush1.bf16.msra.mxu0 0
  %5199 = vmatprep.subr.bf16.mxu0 0
  %5200 = vmatpush1.bf16.msra.mxu0 0
  %5201 = vmatprep.subr.bf16.mxu0 0
  %5202 = vmatpush1.bf16.msra.mxu0 %v591
  %5203 = vmatprep.subr.bf16.mxu0 0
  %5204 = vmatpush1.bf16.msra.mxu0 %v589
  %5205 = vmatprep.subr.bf16.mxu0 0
  %5206 = vmatpush2.bf16.msra.mxu0 0
  %5207 = vmatprep.subr.bf16.mxu0 0
  %5208 = vmatpush2.bf16.msra.mxu0 0
  %5209 = vmatprep.subr.bf16.mxu0 0
  %5210 = vmatpush2.bf16.msra.mxu0 0
  %5211 = vmatprep.subr.bf16.mxu0 0
  %5212 = vmatpush2.bf16.msra.mxu0 0
  %5213 = vmatprep.subr.bf16.mxu0 0
  %5214 = vmatpush2.bf16.msra.mxu0 0
  %5215 = vmatprep.subr.bf16.mxu0 0
  %5216 = vmatpush2.bf16.msra.mxu0 0
  %5217 = vmatprep.subr.bf16.mxu0 0
  %5218 = vmatpush2.bf16.msra.mxu0 0
  %5219 = vmatprep.subr.bf16.mxu0 0
  %5220 = vmatpush2.bf16.msra.mxu0 0
  %5221 = vmatprep.mubr.bf16.mxu0 0
  %5222 = vmatmul.mubr.bf16.gmra.mxu0 %v5184
  %v5223 = vpop.f32.mrf.mxu0
  %v5224 = vadd.f32 0.0, %v5223
  %v5225 = vpop.f32.mrf.mxu0
  %v5226 = vpop.f32.mrf.mxu0
  %v5227 = vadd.f32 0.0, %v5226
  %v5228 = vpop.f32.mrf.mxu0
  %5229 = vmatprep.mubr.bf16.mxu0 0
  %5230 = vmatmul.mubr.bf16.gmra.mxu0 %v5187
  %v5231 = vpop.f32.mrf.mxu0
  %v5232 = vadd.f32 0.0, %v5231
  %v5233 = vpop.f32.mrf.mxu0
  %v5234 = vpop.f32.mrf.mxu0
  %v5235 = vadd.f32 0.0, %v5234
  %v5236 = vpop.f32.mrf.mxu0
  %5237 = vdwg.mxu0
  %v5239 = vsel %vm2756, %v3955, 0
  %v5242 = vsel %vm2756, %v3956, 0
  %5244 = vmatprep.subr.bf16.mxu0 0
  %5245 = vmatpush1.bf16.msra.mxu0 0
  %5246 = vmatprep.subr.bf16.mxu0 0
  %5247 = vmatpush1.bf16.msra.mxu0 0
  %5248 = vmatprep.subr.bf16.mxu0 0
  %5249 = vmatpush1.bf16.msra.mxu0 0
  %5250 = vmatprep.subr.bf16.mxu0 0
  %5251 = vmatpush1.bf16.msra.mxu0 0
  %5252 = vmatprep.subr.bf16.mxu0 0
  %5253 = vmatpush1.bf16.msra.mxu0 0
  %5254 = vmatprep.subr.bf16.mxu0 0
  %5255 = vmatpush1.bf16.msra.mxu0 0
  %5256 = vmatprep.subr.bf16.mxu0 0
  %5257 = vmatpush1.bf16.msra.mxu0 %v595
  %5258 = vmatprep.subr.bf16.mxu0 0
  %5259 = vmatpush1.bf16.msra.mxu0 %v593
  %5260 = vmatprep.subr.bf16.mxu0 0
  %5261 = vmatpush2.bf16.msra.mxu0 0
  %5262 = vmatprep.subr.bf16.mxu0 0
  %5263 = vmatpush2.bf16.msra.mxu0 0
  %5264 = vmatprep.subr.bf16.mxu0 0
  %5265 = vmatpush2.bf16.msra.mxu0 0
  %5266 = vmatprep.subr.bf16.mxu0 0
  %5267 = vmatpush2.bf16.msra.mxu0 0
  %5268 = vmatprep.subr.bf16.mxu0 0
  %5269 = vmatpush2.bf16.msra.mxu0 0
  %5270 = vmatprep.subr.bf16.mxu0 0
  %5271 = vmatpush2.bf16.msra.mxu0 0
  %5272 = vmatprep.subr.bf16.mxu0 0
  %5273 = vmatpush2.bf16.msra.mxu0 0
  %5274 = vmatprep.subr.bf16.mxu0 0
  %5275 = vmatpush2.bf16.msra.mxu0 0
  %5276 = vmatprep.mubr.bf16.mxu0 0
  %5277 = vmatmul.mubr.bf16.gmra.mxu0 %v5239
  %v5278 = vpop.f32.mrf.mxu0
  %v5279 = vadd.f32 0.0, %v5278
  %v5280 = vpop.f32.mrf.mxu0
  %v5281 = vpop.f32.mrf.mxu0
  %v5282 = vadd.f32 0.0, %v5281
  %v5283 = vpop.f32.mrf.mxu0
  %5284 = vmatprep.mubr.bf16.mxu0 0
  %5285 = vmatmul.mubr.bf16.gmra.mxu0 %v5242
  %v5286 = vpop.f32.mrf.mxu0
  %v5287 = vadd.f32 0.0, %v5286
  %v5288 = vpop.f32.mrf.mxu0
  %v5289 = vpop.f32.mrf.mxu0
  %v5290 = vadd.f32 0.0, %v5289
  %v5291 = vpop.f32.mrf.mxu0
  %5292 = vdwg.mxu0
  %v5294 = vsel %vm2756, %v3957, 0
  %v5297 = vsel %vm2756, %v3958, 0
  %5299 = vmatprep.subr.bf16.mxu0 0
  %5300 = vmatpush1.bf16.msra.mxu0 0
  %5301 = vmatprep.subr.bf16.mxu0 0
  %5302 = vmatpush1.bf16.msra.mxu0 0
  %5303 = vmatprep.subr.bf16.mxu0 0
  %5304 = vmatpush1.bf16.msra.mxu0 0
  %5305 = vmatprep.subr.bf16.mxu0 0
  %5306 = vmatpush1.bf16.msra.mxu0 0
  %5307 = vmatprep.subr.bf16.mxu0 0
  %5308 = vmatpush1.bf16.msra.mxu0 0
  %5309 = vmatprep.subr.bf16.mxu0 0
  %5310 = vmatpush1.bf16.msra.mxu0 0
  %5311 = vmatprep.subr.bf16.mxu0 0
  %5312 = vmatpush1.bf16.msra.mxu0 %v615
  %5313 = vmatprep.subr.bf16.mxu0 0
  %5314 = vmatpush1.bf16.msra.mxu0 %v613
  %5315 = vmatprep.subr.bf16.mxu0 0
  %5316 = vmatpush2.bf16.msra.mxu0 0
  %5317 = vmatprep.subr.bf16.mxu0 0
  %5318 = vmatpush2.bf16.msra.mxu0 0
  %5319 = vmatprep.subr.bf16.mxu0 0
  %5320 = vmatpush2.bf16.msra.mxu0 0
  %5321 = vmatprep.subr.bf16.mxu0 0
  %5322 = vmatpush2.bf16.msra.mxu0 0
  %5323 = vmatprep.subr.bf16.mxu0 0
  %5324 = vmatpush2.bf16.msra.mxu0 0
  %5325 = vmatprep.subr.bf16.mxu0 0
  %5326 = vmatpush2.bf16.msra.mxu0 0
  %5327 = vmatprep.subr.bf16.mxu0 0
  %5328 = vmatpush2.bf16.msra.mxu0 0
  %5329 = vmatprep.subr.bf16.mxu0 0
  %5330 = vmatpush2.bf16.msra.mxu0 0
  %5331 = vmatprep.mubr.bf16.mxu0 0
  %5332 = vmatmul.mubr.bf16.gmra.mxu0 %v5294
  %v5333 = vpop.f32.mrf.mxu0
  %v5334 = vadd.f32 0.0, %v5333
  %v5335 = vpop.f32.mrf.mxu0
  %v5336 = vpop.f32.mrf.mxu0
  %v5337 = vadd.f32 0.0, %v5336
  %v5338 = vpop.f32.mrf.mxu0
  %5339 = vmatprep.mubr.bf16.mxu0 0
  %5340 = vmatmul.mubr.bf16.gmra.mxu0 %v5297
  %v5341 = vpop.f32.mrf.mxu0
  %v5342 = vadd.f32 0.0, %v5341
  %v5343 = vpop.f32.mrf.mxu0
  %v5344 = vpop.f32.mrf.mxu0
  %v5345 = vadd.f32 0.0, %v5344
  %v5346 = vpop.f32.mrf.mxu0
  %5347 = vdwg.mxu0
  %v5349 = vsel %vm2756, %v3959, 0
  %v5352 = vsel %vm2756, %v3960, 0
  %5354 = vmatprep.subr.bf16.mxu0 0
  %5355 = vmatpush1.bf16.msra.mxu0 0
  %5356 = vmatprep.subr.bf16.mxu0 0
  %5357 = vmatpush1.bf16.msra.mxu0 0
  %5358 = vmatprep.subr.bf16.mxu0 0
  %5359 = vmatpush1.bf16.msra.mxu0 0
  %5360 = vmatprep.subr.bf16.mxu0 0
  %5361 = vmatpush1.bf16.msra.mxu0 0
  %5362 = vmatprep.subr.bf16.mxu0 0
  %5363 = vmatpush1.bf16.msra.mxu0 0
  %5364 = vmatprep.subr.bf16.mxu0 0
  %5365 = vmatpush1.bf16.msra.mxu0 0
  %5366 = vmatprep.subr.bf16.mxu0 0
  %5367 = vmatpush1.bf16.msra.mxu0 %v619
  %5368 = vmatprep.subr.bf16.mxu0 0
  %5369 = vmatpush1.bf16.msra.mxu0 %v617
  %5370 = vmatprep.subr.bf16.mxu0 0
  %5371 = vmatpush2.bf16.msra.mxu0 0
  %5372 = vmatprep.subr.bf16.mxu0 0
  %5373 = vmatpush2.bf16.msra.mxu0 0
  %5374 = vmatprep.subr.bf16.mxu0 0
  %5375 = vmatpush2.bf16.msra.mxu0 0
  %5376 = vmatprep.subr.bf16.mxu0 0
  %5377 = vmatpush2.bf16.msra.mxu0 0
  %5378 = vmatprep.subr.bf16.mxu0 0
  %5379 = vmatpush2.bf16.msra.mxu0 0
  %5380 = vmatprep.subr.bf16.mxu0 0
  %5381 = vmatpush2.bf16.msra.mxu0 0
  %5382 = vmatprep.subr.bf16.mxu0 0
  %5383 = vmatpush2.bf16.msra.mxu0 0
  %5384 = vmatprep.subr.bf16.mxu0 0
  %5385 = vmatpush2.bf16.msra.mxu0 0
  %5386 = vmatprep.mubr.bf16.mxu0 0
  %5387 = vmatmul.mubr.bf16.gmra.mxu0 %v5349
  %v5388 = vpop.f32.mrf.mxu0
  %v5389 = vadd.f32 0.0, %v5388
  %v5390 = vpop.f32.mrf.mxu0
  %v5391 = vpop.f32.mrf.mxu0
  %v5392 = vadd.f32 0.0, %v5391
  %v5393 = vpop.f32.mrf.mxu0
  %5394 = vmatprep.mubr.bf16.mxu0 0
  %5395 = vmatmul.mubr.bf16.gmra.mxu0 %v5352
  %v5396 = vpop.f32.mrf.mxu0
  %v5397 = vadd.f32 0.0, %v5396
  %v5398 = vpop.f32.mrf.mxu0
  %v5399 = vpop.f32.mrf.mxu0
  %v5400 = vadd.f32 0.0, %v5399
  %v5401 = vpop.f32.mrf.mxu0
  %5402 = vdwg.mxu0
  %v5404 = vsel %vm2756, %v3961, 0
  %v5407 = vsel %vm2756, %v3962, 0
  %5409 = vmatprep.subr.bf16.mxu0 0
  %5410 = vmatpush1.bf16.msra.mxu0 0
  %5411 = vmatprep.subr.bf16.mxu0 0
  %5412 = vmatpush1.bf16.msra.mxu0 0
  %5413 = vmatprep.subr.bf16.mxu0 0
  %5414 = vmatpush1.bf16.msra.mxu0 0
  %5415 = vmatprep.subr.bf16.mxu0 0
  %5416 = vmatpush1.bf16.msra.mxu0 0
  %5417 = vmatprep.subr.bf16.mxu0 0
  %5418 = vmatpush1.bf16.msra.mxu0 0
  %5419 = vmatprep.subr.bf16.mxu0 0
  %5420 = vmatpush1.bf16.msra.mxu0 0
  %5421 = vmatprep.subr.bf16.mxu0 0
  %5422 = vmatpush1.bf16.msra.mxu0 %v623
  %5423 = vmatprep.subr.bf16.mxu0 0
  %5424 = vmatpush1.bf16.msra.mxu0 %v621
  %5425 = vmatprep.subr.bf16.mxu0 0
  %5426 = vmatpush2.bf16.msra.mxu0 0
  %5427 = vmatprep.subr.bf16.mxu0 0
  %5428 = vmatpush2.bf16.msra.mxu0 0
  %5429 = vmatprep.subr.bf16.mxu0 0
  %5430 = vmatpush2.bf16.msra.mxu0 0
  %5431 = vmatprep.subr.bf16.mxu0 0
  %5432 = vmatpush2.bf16.msra.mxu0 0
  %5433 = vmatprep.subr.bf16.mxu0 0
  %5434 = vmatpush2.bf16.msra.mxu0 0
  %5435 = vmatprep.subr.bf16.mxu0 0
  %5436 = vmatpush2.bf16.msra.mxu0 0
  %5437 = vmatprep.subr.bf16.mxu0 0
  %5438 = vmatpush2.bf16.msra.mxu0 0
  %5439 = vmatprep.subr.bf16.mxu0 0
  %5440 = vmatpush2.bf16.msra.mxu0 0
  %5441 = vmatprep.mubr.bf16.mxu0 0
  %5442 = vmatmul.mubr.bf16.gmra.mxu0 %v5404
  %v5443 = vpop.f32.mrf.mxu0
  %v5444 = vadd.f32 0.0, %v5443
  %v5445 = vpop.f32.mrf.mxu0
  %v5446 = vpop.f32.mrf.mxu0
  %v5447 = vadd.f32 0.0, %v5446
  %v5448 = vpop.f32.mrf.mxu0
  %5449 = vmatprep.mubr.bf16.mxu0 0
  %5450 = vmatmul.mubr.bf16.gmra.mxu0 %v5407
  %v5451 = vpop.f32.mrf.mxu0
  %v5452 = vadd.f32 0.0, %v5451
  %v5453 = vpop.f32.mrf.mxu0
  %v5454 = vpop.f32.mrf.mxu0
  %v5455 = vadd.f32 0.0, %v5454
  %v5456 = vpop.f32.mrf.mxu0
  %5457 = vdwg.mxu0
  %v5459 = vsel %vm2756, %v3963, 0
  %v5462 = vsel %vm2756, %v3964, 0
  %5464 = vmatprep.subr.bf16.mxu0 0
  %5465 = vmatpush1.bf16.msra.mxu0 0
  %5466 = vmatprep.subr.bf16.mxu0 0
  %5467 = vmatpush1.bf16.msra.mxu0 0
  %5468 = vmatprep.subr.bf16.mxu0 0
  %5469 = vmatpush1.bf16.msra.mxu0 0
  %5470 = vmatprep.subr.bf16.mxu0 0
  %5471 = vmatpush1.bf16.msra.mxu0 0
  %5472 = vmatprep.subr.bf16.mxu0 0
  %5473 = vmatpush1.bf16.msra.mxu0 0
  %5474 = vmatprep.subr.bf16.mxu0 0
  %5475 = vmatpush1.bf16.msra.mxu0 0
  %5476 = vmatprep.subr.bf16.mxu0 0
  %5477 = vmatpush1.bf16.msra.mxu0 %v627
  %5478 = vmatprep.subr.bf16.mxu0 0
  %5479 = vmatpush1.bf16.msra.mxu0 %v625
  %5480 = vmatprep.subr.bf16.mxu0 0
  %5481 = vmatpush2.bf16.msra.mxu0 0
  %5482 = vmatprep.subr.bf16.mxu0 0
  %5483 = vmatpush2.bf16.msra.mxu0 0
  %5484 = vmatprep.subr.bf16.mxu0 0
  %5485 = vmatpush2.bf16.msra.mxu0 0
  %5486 = vmatprep.subr.bf16.mxu0 0
  %5487 = vmatpush2.bf16.msra.mxu0 0
  %5488 = vmatprep.subr.bf16.mxu0 0
  %5489 = vmatpush2.bf16.msra.mxu0 0
  %5490 = vmatprep.subr.bf16.mxu0 0
  %5491 = vmatpush2.bf16.msra.mxu0 0
  %5492 = vmatprep.subr.bf16.mxu0 0
  %5493 = vmatpush2.bf16.msra.mxu0 0
  %5494 = vmatprep.subr.bf16.mxu0 0
  %5495 = vmatpush2.bf16.msra.mxu0 0
  %5496 = vmatprep.mubr.bf16.mxu0 0
  %5497 = vmatmul.mubr.bf16.gmra.mxu0 %v5459
  %v5498 = vpop.f32.mrf.mxu0
  %v5499 = vadd.f32 0.0, %v5498
  %v5500 = vpop.f32.mrf.mxu0
  %v5501 = vpop.f32.mrf.mxu0
  %v5502 = vadd.f32 0.0, %v5501
  %v5503 = vpop.f32.mrf.mxu0
  %5504 = vmatprep.mubr.bf16.mxu0 0
  %5505 = vmatmul.mubr.bf16.gmra.mxu0 %v5462
  %v5506 = vpop.f32.mrf.mxu0
  %v5507 = vadd.f32 0.0, %v5506
  %v5508 = vpop.f32.mrf.mxu0
  %v5509 = vpop.f32.mrf.mxu0
  %v5510 = vadd.f32 0.0, %v5509
  %v5511 = vpop.f32.mrf.mxu0
  %5512 = vdwg.mxu0
  %v5514 = vsel %vm2756, %v3965, 0
  %v5517 = vsel %vm2756, %v3966, 0
  %5519 = vmatprep.subr.bf16.mxu0 0
  %5520 = vmatpush1.bf16.msra.mxu0 0
  %5521 = vmatprep.subr.bf16.mxu0 0
  %5522 = vmatpush1.bf16.msra.mxu0 0
  %5523 = vmatprep.subr.bf16.mxu0 0
  %5524 = vmatpush1.bf16.msra.mxu0 0
  %5525 = vmatprep.subr.bf16.mxu0 0
  %5526 = vmatpush1.bf16.msra.mxu0 0
  %5527 = vmatprep.subr.bf16.mxu0 0
  %5528 = vmatpush1.bf16.msra.mxu0 0
  %5529 = vmatprep.subr.bf16.mxu0 0
  %5530 = vmatpush1.bf16.msra.mxu0 0
  %5531 = vmatprep.subr.bf16.mxu0 0
  %5532 = vmatpush1.bf16.msra.mxu0 %v631
  %5533 = vmatprep.subr.bf16.mxu0 0
  %5534 = vmatpush1.bf16.msra.mxu0 %v629
  %5535 = vmatprep.subr.bf16.mxu0 0
  %5536 = vmatpush2.bf16.msra.mxu0 0
  %5537 = vmatprep.subr.bf16.mxu0 0
  %5538 = vmatpush2.bf16.msra.mxu0 0
  %5539 = vmatprep.subr.bf16.mxu0 0
  %5540 = vmatpush2.bf16.msra.mxu0 0
  %5541 = vmatprep.subr.bf16.mxu0 0
  %5542 = vmatpush2.bf16.msra.mxu0 0
  %5543 = vmatprep.subr.bf16.mxu0 0
  %5544 = vmatpush2.bf16.msra.mxu0 0
  %5545 = vmatprep.subr.bf16.mxu0 0
  %5546 = vmatpush2.bf16.msra.mxu0 0
  %5547 = vmatprep.subr.bf16.mxu0 0
  %5548 = vmatpush2.bf16.msra.mxu0 0
  %5549 = vmatprep.subr.bf16.mxu0 0
  %5550 = vmatpush2.bf16.msra.mxu0 0
  %5551 = vmatprep.mubr.bf16.mxu0 0
  %5552 = vmatmul.mubr.bf16.gmra.mxu0 %v5514
  %v5553 = vpop.f32.mrf.mxu0
  %v5554 = vadd.f32 0.0, %v5553
  %v5555 = vpop.f32.mrf.mxu0
  %v5556 = vpop.f32.mrf.mxu0
  %v5557 = vadd.f32 0.0, %v5556
  %v5558 = vpop.f32.mrf.mxu0
  %5559 = vmatprep.mubr.bf16.mxu0 0
  %5560 = vmatmul.mubr.bf16.gmra.mxu0 %v5517
  %v5561 = vpop.f32.mrf.mxu0
  %v5562 = vadd.f32 0.0, %v5561
  %v5563 = vpop.f32.mrf.mxu0
  %v5564 = vpop.f32.mrf.mxu0
  %v5565 = vadd.f32 0.0, %v5564
  %v5566 = vpop.f32.mrf.mxu0
  %5567 = vdwg.mxu0
  %v5569 = vsel %vm2756, %v3967, 0
  %v5572 = vsel %vm2756, %v3968, 0
  %5574 = vmatprep.subr.bf16.mxu0 0
  %5575 = vmatpush1.bf16.msra.mxu0 0
  %5576 = vmatprep.subr.bf16.mxu0 0
  %5577 = vmatpush1.bf16.msra.mxu0 0
  %5578 = vmatprep.subr.bf16.mxu0 0
  %5579 = vmatpush1.bf16.msra.mxu0 0
  %5580 = vmatprep.subr.bf16.mxu0 0
  %5581 = vmatpush1.bf16.msra.mxu0 0
  %5582 = vmatprep.subr.bf16.mxu0 0
  %5583 = vmatpush1.bf16.msra.mxu0 0
  %5584 = vmatprep.subr.bf16.mxu0 0
  %5585 = vmatpush1.bf16.msra.mxu0 0
  %5586 = vmatprep.subr.bf16.mxu0 0
  %5587 = vmatpush1.bf16.msra.mxu0 %v635
  %5588 = vmatprep.subr.bf16.mxu0 0
  %5589 = vmatpush1.bf16.msra.mxu0 %v633
  %5590 = vmatprep.subr.bf16.mxu0 0
  %5591 = vmatpush2.bf16.msra.mxu0 0
  %5592 = vmatprep.subr.bf16.mxu0 0
  %5593 = vmatpush2.bf16.msra.mxu0 0
  %5594 = vmatprep.subr.bf16.mxu0 0
  %5595 = vmatpush2.bf16.msra.mxu0 0
  %5596 = vmatprep.subr.bf16.mxu0 0
  %5597 = vmatpush2.bf16.msra.mxu0 0
  %5598 = vmatprep.subr.bf16.mxu0 0
  %5599 = vmatpush2.bf16.msra.mxu0 0
  %5600 = vmatprep.subr.bf16.mxu0 0
  %5601 = vmatpush2.bf16.msra.mxu0 0
  %5602 = vmatprep.subr.bf16.mxu0 0
  %5603 = vmatpush2.bf16.msra.mxu0 0
  %5604 = vmatprep.subr.bf16.mxu0 0
  %5605 = vmatpush2.bf16.msra.mxu0 0
  %5606 = vmatprep.mubr.bf16.mxu0 0
  %5607 = vmatmul.mubr.bf16.gmra.mxu0 %v5569
  %v5608 = vpop.f32.mrf.mxu0
  %v5609 = vadd.f32 0.0, %v5608
  %v5610 = vpop.f32.mrf.mxu0
  %v5611 = vpop.f32.mrf.mxu0
  %v5612 = vadd.f32 0.0, %v5611
  %v5613 = vpop.f32.mrf.mxu0
  %5614 = vmatprep.mubr.bf16.mxu0 0
  %5615 = vmatmul.mubr.bf16.gmra.mxu0 %v5572
  %v5616 = vpop.f32.mrf.mxu0
  %v5617 = vadd.f32 0.0, %v5616
  %v5618 = vpop.f32.mrf.mxu0
  %v5619 = vpop.f32.mrf.mxu0
  %v5620 = vadd.f32 0.0, %v5619
  %v5621 = vpop.f32.mrf.mxu0
  %5622 = vdwg.mxu0
  %v5624 = vsel %vm2756, %v3969, 0
  %v5627 = vsel %vm2756, %v3970, 0
  %5629 = vmatprep.subr.bf16.mxu0 0
  %5630 = vmatpush1.bf16.msra.mxu0 0
  %5631 = vmatprep.subr.bf16.mxu0 0
  %5632 = vmatpush1.bf16.msra.mxu0 0
  %5633 = vmatprep.subr.bf16.mxu0 0
  %5634 = vmatpush1.bf16.msra.mxu0 0
  %5635 = vmatprep.subr.bf16.mxu0 0
  %5636 = vmatpush1.bf16.msra.mxu0 0
  %5637 = vmatprep.subr.bf16.mxu0 0
  %5638 = vmatpush1.bf16.msra.mxu0 0
  %5639 = vmatprep.subr.bf16.mxu0 0
  %5640 = vmatpush1.bf16.msra.mxu0 0
  %5641 = vmatprep.subr.bf16.mxu0 0
  %5642 = vmatpush1.bf16.msra.mxu0 %v639
  %5643 = vmatprep.subr.bf16.mxu0 0
  %5644 = vmatpush1.bf16.msra.mxu0 %v637
  %5645 = vmatprep.subr.bf16.mxu0 0
  %5646 = vmatpush2.bf16.msra.mxu0 0
  %5647 = vmatprep.subr.bf16.mxu0 0
  %5648 = vmatpush2.bf16.msra.mxu0 0
  %5649 = vmatprep.subr.bf16.mxu0 0
  %5650 = vmatpush2.bf16.msra.mxu0 0
  %5651 = vmatprep.subr.bf16.mxu0 0
  %5652 = vmatpush2.bf16.msra.mxu0 0
  %5653 = vmatprep.subr.bf16.mxu0 0
  %5654 = vmatpush2.bf16.msra.mxu0 0
  %5655 = vmatprep.subr.bf16.mxu0 0
  %5656 = vmatpush2.bf16.msra.mxu0 0
  %5657 = vmatprep.subr.bf16.mxu0 0
  %5658 = vmatpush2.bf16.msra.mxu0 0
  %5659 = vmatprep.subr.bf16.mxu0 0
  %5660 = vmatpush2.bf16.msra.mxu0 0
  %5661 = vmatprep.mubr.bf16.mxu0 0
  %5662 = vmatmul.mubr.bf16.gmra.mxu0 %v5624
  %v5663 = vpop.f32.mrf.mxu0
  %v5664 = vadd.f32 0.0, %v5663
  %v5665 = vpop.f32.mrf.mxu0
  %v5666 = vpop.f32.mrf.mxu0
  %v5667 = vadd.f32 0.0, %v5666
  %v5668 = vpop.f32.mrf.mxu0
  %5669 = vmatprep.mubr.bf16.mxu0 0
  %5670 = vmatmul.mubr.bf16.gmra.mxu0 %v5627
  %v5671 = vpop.f32.mrf.mxu0
  %v5672 = vadd.f32 0.0, %v5671
  %v5673 = vpop.f32.mrf.mxu0
  %v5674 = vpop.f32.mrf.mxu0
  %v5675 = vadd.f32 0.0, %v5674
  %v5676 = vpop.f32.mrf.mxu0
  %5677 = vdwg.mxu0
  %v5679 = vsel %vm2756, %v3971, 0
  %v5682 = vsel %vm2756, %v3972, 0
  %5684 = vmatprep.subr.bf16.mxu0 0
  %5685 = vmatpush1.bf16.msra.mxu0 0
  %5686 = vmatprep.subr.bf16.mxu0 0
  %5687 = vmatpush1.bf16.msra.mxu0 0
  %5688 = vmatprep.subr.bf16.mxu0 0
  %5689 = vmatpush1.bf16.msra.mxu0 0
  %5690 = vmatprep.subr.bf16.mxu0 0
  %5691 = vmatpush1.bf16.msra.mxu0 0
  %5692 = vmatprep.subr.bf16.mxu0 0
  %5693 = vmatpush1.bf16.msra.mxu0 0
  %5694 = vmatprep.subr.bf16.mxu0 0
  %5695 = vmatpush1.bf16.msra.mxu0 0
  %5696 = vmatprep.subr.bf16.mxu0 0
  %5697 = vmatpush1.bf16.msra.mxu0 %v643
  %5698 = vmatprep.subr.bf16.mxu0 0
  %5699 = vmatpush1.bf16.msra.mxu0 %v641
  %5700 = vmatprep.subr.bf16.mxu0 0
  %5701 = vmatpush2.bf16.msra.mxu0 0
  %5702 = vmatprep.subr.bf16.mxu0 0
  %5703 = vmatpush2.bf16.msra.mxu0 0
  %5704 = vmatprep.subr.bf16.mxu0 0
  %5705 = vmatpush2.bf16.msra.mxu0 0
  %5706 = vmatprep.subr.bf16.mxu0 0
  %5707 = vmatpush2.bf16.msra.mxu0 0
  %5708 = vmatprep.subr.bf16.mxu0 0
  %5709 = vmatpush2.bf16.msra.mxu0 0
  %5710 = vmatprep.subr.bf16.mxu0 0
  %5711 = vmatpush2.bf16.msra.mxu0 0
  %5712 = vmatprep.subr.bf16.mxu0 0
  %5713 = vmatpush2.bf16.msra.mxu0 0
  %5714 = vmatprep.subr.bf16.mxu0 0
  %5715 = vmatpush2.bf16.msra.mxu0 0
  %5716 = vmatprep.mubr.bf16.mxu0 0
  %5717 = vmatmul.mubr.bf16.gmra.mxu0 %v5679
  %v5718 = vpop.f32.mrf.mxu0
  %v5719 = vadd.f32 0.0, %v5718
  %v5720 = vpop.f32.mrf.mxu0
  %v5721 = vpop.f32.mrf.mxu0
  %v5722 = vadd.f32 0.0, %v5721
  %v5723 = vpop.f32.mrf.mxu0
  %5724 = vmatprep.mubr.bf16.mxu0 0
  %5725 = vmatmul.mubr.bf16.gmra.mxu0 %v5682
  %v5726 = vpop.f32.mrf.mxu0
  %v5727 = vadd.f32 0.0, %v5726
  %v5728 = vpop.f32.mrf.mxu0
  %v5729 = vpop.f32.mrf.mxu0
  %v5730 = vadd.f32 0.0, %v5729
  %v5731 = vpop.f32.mrf.mxu0
  %5732 = vdwg.mxu0
  %v5733 = vrcp.pop %v3527
  %v5734 = vrcp.pop %v3530
  %v5735 = vrcp.pop %v3533
  %v5736 = vrcp.pop %v3536
  %v5737 = vrcp.pop %v3539
  %v5738 = vrcp.pop %v3542
  %v5739 = vrcp.pop %v3545
  %v5740 = vrcp.pop %v3548
  %v5741 = vrcp.pop %v3551
  %v5742 = vrcp.pop %v3554
  %v5743 = vrcp.pop %v3557
  %v5744 = vrcp.pop %v3560
  %v5745 = vrcp.pop %v3563
  %v5746 = vrcp.pop %v3566
  %v5747 = vrcp.pop %v3569
  %v5748 = vrcp.pop %v3572
  %v5749 = vrcp.pop %v3575
  %v5750 = vrcp.pop %v3578
  %v5751 = vrcp.pop %v3581
  %v5752 = vrcp.pop %v3584
  %v5753 = vrcp.pop %v3587
  %v5754 = vrcp.pop %v3590
  %v5755 = vrcp.pop %v3593
  %v5756 = vrcp.pop %v3596
  %v5757 = vrcp.pop %v3599
  %v5758 = vrcp.pop %v3602
  %v5759 = vrcp.pop %v3605
  %v5760 = vrcp.pop %v3608
  %v5761 = vrcp.pop %v3611
  %v5762 = vrcp.pop %v3614
  %v5763 = vrcp.pop %v3617
  %v5764 = vrcp.pop %v3620
  %v5765 = vrcp.pop %v3623
  %v5766 = vrcp.pop %v3626
  %v5767 = vrcp.pop %v3629
  %v5768 = vrcp.pop %v3632
  %v5769 = vrcp.pop %v3635
  %v5770 = vrcp.pop %v3638
  %v5771 = vrcp.pop %v3641
  %v5772 = vrcp.pop %v3644
  %v5773 = vrcp.pop %v3647
  %v5774 = vrcp.pop %v3650
  %v5775 = vrcp.pop %v3653
  %v5776 = vrcp.pop %v3656
  %v5777 = vrcp.pop %v3659
  %v5778 = vrcp.pop %v3662
  %v5779 = vrcp.pop %v3665
  %v5780 = vrcp.pop %v3668
  %v5781 = vrcp.pop %v3671
  %v5782 = vrcp.pop %v3674
  %v5783 = vrcp.pop %v3677
  %v5784 = vrcp.pop %v3680
  %v5785 = vrcp.pop %v3683
  %v5786 = vrcp.pop %v3686
  %v5787 = vrcp.pop %v3689
  %v5788 = vrcp.pop %v3692
  %v5789 = vrcp.pop %v3695
  %v5790 = vrcp.pop %v3698
  %v5791 = vrcp.pop %v3701
  %v5792 = vrcp.pop %v3704
  %v5793 = vrcp.pop %v3707
  %v5794 = vrcp.pop %v3710
  %v5795 = vrcp.pop %v3713
  %v5796 = vrcp.pop %v3716
  %v5797 = vrcp.pop %v3719
  %v5798 = vrcp.pop %v3722
  %v5799 = vrcp.pop %v3725
  %v5800 = vrcp.pop %v3728
  %v5801 = vrcp.pop %v3731
  %v5802 = vrcp.pop %v3734
  %v5803 = vrcp.pop %v3737
  %v5804 = vrcp.pop %v3740
  %v5805 = vrcp.pop %v3743
  %v5806 = vrcp.pop %v3746
  %v5807 = vrcp.pop %v3749
  %v5808 = vrcp.pop %v3752
  %v5809 = vrcp.pop %v3755
  %v5810 = vrcp.pop %v3758
  %v5811 = vrcp.pop %v3761
  %v5812 = vrcp.pop %v3764
  %v5813 = vrcp.pop %v3767
  %v5814 = vrcp.pop %v3770
  %v5815 = vrcp.pop %v3773
  %v5816 = vrcp.pop %v3776
  %v5817 = vrcp.pop %v3779
  %v5818 = vrcp.pop %v3782
  %v5819 = vrcp.pop %v3785
  %v5820 = vrcp.pop %v3788
  %v5821 = vrcp.pop %v3791
  %v5822 = vrcp.pop %v3794
  %v5823 = vrcp.pop %v3797
  %v5824 = vrcp.pop %v3800
  %v5825 = vrcp.pop %v3803
  %v5826 = vrcp.pop %v3806
  %v5827 = vrcp.pop %v3809
  %v5828 = vrcp.pop %v3812
  %v5829 = vrcp.pop %v3815
  %v5830 = vrcp.pop %v3818
  %v5831 = vrcp.pop %v3821
  %v5832 = vrcp.pop %v3824
  %v5833 = vrcp.pop %v3827
  %v5834 = vrcp.pop %v3830
  %v5835 = vrcp.pop %v3833
  %v5836 = vrcp.pop %v3836
  %v5837 = vrcp.pop %v3839
  %v5838 = vrcp.pop %v3842
  %v5839 = vrcp.pop %v3845
  %v5840 = vrcp.pop %v3848
  %v5841 = vrcp.pop %v3851
  %v5842 = vrcp.pop %v3854
  %v5843 = vrcp.pop %v3857
  %v5844 = vrcp.pop %v3860
  %v5845 = vrcp.pop %v3863
  %v5846 = vrcp.pop %v3866
  %v5847 = vrcp.pop %v3869
  %v5848 = vrcp.pop %v3872
  %v5849 = vrcp.pop %v3875
  %v5850 = vrcp.pop %v3878
  %v5851 = vrcp.pop %v3881
  %v5852 = vrcp.pop %v3884
  %v5853 = vrcp.pop %v3887
  %v5854 = vrcp.pop %v3890
  %v5855 = vrcp.pop %v3893
  %v5856 = vrcp.pop %v3896
  %v5857 = vrcp.pop %v3899
  %v5858 = vrcp.pop %v3902
  %v5859 = vrcp.pop %v3905
  %v5860 = vrcp.pop %v3908
  %v5861 = vmul.f32 %v4014, %v5733
  %v5862 = vmul.f32 %v4017, %v5734
  %v5863 = vmul.f32 %v4022, %v5735
  %v5864 = vmul.f32 %v4025, %v5736
  %v5865 = vmul.f32 %v4069, %v5737
  %v5866 = vmul.f32 %v4072, %v5738
  %v5867 = vmul.f32 %v4077, %v5739
  %v5868 = vmul.f32 %v4080, %v5740
  %v5869 = vmul.f32 %v4124, %v5741
  %v5870 = vmul.f32 %v4127, %v5742
  %v5871 = vmul.f32 %v4132, %v5743
  %v5872 = vmul.f32 %v4135, %v5744
  %v5873 = vmul.f32 %v4179, %v5745
  %v5874 = vmul.f32 %v4182, %v5746
  %v5875 = vmul.f32 %v4187, %v5747
  %v5876 = vmul.f32 %v4190, %v5748
  %v5877 = vmul.f32 %v4234, %v5749
  %v5878 = vmul.f32 %v4237, %v5750
  %v5879 = vmul.f32 %v4242, %v5751
  %v5880 = vmul.f32 %v4245, %v5752
  %v5881 = vmul.f32 %v4289, %v5753
  %v5882 = vmul.f32 %v4292, %v5754
  %v5883 = vmul.f32 %v4297, %v5755
  %v5884 = vmul.f32 %v4300, %v5756
  %v5885 = vmul.f32 %v4344, %v5757
  %v5886 = vmul.f32 %v4347, %v5758
  %v5887 = vmul.f32 %v4352, %v5759
  %v5888 = vmul.f32 %v4355, %v5760
  %v5889 = vmul.f32 %v4399, %v5761
  %v5890 = vmul.f32 %v4402, %v5762
  %v5891 = vmul.f32 %v4407, %v5763
  %v5892 = vmul.f32 %v4410, %v5764
  %v5893 = vmul.f32 %v4454, %v5765
  %v5894 = vmul.f32 %v4457, %v5766
  %v5895 = vmul.f32 %v4462, %v5767
  %v5896 = vmul.f32 %v4465, %v5768
  %v5897 = vmul.f32 %v4509, %v5769
  %v5898 = vmul.f32 %v4512, %v5770
  %v5899 = vmul.f32 %v4517, %v5771
  %v5900 = vmul.f32 %v4520, %v5772
  %v5901 = vmul.f32 %v4564, %v5773
  %v5902 = vmul.f32 %v4567, %v5774
  %v5903 = vmul.f32 %v4572, %v5775
  %v5904 = vmul.f32 %v4575, %v5776
  %v5905 = vmul.f32 %v4619, %v5777
  %v5906 = vmul.f32 %v4622, %v5778
  %v5907 = vmul.f32 %v4627, %v5779
  %v5908 = vmul.f32 %v4630, %v5780
  %v5909 = vmul.f32 %v4674, %v5781
  %v5910 = vmul.f32 %v4677, %v5782
  %v5911 = vmul.f32 %v4682, %v5783
  %v5912 = vmul.f32 %v4685, %v5784
  %v5913 = vmul.f32 %v4729, %v5785
  %v5914 = vmul.f32 %v4732, %v5786
  %v5915 = vmul.f32 %v4737, %v5787
  %v5916 = vmul.f32 %v4740, %v5788
  %v5917 = vmul.f32 %v4784, %v5789
  %v5918 = vmul.f32 %v4787, %v5790
  %v5919 = vmul.f32 %v4792, %v5791
  %v5920 = vmul.f32 %v4795, %v5792
  %v5921 = vmul.f32 %v4839, %v5793
  %v5922 = vmul.f32 %v4842, %v5794
  %v5923 = vmul.f32 %v4847, %v5795
  %v5924 = vmul.f32 %v4850, %v5796
  %v5925 = vmul.f32 %v4894, %v5797
  %v5926 = vmul.f32 %v4897, %v5798
  %v5927 = vmul.f32 %v4902, %v5799
  %v5928 = vmul.f32 %v4905, %v5800
  %v5929 = vmul.f32 %v4949, %v5801
  %v5930 = vmul.f32 %v4952, %v5802
  %v5931 = vmul.f32 %v4957, %v5803
  %v5932 = vmul.f32 %v4960, %v5804
  %v5933 = vmul.f32 %v5004, %v5805
  %v5934 = vmul.f32 %v5007, %v5806
  %v5935 = vmul.f32 %v5012, %v5807
  %v5936 = vmul.f32 %v5015, %v5808
  %v5937 = vmul.f32 %v5059, %v5809
  %v5938 = vmul.f32 %v5062, %v5810
  %v5939 = vmul.f32 %v5067, %v5811
  %v5940 = vmul.f32 %v5070, %v5812
  %v5941 = vmul.f32 %v5114, %v5813
  %v5942 = vmul.f32 %v5117, %v5814
  %v5943 = vmul.f32 %v5122, %v5815
  %v5944 = vmul.f32 %v5125, %v5816
  %v5945 = vmul.f32 %v5169, %v5817
  %v5946 = vmul.f32 %v5172, %v5818
  %v5947 = vmul.f32 %v5177, %v5819
  %v5948 = vmul.f32 %v5180, %v5820
  %v5949 = vmul.f32 %v5224, %v5821
  %v5950 = vmul.f32 %v5227, %v5822
  %v5951 = vmul.f32 %v5232, %v5823
  %v5952 = vmul.f32 %v5235, %v5824
  %v5953 = vmul.f32 %v5279, %v5825
  %v5954 = vmul.f32 %v5282, %v5826
  %v5955 = vmul.f32 %v5287, %v5827
  %v5956 = vmul.f32 %v5290, %v5828
  %v5957 = vmul.f32 %v5334, %v5829
  %v5958 = vmul.f32 %v5337, %v5830
  %v5959 = vmul.f32 %v5342, %v5831
  %v5960 = vmul.f32 %v5345, %v5832
  %v5961 = vmul.f32 %v5389, %v5833
  %v5962 = vmul.f32 %v5392, %v5834
  %v5963 = vmul.f32 %v5397, %v5835
  %v5964 = vmul.f32 %v5400, %v5836
  %v5965 = vmul.f32 %v5444, %v5837
  %v5966 = vmul.f32 %v5447, %v5838
  %v5967 = vmul.f32 %v5452, %v5839
  %v5968 = vmul.f32 %v5455, %v5840
  %v5969 = vmul.f32 %v5499, %v5841
  %v5970 = vmul.f32 %v5502, %v5842
  %v5971 = vmul.f32 %v5507, %v5843
  %v5972 = vmul.f32 %v5510, %v5844
  %v5973 = vmul.f32 %v5554, %v5845
  %v5974 = vmul.f32 %v5557, %v5846
  %v5975 = vmul.f32 %v5562, %v5847
  %v5976 = vmul.f32 %v5565, %v5848
  %v5977 = vmul.f32 %v5609, %v5849
  %v5978 = vmul.f32 %v5612, %v5850
  %v5979 = vmul.f32 %v5617, %v5851
  %v5980 = vmul.f32 %v5620, %v5852
  %v5981 = vmul.f32 %v5664, %v5853
  %v5982 = vmul.f32 %v5667, %v5854
  %v5983 = vmul.f32 %v5672, %v5855
  %v5984 = vmul.f32 %v5675, %v5856
  %v5985 = vmul.f32 %v5719, %v5857
  %v5986 = vmul.f32 %v5722, %v5858
  %v5987 = vmul.f32 %v5727, %v5859
  %v5988 = vmul.f32 %v5730, %v5860
  %6021 = vrot.lane.b32.xlu0 %v5893, 16
  %v6022 = vpop.permute.xlu0 %6021
  %6023 = vrot.lane.b32.xlu0 %v5894, 16
  %v6024 = vpop.permute.xlu0 %6023
  %6025 = vrot.lane.b32.xlu0 %v5895, 16
  %v6026 = vpop.permute.xlu0 %6025
  %6027 = vrot.lane.b32.xlu0 %v5896, 16
  %v6028 = vpop.permute.xlu0 %6027
  %6029 = vrot.lane.b32.xlu0 %v5897, 16
  %v6030 = vpop.permute.xlu0 %6029
  %6031 = vrot.lane.b32.xlu0 %v5898, 16
  %v6032 = vpop.permute.xlu0 %6031
  %6033 = vrot.lane.b32.xlu0 %v5899, 16
  %v6034 = vpop.permute.xlu0 %6033
  %6035 = vrot.lane.b32.xlu0 %v5900, 16
  %v6036 = vpop.permute.xlu0 %6035
  %6037 = vrot.lane.b32.xlu0 %v5901, 16
  %v6038 = vpop.permute.xlu0 %6037
  %6039 = vrot.lane.b32.xlu0 %v5902, 16
  %v6040 = vpop.permute.xlu0 %6039
  %6041 = vrot.lane.b32.xlu0 %v5903, 16
  %v6042 = vpop.permute.xlu0 %6041
  %6043 = vrot.lane.b32.xlu0 %v5904, 16
  %v6044 = vpop.permute.xlu0 %6043
  %6045 = vrot.lane.b32.xlu0 %v5905, 16
  %v6046 = vpop.permute.xlu0 %6045
  %6047 = vrot.lane.b32.xlu0 %v5906, 16
  %v6048 = vpop.permute.xlu0 %6047
  %6049 = vrot.lane.b32.xlu0 %v5907, 16
  %v6050 = vpop.permute.xlu0 %6049
  %6051 = vrot.lane.b32.xlu0 %v5908, 16
  %v6052 = vpop.permute.xlu0 %6051
  %6053 = vrot.lane.b32.xlu0 %v5909, 16
  %v6054 = vpop.permute.xlu0 %6053
  %6055 = vrot.lane.b32.xlu0 %v5910, 16
  %v6056 = vpop.permute.xlu0 %6055
  %6057 = vrot.lane.b32.xlu0 %v5911, 16
  %v6058 = vpop.permute.xlu0 %6057
  %6059 = vrot.lane.b32.xlu0 %v5912, 16
  %v6060 = vpop.permute.xlu0 %6059
  %6061 = vrot.lane.b32.xlu0 %v5913, 16
  %v6062 = vpop.permute.xlu0 %6061
  %6063 = vrot.lane.b32.xlu0 %v5914, 16
  %v6064 = vpop.permute.xlu0 %6063
  %6065 = vrot.lane.b32.xlu0 %v5915, 16
  %v6066 = vpop.permute.xlu0 %6065
  %6067 = vrot.lane.b32.xlu0 %v5916, 16
  %v6068 = vpop.permute.xlu0 %6067
  %6069 = vrot.lane.b32.xlu0 %v5917, 16
  %v6070 = vpop.permute.xlu0 %6069
  %6071 = vrot.lane.b32.xlu0 %v5918, 16
  %v6072 = vpop.permute.xlu0 %6071
  %6073 = vrot.lane.b32.xlu0 %v5919, 16
  %v6074 = vpop.permute.xlu0 %6073
  %6075 = vrot.lane.b32.xlu0 %v5920, 16
  %v6076 = vpop.permute.xlu0 %6075
  %6077 = vrot.lane.b32.xlu0 %v5921, 16
  %v6078 = vpop.permute.xlu0 %6077
  %6079 = vrot.lane.b32.xlu0 %v5922, 16
  %v6080 = vpop.permute.xlu0 %6079
  %6081 = vrot.lane.b32.xlu0 %v5923, 16
  %v6082 = vpop.permute.xlu0 %6081
  %6083 = vrot.lane.b32.xlu0 %v5924, 16
  %v6084 = vpop.permute.xlu0 %6083
  %6149 = vrot.lane.b32.xlu0 %v5925, 32
  %v6150 = vpop.permute.xlu0 %6149
  %6151 = vrot.lane.b32.xlu0 %v5926, 32
  %v6152 = vpop.permute.xlu0 %6151
  %6153 = vrot.lane.b32.xlu0 %v5927, 32
  %v6154 = vpop.permute.xlu0 %6153
  %6155 = vrot.lane.b32.xlu0 %v5928, 32
  %v6156 = vpop.permute.xlu0 %6155
  %6157 = vrot.lane.b32.xlu0 %v5929, 32
  %v6158 = vpop.permute.xlu0 %6157
  %6159 = vrot.lane.b32.xlu0 %v5930, 32
  %v6160 = vpop.permute.xlu0 %6159
  %6161 = vrot.lane.b32.xlu0 %v5931, 32
  %v6162 = vpop.permute.xlu0 %6161
  %6163 = vrot.lane.b32.xlu0 %v5932, 32
  %v6164 = vpop.permute.xlu0 %6163
  %6165 = vrot.lane.b32.xlu0 %v5933, 32
  %v6166 = vpop.permute.xlu0 %6165
  %6167 = vrot.lane.b32.xlu0 %v5934, 32
  %v6168 = vpop.permute.xlu0 %6167
  %6169 = vrot.lane.b32.xlu0 %v5935, 32
  %v6170 = vpop.permute.xlu0 %6169
  %6171 = vrot.lane.b32.xlu0 %v5936, 32
  %v6172 = vpop.permute.xlu0 %6171
  %6173 = vrot.lane.b32.xlu0 %v5937, 32
  %v6174 = vpop.permute.xlu0 %6173
  %6175 = vrot.lane.b32.xlu0 %v5938, 32
  %v6176 = vpop.permute.xlu0 %6175
  %6177 = vrot.lane.b32.xlu0 %v5939, 32
  %v6178 = vpop.permute.xlu0 %6177
  %6179 = vrot.lane.b32.xlu0 %v5940, 32
  %v6180 = vpop.permute.xlu0 %6179
  %6181 = vrot.lane.b32.xlu0 %v5941, 32
  %v6182 = vpop.permute.xlu0 %6181
  %6183 = vrot.lane.b32.xlu0 %v5942, 32
  %v6184 = vpop.permute.xlu0 %6183
  %6185 = vrot.lane.b32.xlu0 %v5943, 32
  %v6186 = vpop.permute.xlu0 %6185
  %6187 = vrot.lane.b32.xlu0 %v5944, 32
  %v6188 = vpop.permute.xlu0 %6187
  %6189 = vrot.lane.b32.xlu0 %v5945, 32
  %v6190 = vpop.permute.xlu0 %6189
  %6191 = vrot.lane.b32.xlu0 %v5946, 32
  %v6192 = vpop.permute.xlu0 %6191
  %6193 = vrot.lane.b32.xlu0 %v5947, 32
  %v6194 = vpop.permute.xlu0 %6193
  %6195 = vrot.lane.b32.xlu0 %v5948, 32
  %v6196 = vpop.permute.xlu0 %6195
  %6197 = vrot.lane.b32.xlu0 %v5949, 32
  %v6198 = vpop.permute.xlu0 %6197
  %6199 = vrot.lane.b32.xlu0 %v5950, 32
  %v6200 = vpop.permute.xlu0 %6199
  %6201 = vrot.lane.b32.xlu0 %v5951, 32
  %v6202 = vpop.permute.xlu0 %6201
  %6203 = vrot.lane.b32.xlu0 %v5952, 32
  %v6204 = vpop.permute.xlu0 %6203
  %6205 = vrot.lane.b32.xlu0 %v5953, 32
  %v6206 = vpop.permute.xlu0 %6205
  %6207 = vrot.lane.b32.xlu0 %v5954, 32
  %v6208 = vpop.permute.xlu0 %6207
  %6209 = vrot.lane.b32.xlu0 %v5955, 32
  %v6210 = vpop.permute.xlu0 %6209
  %6211 = vrot.lane.b32.xlu0 %v5956, 32
  %v6212 = vpop.permute.xlu0 %6211
  %6277 = vrot.lane.b32.xlu0 %v5957, 48
  %v6278 = vpop.permute.xlu0 %6277
  %6279 = vrot.lane.b32.xlu0 %v5958, 48
  %v6280 = vpop.permute.xlu0 %6279
  %6281 = vrot.lane.b32.xlu0 %v5959, 48
  %v6282 = vpop.permute.xlu0 %6281
  %6283 = vrot.lane.b32.xlu0 %v5960, 48
  %v6284 = vpop.permute.xlu0 %6283
  %6285 = vrot.lane.b32.xlu0 %v5961, 48
  %v6286 = vpop.permute.xlu0 %6285
  %6287 = vrot.lane.b32.xlu0 %v5962, 48
  %v6288 = vpop.permute.xlu0 %6287
  %6289 = vrot.lane.b32.xlu0 %v5963, 48
  %v6290 = vpop.permute.xlu0 %6289
  %6291 = vrot.lane.b32.xlu0 %v5964, 48
  %v6292 = vpop.permute.xlu0 %6291
  %6293 = vrot.lane.b32.xlu0 %v5965, 48
  %v6294 = vpop.permute.xlu0 %6293
  %6295 = vrot.lane.b32.xlu0 %v5966, 48
  %v6296 = vpop.permute.xlu0 %6295
  %6297 = vrot.lane.b32.xlu0 %v5967, 48
  %v6298 = vpop.permute.xlu0 %6297
  %6299 = vrot.lane.b32.xlu0 %v5968, 48
  %v6300 = vpop.permute.xlu0 %6299
  %6301 = vrot.lane.b32.xlu0 %v5969, 48
  %v6302 = vpop.permute.xlu0 %6301
  %6303 = vrot.lane.b32.xlu0 %v5970, 48
  %v6304 = vpop.permute.xlu0 %6303
  %6305 = vrot.lane.b32.xlu0 %v5971, 48
  %v6306 = vpop.permute.xlu0 %6305
  %6307 = vrot.lane.b32.xlu0 %v5972, 48
  %v6308 = vpop.permute.xlu0 %6307
  %6309 = vrot.lane.b32.xlu0 %v5973, 48
  %v6310 = vpop.permute.xlu0 %6309
  %6311 = vrot.lane.b32.xlu0 %v5974, 48
  %v6312 = vpop.permute.xlu0 %6311
  %6313 = vrot.lane.b32.xlu0 %v5975, 48
  %v6314 = vpop.permute.xlu0 %6313
  %6315 = vrot.lane.b32.xlu0 %v5976, 48
  %v6316 = vpop.permute.xlu0 %6315
  %6317 = vrot.lane.b32.xlu0 %v5977, 48
  %v6318 = vpop.permute.xlu0 %6317
  %6319 = vrot.lane.b32.xlu0 %v5978, 48
  %v6320 = vpop.permute.xlu0 %6319
  %6321 = vrot.lane.b32.xlu0 %v5979, 48
  %v6322 = vpop.permute.xlu0 %6321
  %6323 = vrot.lane.b32.xlu0 %v5980, 48
  %v6324 = vpop.permute.xlu0 %6323
  %6325 = vrot.lane.b32.xlu0 %v5981, 48
  %v6326 = vpop.permute.xlu0 %6325
  %6327 = vrot.lane.b32.xlu0 %v5982, 48
  %v6328 = vpop.permute.xlu0 %6327
  %6329 = vrot.lane.b32.xlu0 %v5983, 48
  %v6330 = vpop.permute.xlu0 %6329
  %6331 = vrot.lane.b32.xlu0 %v5984, 48
  %v6332 = vpop.permute.xlu0 %6331
  %6333 = vrot.lane.b32.xlu0 %v5985, 48
  %v6334 = vpop.permute.xlu0 %6333
  %6335 = vrot.lane.b32.xlu0 %v5986, 48
  %v6336 = vpop.permute.xlu0 %6335
  %6337 = vrot.lane.b32.xlu0 %v5987, 48
  %v6338 = vpop.permute.xlu0 %6337
  %6339 = vrot.lane.b32.xlu0 %v5988, 48
  %v6340 = vpop.permute.xlu0 %6339
  %v6373 = vsel %vm679, %v5861, %v6022
  %v6374 = vsel %vm679, %v5862, %v6024
  %v6375 = vsel %vm679, %v5863, %v6026
  %v6376 = vsel %vm679, %v5864, %v6028
  %v6377 = vsel %vm679, %v5865, %v6030
  %v6378 = vsel %vm679, %v5866, %v6032
  %v6379 = vsel %vm679, %v5867, %v6034
  %v6380 = vsel %vm679, %v5868, %v6036
  %v6381 = vsel %vm679, %v5869, %v6038
  %v6382 = vsel %vm679, %v5870, %v6040
  %v6383 = vsel %vm679, %v5871, %v6042
  %v6384 = vsel %vm679, %v5872, %v6044
  %v6385 = vsel %vm679, %v5873, %v6046
  %v6386 = vsel %vm679, %v5874, %v6048
  %v6387 = vsel %vm679, %v5875, %v6050
  %v6388 = vsel %vm679, %v5876, %v6052
  %v6389 = vsel %vm679, %v5877, %v6054
  %v6390 = vsel %vm679, %v5878, %v6056
  %v6391 = vsel %vm679, %v5879, %v6058
  %v6392 = vsel %vm679, %v5880, %v6060
  %v6393 = vsel %vm679, %v5881, %v6062
  %v6394 = vsel %vm679, %v5882, %v6064
  %v6395 = vsel %vm679, %v5883, %v6066
  %v6396 = vsel %vm679, %v5884, %v6068
  %v6397 = vsel %vm679, %v5885, %v6070
  %v6398 = vsel %vm679, %v5886, %v6072
  %v6399 = vsel %vm679, %v5887, %v6074
  %v6400 = vsel %vm679, %v5888, %v6076
  %v6401 = vsel %vm679, %v5889, %v6078
  %v6402 = vsel %vm679, %v5890, %v6080
  %v6403 = vsel %vm679, %v5891, %v6082
  %v6404 = vsel %vm679, %v5892, %v6084
  %v6405 = vsel %vm2756, %v6373, %v6150
  %v6406 = vsel %vm2756, %v6374, %v6152
  %v6407 = vsel %vm2756, %v6375, %v6154
  %v6408 = vsel %vm2756, %v6376, %v6156
  %v6409 = vsel %vm2756, %v6377, %v6158
  %v6410 = vsel %vm2756, %v6378, %v6160
  %v6411 = vsel %vm2756, %v6379, %v6162
  %v6412 = vsel %vm2756, %v6380, %v6164
  %v6413 = vsel %vm2756, %v6381, %v6166
  %v6414 = vsel %vm2756, %v6382, %v6168
  %v6415 = vsel %vm2756, %v6383, %v6170
  %v6416 = vsel %vm2756, %v6384, %v6172
  %v6417 = vsel %vm2756, %v6385, %v6174
  %v6418 = vsel %vm2756, %v6386, %v6176
  %v6419 = vsel %vm2756, %v6387, %v6178
  %v6420 = vsel %vm2756, %v6388, %v6180
  %v6421 = vsel %vm2756, %v6389, %v6182
  %v6422 = vsel %vm2756, %v6390, %v6184
  %v6423 = vsel %vm2756, %v6391, %v6186
  %v6424 = vsel %vm2756, %v6392, %v6188
  %v6425 = vsel %vm2756, %v6393, %v6190
  %v6426 = vsel %vm2756, %v6394, %v6192
  %v6427 = vsel %vm2756, %v6395, %v6194
  %v6428 = vsel %vm2756, %v6396, %v6196
  %v6429 = vsel %vm2756, %v6397, %v6198
  %v6430 = vsel %vm2756, %v6398, %v6200
  %v6431 = vsel %vm2756, %v6399, %v6202
  %v6432 = vsel %vm2756, %v6400, %v6204
  %v6433 = vsel %vm2756, %v6401, %v6206
  %v6434 = vsel %vm2756, %v6402, %v6208
  %v6435 = vsel %vm2756, %v6403, %v6210
  %v6436 = vsel %vm2756, %v6404, %v6212
  %vm6437 = vcmask 392192
  %v6438 = vsel %vm6437, %v6405, %v6278
  %v6439 = vsel %vm6437, %v6406, %v6280
  %v6440 = vsel %vm6437, %v6407, %v6282
  %v6441 = vsel %vm6437, %v6408, %v6284
  %v6442 = vsel %vm6437, %v6409, %v6286
  %v6443 = vsel %vm6437, %v6410, %v6288
  %v6444 = vsel %vm6437, %v6411, %v6290
  %v6445 = vsel %vm6437, %v6412, %v6292
  %v6446 = vsel %vm6437, %v6413, %v6294
  %v6447 = vsel %vm6437, %v6414, %v6296
  %v6448 = vsel %vm6437, %v6415, %v6298
  %v6449 = vsel %vm6437, %v6416, %v6300
  %v6450 = vsel %vm6437, %v6417, %v6302
  %v6451 = vsel %vm6437, %v6418, %v6304
  %v6452 = vsel %vm6437, %v6419, %v6306
  %v6453 = vsel %vm6437, %v6420, %v6308
  %v6454 = vsel %vm6437, %v6421, %v6310
  %v6455 = vsel %vm6437, %v6422, %v6312
  %v6456 = vsel %vm6437, %v6423, %v6314
  %v6457 = vsel %vm6437, %v6424, %v6316
  %v6458 = vsel %vm6437, %v6425, %v6318
  %v6459 = vsel %vm6437, %v6426, %v6320
  %v6460 = vsel %vm6437, %v6427, %v6322
  %v6461 = vsel %vm6437, %v6428, %v6324
  %v6462 = vsel %vm6437, %v6429, %v6326
  %v6463 = vsel %vm6437, %v6430, %v6328
  %v6464 = vsel %vm6437, %v6431, %v6330
  %v6465 = vsel %vm6437, %v6432, %v6332
  %v6466 = vsel %vm6437, %v6433, %v6334
  %v6467 = vsel %vm6437, %v6434, %v6336
  %v6468 = vsel %vm6437, %v6435, %v6338
  %v6469 = vsel %vm6437, %v6436, %v6340
  %v6470 = vpack.c.bf16 %v6439, %v6438
  %v6471 = vpack.c.bf16 %v6441, %v6440
  %v6472 = vpack.c.bf16 %v6443, %v6442
  %v6473 = vpack.c.bf16 %v6445, %v6444
  %v6474 = vpack.c.bf16 %v6447, %v6446
  %v6475 = vpack.c.bf16 %v6449, %v6448
  %v6476 = vpack.c.bf16 %v6451, %v6450
  %v6477 = vpack.c.bf16 %v6453, %v6452
  %v6478 = vpack.c.bf16 %v6455, %v6454
  %v6479 = vpack.c.bf16 %v6457, %v6456
  %v6480 = vpack.c.bf16 %v6459, %v6458
  %v6481 = vpack.c.bf16 %v6461, %v6460
  %v6482 = vpack.c.bf16 %v6463, %v6462
  %v6483 = vpack.c.bf16 %v6465, %v6464
  %v6484 = vpack.c.bf16 %v6467, %v6466
  %v6485 = vpack.c.bf16 %v6469, %v6468
  %v6486 = vld [vmem:[%s2] sm:$0xf]
  %v6487 = vld [vmem:[%s2 + $0x4] sm:$0xf]
  %v6488 = vld [vmem:[%s2 + $0x8] sm:$0xf]
  %v6489 = vld [vmem:[%s2 + $0xc] sm:$0xf]
  %v6490 = vld [vmem:[%s2 + $0x10] sm:$0xf]
  %v6491 = vld [vmem:[%s2 + $0x14] sm:$0xf]
  %v6492 = vld [vmem:[%s2 + $0x18] sm:$0xf]
  %v6493 = vld [vmem:[%s2 + $0x1c] sm:$0xf]
  %v6494 = vld [vmem:[%s3] sm:$0x1]
  %v6496 = vlaneseq
  %v6497 = vshrl.u32 %v6496, 7
  %v6498 = vsub.s32 0, %v6497
  %v6499 = vrot.slane %v6494, %v6498
  %v6509 = vunpack.c.l.b16 %v6486
  %v6510 = vunpack.c.l.b16 %v6487
  %v6511 = vunpack.c.l.b16 %v6488
  %v6512 = vunpack.c.l.b16 %v6489
  %v6513 = vunpack.c.l.b16 %v6490
  %v6514 = vunpack.c.l.b16 %v6491
  %v6515 = vunpack.c.l.b16 %v6492
  %v6516 = vunpack.c.l.b16 %v6493
  %v6517 = vpack.c.b16 %v6510, %v6509
  %v6518 = vpack.c.b16 %v6512, %v6511
  %v6519 = vpack.c.b16 %v6514, %v6513
  %v6520 = vpack.c.b16 %v6516, %v6515
  %v6526 = vsel %vm114, %v6470, 0
  %v6529 = vsel %vm114, %v6471, 0
  %v6532 = vsel %vm114, %v6472, 0
  %v6535 = vsel %vm114, %v6473, 0
  %v6538 = vsel %vm114, %v6474, 0
  %v6541 = vsel %vm114, %v6475, 0
  %v6544 = vsel %vm114, %v6476, 0
  %v6547 = vsel %vm114, %v6477, 0
  %v6550 = vsel %vm114, %v6478, 0
  %v6553 = vsel %vm114, %v6479, 0
  %v6556 = vsel %vm114, %v6480, 0
  %v6559 = vsel %vm114, %v6481, 0
  %v6562 = vsel %vm114, %v6482, 0
  %v6565 = vsel %vm114, %v6483, 0
  %v6568 = vsel %vm114, %v6484, 0
  %v6571 = vsel %vm114, %v6485, 0
  %6573 = vmatprep.subr.bf16.mxu0 0
  %6574 = vmatpush1.bf16.msra.mxu0 0
  %6575 = vmatprep.subr.bf16.mxu0 0
  %6576 = vmatpush1.bf16.msra.mxu0 0
  %6577 = vmatprep.subr.bf16.mxu0 0
  %6578 = vmatpush1.bf16.msra.mxu0 0
  %6579 = vmatprep.subr.bf16.mxu0 0
  %6580 = vmatpush1.bf16.msra.mxu0 0
  %6581 = vmatprep.subr.bf16.mxu0 0
  %6582 = vmatpush1.bf16.msra.mxu0 %v6520
  %6583 = vmatprep.subr.bf16.mxu0 0
  %6584 = vmatpush1.bf16.msra.mxu0 %v6519
  %6585 = vmatprep.subr.bf16.mxu0 0
  %6586 = vmatpush1.bf16.msra.mxu0 %v6518
  %6587 = vmatprep.subr.bf16.mxu0 0
  %6588 = vmatpush1.bf16.msra.mxu0 %v6517
  %6589 = vmatprep.subr.bf16.mxu0 0
  %6590 = vmatpush2.bf16.msra.mxu0 0
  %6591 = vmatprep.subr.bf16.mxu0 0
  %6592 = vmatpush2.bf16.msra.mxu0 0
  %6593 = vmatprep.subr.bf16.mxu0 0
  %6594 = vmatpush2.bf16.msra.mxu0 0
  %6595 = vmatprep.subr.bf16.mxu0 0
  %6596 = vmatpush2.bf16.msra.mxu0 0
  %6597 = vmatprep.subr.bf16.mxu0 0
  %6598 = vmatpush2.bf16.msra.mxu0 0
  %6599 = vmatprep.subr.bf16.mxu0 0
  %6600 = vmatpush2.bf16.msra.mxu0 0
  %6601 = vmatprep.subr.bf16.mxu0 0
  %6602 = vmatpush2.bf16.msra.mxu0 0
  %6603 = vmatprep.subr.bf16.mxu0 0
  %6604 = vmatpush2.bf16.msra.mxu0 0
  %6605 = vmatprep.mubr.bf16.mxu0 0
  %6606 = vmatmul.mubr.bf16.gmra.mxu0 %v6526
  %v6607 = vpop.f32.mrf.mxu0
  %v6608 = vadd.f32 %v6499, %v6607
  %v6609 = vpop.f32.mrf.mxu0
  %v6610 = vpop.f32.mrf.mxu0
  %v6611 = vadd.f32 %v6499, %v6610
  %v6612 = vpop.f32.mrf.mxu0
  %6613 = vmatprep.mubr.bf16.mxu0 0
  %6614 = vmatmul.mubr.bf16.gmra.mxu0 %v6529
  %v6615 = vpop.f32.mrf.mxu0
  %v6616 = vadd.f32 %v6499, %v6615
  %v6617 = vpop.f32.mrf.mxu0
  %v6618 = vpop.f32.mrf.mxu0
  %v6619 = vadd.f32 %v6499, %v6618
  %v6620 = vpop.f32.mrf.mxu0
  %6621 = vmatprep.mubr.bf16.mxu0 0
  %6622 = vmatmul.mubr.bf16.gmra.mxu0 %v6532
  %v6623 = vpop.f32.mrf.mxu0
  %v6624 = vadd.f32 %v6499, %v6623
  %v6625 = vpop.f32.mrf.mxu0
  %v6626 = vpop.f32.mrf.mxu0
  %v6627 = vadd.f32 %v6499, %v6626
  %v6628 = vpop.f32.mrf.mxu0
  %6629 = vmatprep.mubr.bf16.mxu0 0
  %6630 = vmatmul.mubr.bf16.gmra.mxu0 %v6535
  %v6631 = vpop.f32.mrf.mxu0
  %v6632 = vadd.f32 %v6499, %v6631
  %v6633 = vpop.f32.mrf.mxu0
  %v6634 = vpop.f32.mrf.mxu0
  %v6635 = vadd.f32 %v6499, %v6634
  %v6636 = vpop.f32.mrf.mxu0
  %6637 = vmatprep.mubr.bf16.mxu0 0
  %6638 = vmatmul.mubr.bf16.gmra.mxu0 %v6538
  %v6639 = vpop.f32.mrf.mxu0
  %v6640 = vadd.f32 %v6499, %v6639
  %v6641 = vpop.f32.mrf.mxu0
  %v6642 = vpop.f32.mrf.mxu0
  %v6643 = vadd.f32 %v6499, %v6642
  %v6644 = vpop.f32.mrf.mxu0
  %6645 = vmatprep.mubr.bf16.mxu0 0
  %6646 = vmatmul.mubr.bf16.gmra.mxu0 %v6541
  %v6647 = vpop.f32.mrf.mxu0
  %v6648 = vadd.f32 %v6499, %v6647
  %v6649 = vpop.f32.mrf.mxu0
  %v6650 = vpop.f32.mrf.mxu0
  %v6651 = vadd.f32 %v6499, %v6650
  %v6652 = vpop.f32.mrf.mxu0
  %6653 = vmatprep.mubr.bf16.mxu0 0
  %6654 = vmatmul.mubr.bf16.gmra.mxu0 %v6544
  %v6655 = vpop.f32.mrf.mxu0
  %v6656 = vadd.f32 %v6499, %v6655
  %v6657 = vpop.f32.mrf.mxu0
  %v6658 = vpop.f32.mrf.mxu0
  %v6659 = vadd.f32 %v6499, %v6658
  %v6660 = vpop.f32.mrf.mxu0
  %6661 = vmatprep.mubr.bf16.mxu0 0
  %6662 = vmatmul.mubr.bf16.gmra.mxu0 %v6547
  %v6663 = vpop.f32.mrf.mxu0
  %v6664 = vadd.f32 %v6499, %v6663
  %v6665 = vpop.f32.mrf.mxu0
  %v6666 = vpop.f32.mrf.mxu0
  %v6667 = vadd.f32 %v6499, %v6666
  %v6668 = vpop.f32.mrf.mxu0
  %6669 = vmatprep.mubr.bf16.mxu0 0
  %6670 = vmatmul.mubr.bf16.gmra.mxu0 %v6550
  %v6671 = vpop.f32.mrf.mxu0
  %v6672 = vadd.f32 %v6499, %v6671
  %v6673 = vpop.f32.mrf.mxu0
  %v6674 = vpop.f32.mrf.mxu0
  %v6675 = vadd.f32 %v6499, %v6674
  %v6676 = vpop.f32.mrf.mxu0
  %6677 = vmatprep.mubr.bf16.mxu0 0
  %6678 = vmatmul.mubr.bf16.gmra.mxu0 %v6553
  %v6679 = vpop.f32.mrf.mxu0
  %v6680 = vadd.f32 %v6499, %v6679
  %v6681 = vpop.f32.mrf.mxu0
  %v6682 = vpop.f32.mrf.mxu0
  %v6683 = vadd.f32 %v6499, %v6682
  %v6684 = vpop.f32.mrf.mxu0
  %6685 = vmatprep.mubr.bf16.mxu0 0
  %6686 = vmatmul.mubr.bf16.gmra.mxu0 %v6556
  %v6687 = vpop.f32.mrf.mxu0
  %v6688 = vadd.f32 %v6499, %v6687
  %v6689 = vpop.f32.mrf.mxu0
  %v6690 = vpop.f32.mrf.mxu0
  %v6691 = vadd.f32 %v6499, %v6690
  %v6692 = vpop.f32.mrf.mxu0
  %6693 = vmatprep.mubr.bf16.mxu0 0
  %6694 = vmatmul.mubr.bf16.gmra.mxu0 %v6559
  %v6695 = vpop.f32.mrf.mxu0
  %v6696 = vadd.f32 %v6499, %v6695
  %v6697 = vpop.f32.mrf.mxu0
  %v6698 = vpop.f32.mrf.mxu0
  %v6699 = vadd.f32 %v6499, %v6698
  %v6700 = vpop.f32.mrf.mxu0
  %6701 = vmatprep.mubr.bf16.mxu0 0
  %6702 = vmatmul.mubr.bf16.gmra.mxu0 %v6562
  %v6703 = vpop.f32.mrf.mxu0
  %v6704 = vadd.f32 %v6499, %v6703
  %v6705 = vpop.f32.mrf.mxu0
  %v6706 = vpop.f32.mrf.mxu0
  %v6707 = vadd.f32 %v6499, %v6706
  %v6708 = vpop.f32.mrf.mxu0
  %6709 = vmatprep.mubr.bf16.mxu0 0
  %6710 = vmatmul.mubr.bf16.gmra.mxu0 %v6565
  %v6711 = vpop.f32.mrf.mxu0
  %v6712 = vadd.f32 %v6499, %v6711
  %v6713 = vpop.f32.mrf.mxu0
  %v6714 = vpop.f32.mrf.mxu0
  %v6715 = vadd.f32 %v6499, %v6714
  %v6716 = vpop.f32.mrf.mxu0
  %6717 = vmatprep.mubr.bf16.mxu0 0
  %6718 = vmatmul.mubr.bf16.gmra.mxu0 %v6568
  %v6719 = vpop.f32.mrf.mxu0
  %v6720 = vadd.f32 %v6499, %v6719
  %v6721 = vpop.f32.mrf.mxu0
  %v6722 = vpop.f32.mrf.mxu0
  %v6723 = vadd.f32 %v6499, %v6722
  %v6724 = vpop.f32.mrf.mxu0
  %6725 = vmatprep.mubr.bf16.mxu0 0
  %6726 = vmatmul.mubr.bf16.gmra.mxu0 %v6571
  %v6727 = vpop.f32.mrf.mxu0
  %v6728 = vadd.f32 %v6499, %v6727
  %v6729 = vpop.f32.mrf.mxu0
  %v6730 = vpop.f32.mrf.mxu0
  %v6731 = vadd.f32 %v6499, %v6730
  %v6732 = vpop.f32.mrf.mxu0
  %6733 = vdwg.mxu0
  %6734 = vst.msk [vmem:[%s4] sm:$0xff] %vm114, %v6608
  %6735 = vst.msk [vmem:[%s4 + $0x8] sm:$0xff] %vm114, %v6611
  %6736 = vst.msk [vmem:[%s4 + $0x10] sm:$0xff] %vm114, %v6616
  %6737 = vst.msk [vmem:[%s4 + $0x18] sm:$0xff] %vm114, %v6619
  %6738 = vst.msk [vmem:[%s4 + $0x20] sm:$0xff] %vm114, %v6624
  %6739 = vst.msk [vmem:[%s4 + $0x28] sm:$0xff] %vm114, %v6627
  %6740 = vst.msk [vmem:[%s4 + $0x30] sm:$0xff] %vm114, %v6632
  %6741 = vst.msk [vmem:[%s4 + $0x38] sm:$0xff] %vm114, %v6635
  %6742 = vst.msk [vmem:[%s4 + $0x40] sm:$0xff] %vm114, %v6640
  %6743 = vst.msk [vmem:[%s4 + $0x48] sm:$0xff] %vm114, %v6643
  %6744 = vst.msk [vmem:[%s4 + $0x50] sm:$0xff] %vm114, %v6648
  %6745 = vst.msk [vmem:[%s4 + $0x58] sm:$0xff] %vm114, %v6651
  %6746 = vst.msk [vmem:[%s4 + $0x60] sm:$0xff] %vm114, %v6656
  %6747 = vst.msk [vmem:[%s4 + $0x68] sm:$0xff] %vm114, %v6659
  %6748 = vst.msk [vmem:[%s4 + $0x70] sm:$0xff] %vm114, %v6664
  %6749 = vst.msk [vmem:[%s4 + $0x78] sm:$0xff] %vm114, %v6667
  %6750 = vst.msk [vmem:[%s4 + $0x80] sm:$0xff] %vm114, %v6672
  %6751 = vst.msk [vmem:[%s4 + $0x88] sm:$0xff] %vm114, %v6675
  %6752 = vst.msk [vmem:[%s4 + $0x90] sm:$0xff] %vm114, %v6680
  %6753 = vst.msk [vmem:[%s4 + $0x98] sm:$0xff] %vm114, %v6683
  %6754 = vst.msk [vmem:[%s4 + $0xa0] sm:$0xff] %vm114, %v6688
  %6755 = vst.msk [vmem:[%s4 + $0xa8] sm:$0xff] %vm114, %v6691
  %6756 = vst.msk [vmem:[%s4 + $0xb0] sm:$0xff] %vm114, %v6696
  %6757 = vst.msk [vmem:[%s4 + $0xb8] sm:$0xff] %vm114, %v6699
  %6758 = vst.msk [vmem:[%s4 + $0xc0] sm:$0xff] %vm114, %v6704
  %6759 = vst.msk [vmem:[%s4 + $0xc8] sm:$0xff] %vm114, %v6707
  %6760 = vst.msk [vmem:[%s4 + $0xd0] sm:$0xff] %vm114, %v6712
  %6761 = vst.msk [vmem:[%s4 + $0xd8] sm:$0xff] %vm114, %v6715
  %6762 = vst.msk [vmem:[%s4 + $0xe0] sm:$0xff] %vm114, %v6720
  %6763 = vst.msk [vmem:[%s4 + $0xe8] sm:$0xff] %vm114, %v6723
  %6764 = vst.msk [vmem:[%s4 + $0xf0] sm:$0xff] %vm114, %v6728
  %6765 = vst.msk [vmem:[%s4 + $0xf8] sm:$0xff] %vm114, %v6731
  // Predicated region
  $region18: #{tpu_custom_call.1} parent=0 // pred_check
    _
  $region19: #{tpu_custom_call.1} parent=0 // pred_check_branch
    %6767 = sbr.rel (0) target = $region21
  $region20: #{tpu_custom_call.1} parent=0 // pred_region
    _
  $region21: #{tpu_custom_call.1} parent=0 // pred_fallthru
    _
  // Predicated region
  $region22: #{tpu_custom_call.1} parent=0 // pred_check
    _
  $region23: #{tpu_custom_call.1} parent=0 // pred_check_branch
    %6769 = sbr.rel (0) target = $region25
  $region24: #{tpu_custom_call.1} parent=0 // pred_region
    _
  $region25: #{tpu_custom_call.1} parent=0 // pred_fallthru
    _

</llo_original>
